<compile_context>
chip_gen: v6e
topology: v6e:2x2x1
jax: 0.10.0
libtpu: 0.0.40
codegen_flags: <defaults>
</compile_context>

<pallas_src>
import functools

import jax
import jax.numpy as jnp
from jax.experimental import pallas as pl
from jax.experimental.pallas import tpu as pltpu

LEAKY_SLOPE = 0.2   # PyG GATv2 default negative_slope
NEG_INF = -1e30


# --------------------------------------------------------------------------- #
# In-kernel GATv2 layer
# --------------------------------------------------------------------------- #
def _gatv2_layer(x, w_flat, b_flat, att, bias, adj_bias, *, heads, out_ch,
                 concat):
    """One dense GATv2 layer.

    x        : [N, Fin]        node features
    w_flat   : [Fin, 2*H*C]    columns = [lin_l (head-major) | lin_r (head-major)]
    b_flat   : [1, 2*H*C]      projection biases (same column layout)
    att      : [H, C]          attention vectors
    bias     : [1, out_dim]    output bias
    adj_bias : [N, N]          additive mask (0 on edge/self-loop, -1e30 else)
    """
    n = x.shape[0]
    hc = heads * out_ch

    # ---- single flat projection GEMM (bf16 MXU operands, f32 accumulate) ----
    proj = jnp.dot(x.astype(jnp.bfloat16), w_flat.astype(jnp.bfloat16),
                   preferred_element_type=jnp.float32) + b_flat        # [N, 2HC]
    xl = proj[:, :hc]                    # [N, HC] source features (= messages)
    xr = proj[:, hc:]                    # [N, HC] target features
    xl_t = xl.T                          # [HC, N]: source node index on lanes

    outs = []
    for h in range(heads):
        # ---- score e_h[i, j] = att[h] . LeakyReLU(xr[i] + xl[j]) -----------
        # Accumulated as an [N, N] tile (target i on sublanes, source j on
        # lanes) over the tiny static channel dim -> no [H,N,N,C] intermediate.
        e_h = None
        for c in range(out_ch):
            idx = h * out_ch + c
            s = xr[:, idx:idx + 1] + xl_t[idx:idx + 1, :]              # [N, N]
            s = jnp.where(s >= 0, s, LEAKY_SLOPE * s)
            term = att[h:h + 1, c:c + 1] * s
            e_h = term if e_h is None else e_h + term

        # ---- masked softmax over source nodes j (lanes) ---------------------
        e_h = e_h + adj_bias
        e_h = e_h - jnp.max(e_h, axis=-1, keepdims=True)
        p = jnp.exp(e_h)                                               # f32 EUP
        alpha = p * pl.reciprocal(jnp.sum(p, axis=-1, keepdims=True),
                                  approx=True)

        # ---- aggregation on the MXU (bf16 operands, f32 accumulate) ---------
        out_h = jnp.dot(alpha.astype(jnp.bfloat16),
                        xl[:, h * out_ch:(h + 1) * out_ch].astype(jnp.bfloat16),
                        preferred_element_type=jnp.float32)            # [N, C]
        outs.append(out_h)

    if concat:
        # O(N*H*C) lane relayout — negligible vs the O(N^2) score/softmax work.
        out = outs[0] if heads == 1 else jnp.concatenate(outs, axis=-1)
    else:
        out = outs[0]
        for h in range(1, heads):
            out = out + outs[h]
        if heads > 1:
            out = out * (1.0 / heads)
    return out + bias


def gat_bin_kernel(x_ref, adj_ref, w1_ref, w2_ref, w3_ref, vec_ref, out_ref,
                   *, layer_cfg, vec_offs):
    """Fused GATBin forward: all three GATv2 layers in one kernel invocation."""
    # Expand the int8 adjacency to the additive softmax bias ONCE; shared
    # across all three layers and every head.
    adj_bias = jnp.where(adj_ref[...].astype(jnp.float32) > 0.0, 0.0, NEG_INF)

    out = x_ref[...]
    for w_ref, cfg, offs in zip((w1_ref, w2_ref, w3_ref), layer_cfg, vec_offs):
        heads, out_ch, concat, relu, softmax_out = cfg
        r0, nr, nc = offs["b_flat"]
        b_flat = vec_ref[r0:r0 + nr, :nc]
        r0, nr, nc = offs["att"]
        att = vec_ref[r0:r0 + nr, :nc]
        r0, nr, nc = offs["bias"]
        bias = vec_ref[r0:r0 + nr, :nc]

        out = _gatv2_layer(out, w_ref[...], b_flat, att, bias, adj_bias,
                           heads=heads, out_ch=out_ch, concat=concat)
        if relu:
            out = jnp.maximum(out, 0.0)
        if softmax_out:                           # F.softmax(dim=1) on final layer
            out = out - jnp.max(out, axis=1, keepdims=True)
            pe = jnp.exp(out)
            out = pe / jnp.sum(pe, axis=1, keepdims=True)   # exact (width = 1)
    out_ref[...] = out.astype(out_ref.dtype)


# --------------------------------------------------------------------------- #
# Host-side wrappers
# --------------------------------------------------------------------------- #
def _round_up(v, m):
    return (v + m - 1) // m * m


def pack_small_params(layer_params):
    """Pack every layer's small 2-D params (b_flat, att, bias) into ONE slab.

    Each block is padded to 8 rows (sublane-aligned static slices in-kernel)
    and to a common lane width, so the kernel gets one DMA instead of nine.
    Returns (packed [R, W] f32, static per-layer {name: (row, nrows, ncols)}).
    """
    keys = ("b_flat", "att", "bias")
    width = max(int(p[k].shape[1]) for p in layer_params for k in keys)
    blocks, offsets, row = [], [], 0
    for p in layer_params:
        offs = {}
        for k in keys:
            a = p[k]
            nr, nc = int(a.shape[0]), int(a.shape[1])
            nr8 = _round_up(nr, 8)
            blocks.append(jnp.pad(a.astype(jnp.float32),
                                  ((0, nr8 - nr), (0, width - nc))))
            offs[k] = (row, nr, nc)
            row += nr8
        offsets.append(offs)
    return jnp.concatenate(blocks, axis=0), tuple(offsets)


def gat_bin_forward(x, adj_i8, params, layer_cfg):
    """params: 3-tuple of dicts(w_flat, b_flat, att, bias); layer_cfg static."""
    n = x.shape[0]
    heads_l, out_ch_l, concat_l = layer_cfg[-1][:3]
    out_dim = heads_l * out_ch_l if concat_l else out_ch_l

    vec_packed, vec_offs = pack_small_params(params)
    kernel = functools.partial(gat_bin_kernel, layer_cfg=layer_cfg,
                               vec_offs=vec_offs)
    vmem = pl.BlockSpec(memory_space=pltpu.MemorySpace.VMEM)
    return pl.pallas_call(
        kernel,
        out_shape=jax.ShapeDtypeStruct((n, out_dim), jnp.float32),
        in_specs=[vmem] * 6,
        out_specs=vmem,
    )(x, adj_i8, params[0]["w_flat"], params[1]["w_flat"],
      params[2]["w_flat"], vec_packed)


def glorot(key, shape):
    fan_in, fan_out = shape[-2], shape[-1]
    lim = (6.0 / (fan_in + fan_out)) ** 0.5
    return jax.random.uniform(key, shape, jnp.float32, -lim, lim)


def init_gatv2_params(key, in_ch, out_ch, heads, concat):
    kl, kr, ka = jax.random.split(key, 3)
    out_dim = heads * out_ch if concat else out_ch
    wl = glorot(kl, (in_ch, heads * out_ch))      # lin_l (source), head-major cols
    wr = glorot(kr, (in_ch, heads * out_ch))      # lin_r (target), head-major cols
    return dict(
        w_flat=jnp.concatenate([wl, wr], axis=1),                # [Fin, 2*H*C]
        b_flat=jnp.zeros((1, 2 * heads * out_ch), jnp.float32),  # [1, 2*H*C]
        att=glorot(ka, (heads, out_ch)),                         # [H, C]
        bias=jnp.zeros((1, out_dim), jnp.float32),               # [1, out_dim]
    )


if __name__ == "__main__":
    N = 16                      # nodes
    E = 32                      # edges
    num_features = [8, 32]      # 32 == out_channels[0] * heads[0]
    out_channels = [8, 2]
    heads = [4, 4]
    output_val = 1

    key = jax.random.PRNGKey(0)
    kx, ke, kp = jax.random.split(key, 3)

    x = jax.random.normal(kx, (N, num_features[0]), jnp.float32)
    edge_index = jax.random.randint(ke, (2, E), 0, N)                 # [2, E] src/dst

    # int8 adjacency (1 where an edge dst<-src exists, plus self-loops matching
    # the PyG default, 0 elsewhere).  Expanded to the additive -1e30 softmax
    # bias inside the kernel, so the only O(N^2) HBM input is 1 byte/element.
    adj = jnp.zeros((N, N), jnp.int8)
    adj = adj.at[edge_index[1], edge_index[0]].set(1)
    adj = adj.at[jnp.arange(N), jnp.arange(N)].set(1)

    k1, k2, k3 = jax.random.split(kp, 3)
    p1 = init_gatv2_params(k1, num_features[0], out_channels[0], heads[0], concat=True)
    p2 = init_gatv2_params(k2, num_features[1], 2, heads[1], concat=True)
    p3 = init_gatv2_params(k3, out_channels[-1] * heads[-1], output_val, 1,
                           concat=False)

    layer_cfg = (
        (heads[0], out_channels[0], True, True, False),    # gat1 + ReLU
        (heads[1], 2, True, True, False),                  # gat2 + ReLU
        (1, output_val, False, True, True),                # finalGat + ReLU + softmax
    )

    out = gat_bin_forward(x, adj, (p1, p2, p3), layer_cfg)
    out = jax.block_until_ready(out)

    assert out.shape == (N, output_val)
    assert bool(jnp.all(jnp.isfinite(out)))
    # softmax over a width-1 dim is identically 1.0 (matches the PyTorch module)
    assert bool(jnp.allclose(out, 1.0))
    print("KERNEL_OK")
</pallas_src>

<mosaic_0001>
module attributes {stable_mosaic.version = 11 : i64} {
  func.func @gat_bin_kernel(%arg0: memref<16x8xf32, #tpu.memory_space<vmem>>, %arg1: memref<16x16xi8, #tpu.memory_space<vmem>>, %arg2: memref<8x64xf32, #tpu.memory_space<vmem>>, %arg3: memref<32x16xf32, #tpu.memory_space<vmem>>, %arg4: memref<8x2xf32, #tpu.memory_space<vmem>>, %arg5: memref<72x64xf32, #tpu.memory_space<vmem>>, %arg6: memref<16x1xf32, #tpu.memory_space<vmem>>) attributes {dimension_semantics = [], scalar_prefetch = 0 : i64, scratch_operands = 0 : i64, tpu.core_type = #tpu.core_type<tc>} {
    %c0 = arith.constant 0 : index
    %c0_0 = arith.constant 0 : index
    %0 = vector.load %arg1[%c0, %c0_0] : memref<16x16xi8, #tpu.memory_space<vmem>>, vector<16x16xi8>
    %1 = arith.sitofp %0 : vector<16x16xi8> to vector<16x16xf32>
    %cst = arith.constant 0.000000e+00 : f32
    %2 = vector.broadcast %cst : f32 to vector<16x16xf32>
    %3 = arith.cmpf ogt, %1, %2 : vector<16x16xf32>
    %cst_1 = arith.constant 0.000000e+00 : f32
    %cst_2 = arith.constant -1.000000e+30 : f32
    %4 = vector.broadcast %cst_1 : f32 to vector<16x16xf32>
    %5 = vector.broadcast %cst_2 : f32 to vector<16x16xf32>
    %6 = arith.select %3, %4, %5 : vector<16x16xi1>, vector<16x16xf32>
    %c0_3 = arith.constant 0 : index
    %c0_4 = arith.constant 0 : index
    %7 = vector.load %arg0[%c0_3, %c0_4] : memref<16x8xf32, #tpu.memory_space<vmem>>, vector<16x8xf32>
    %c0_5 = arith.constant 0 : index
    %c0_6 = arith.constant 0 : index
    %8 = vector.load %arg5[%c0_5, %c0_6] : memref<72x64xf32, #tpu.memory_space<vmem>>, vector<1x64xf32>
    %c8 = arith.constant 8 : index
    %c0_7 = arith.constant 0 : index
    %9 = vector.load %arg5[%c8, %c0_7] : memref<72x64xf32, #tpu.memory_space<vmem>>, vector<4x8xf32>
    %c16 = arith.constant 16 : index
    %c0_8 = arith.constant 0 : index
    %10 = vector.load %arg5[%c16, %c0_8] : memref<72x64xf32, #tpu.memory_space<vmem>>, vector<1x32xf32>
    %c0_9 = arith.constant 0 : index
    %c0_10 = arith.constant 0 : index
    %11 = vector.load %arg2[%c0_9, %c0_10] : memref<8x64xf32, #tpu.memory_space<vmem>>, vector<8x64xf32>
    %12 = arith.truncf %7 : vector<16x8xf32> to vector<16x8xbf16>
    %13 = arith.truncf %11 : vector<8x64xf32> to vector<8x64xbf16>
    %cst_11 = arith.constant dense<0.000000e+00> : vector<16x64xf32>
    %14 = tpu.matmul %12, %13, %cst_11 {dimension_numbers = #tpu.dot_dimension_numbers<[1], [0], [0], [1], [0, 0, 1, 1], [], []>} : vector<16x8xbf16>, vector<8x64xbf16>, vector<16x64xf32> -> vector<16x64xf32>
    %15 = vector.broadcast %8 : vector<1x64xf32> to vector<16x64xf32>
    %16 = arith.addf %14, %15 : vector<16x64xf32>
    %17 = vector.extract_strided_slice %16 {offsets = [0, 0], sizes = [16, 32], strides = [1, 1]} : vector<16x64xf32> to vector<16x32xf32>
    %18 = vector.extract_strided_slice %16 {offsets = [0, 32], sizes = [16, 32], strides = [1, 1]} : vector<16x64xf32> to vector<16x32xf32>
    %19 = tpu.transpose %17, [1, 0] : vector<16x32xf32> -> vector<32x16xf32>
    %20 = vector.extract_strided_slice %18 {offsets = [0, 0], sizes = [16, 1], strides = [1, 1]} : vector<16x32xf32> to vector<16x1xf32>
    %21 = vector.extract_strided_slice %19 {offsets = [0, 0], sizes = [1, 16], strides = [1, 1]} : vector<32x16xf32> to vector<1x16xf32>
    %22 = vector.broadcast %20 : vector<16x1xf32> to vector<16x16xf32>
    %23 = vector.broadcast %21 : vector<1x16xf32> to vector<16x16xf32>
    %24 = arith.addf %22, %23 : vector<16x16xf32>
    %cst_12 = arith.constant 0.000000e+00 : f32
    %25 = vector.broadcast %cst_12 : f32 to vector<16x16xf32>
    %26 = arith.cmpf oge, %24, %25 : vector<16x16xf32>
    %cst_13 = arith.constant 2.000000e-01 : f32
    %27 = vector.broadcast %cst_13 : f32 to vector<16x16xf32>
    %28 = arith.mulf %27, %24 : vector<16x16xf32>
    %29 = arith.select %26, %24, %28 : vector<16x16xi1>, vector<16x16xf32>
    %30 = vector.extract_strided_slice %9 {offsets = [0, 0], sizes = [1, 1], strides = [1, 1]} : vector<4x8xf32> to vector<1x1xf32>
    %31 = vector.broadcast %30 : vector<1x1xf32> to vector<16x16xf32>
    %32 = arith.mulf %31, %29 : vector<16x16xf32>
    %33 = vector.extract_strided_slice %18 {offsets = [0, 1], sizes = [16, 1], strides = [1, 1]} : vector<16x32xf32> to vector<16x1xf32>
    %34 = vector.extract_strided_slice %19 {offsets = [1, 0], sizes = [1, 16], strides = [1, 1]} : vector<32x16xf32> to vector<1x16xf32>
    %35 = vector.broadcast %33 : vector<16x1xf32> to vector<16x16xf32>
    %36 = vector.broadcast %34 : vector<1x16xf32> to vector<16x16xf32>
    %37 = arith.addf %35, %36 : vector<16x16xf32>
    %cst_14 = arith.constant 0.000000e+00 : f32
    %38 = vector.broadcast %cst_14 : f32 to vector<16x16xf32>
    %39 = arith.cmpf oge, %37, %38 : vector<16x16xf32>
    %cst_15 = arith.constant 2.000000e-01 : f32
    %40 = vector.broadcast %cst_15 : f32 to vector<16x16xf32>
    %41 = arith.mulf %40, %37 : vector<16x16xf32>
    %42 = arith.select %39, %37, %41 : vector<16x16xi1>, vector<16x16xf32>
    %43 = vector.extract_strided_slice %9 {offsets = [0, 1], sizes = [1, 1], strides = [1, 1]} : vector<4x8xf32> to vector<1x1xf32>
    %44 = vector.broadcast %43 : vector<1x1xf32> to vector<16x16xf32>
    %45 = arith.mulf %44, %42 : vector<16x16xf32>
    %46 = arith.addf %32, %45 : vector<16x16xf32>
    %47 = vector.extract_strided_slice %18 {offsets = [0, 2], sizes = [16, 1], strides = [1, 1]} : vector<16x32xf32> to vector<16x1xf32>
    %48 = vector.extract_strided_slice %19 {offsets = [2, 0], sizes = [1, 16], strides = [1, 1]} : vector<32x16xf32> to vector<1x16xf32>
    %49 = vector.broadcast %47 : vector<16x1xf32> to vector<16x16xf32>
    %50 = vector.broadcast %48 : vector<1x16xf32> to vector<16x16xf32>
    %51 = arith.addf %49, %50 : vector<16x16xf32>
    %cst_16 = arith.constant 0.000000e+00 : f32
    %52 = vector.broadcast %cst_16 : f32 to vector<16x16xf32>
    %53 = arith.cmpf oge, %51, %52 : vector<16x16xf32>
    %cst_17 = arith.constant 2.000000e-01 : f32
    %54 = vector.broadcast %cst_17 : f32 to vector<16x16xf32>
    %55 = arith.mulf %54, %51 : vector<16x16xf32>
    %56 = arith.select %53, %51, %55 : vector<16x16xi1>, vector<16x16xf32>
    %57 = vector.extract_strided_slice %9 {offsets = [0, 2], sizes = [1, 1], strides = [1, 1]} : vector<4x8xf32> to vector<1x1xf32>
    %58 = vector.broadcast %57 : vector<1x1xf32> to vector<16x16xf32>
    %59 = arith.mulf %58, %56 : vector<16x16xf32>
    %60 = arith.addf %46, %59 : vector<16x16xf32>
    %61 = vector.extract_strided_slice %18 {offsets = [0, 3], sizes = [16, 1], strides = [1, 1]} : vector<16x32xf32> to vector<16x1xf32>
    %62 = vector.extract_strided_slice %19 {offsets = [3, 0], sizes = [1, 16], strides = [1, 1]} : vector<32x16xf32> to vector<1x16xf32>
    %63 = vector.broadcast %61 : vector<16x1xf32> to vector<16x16xf32>
    %64 = vector.broadcast %62 : vector<1x16xf32> to vector<16x16xf32>
    %65 = arith.addf %63, %64 : vector<16x16xf32>
    %cst_18 = arith.constant 0.000000e+00 : f32
    %66 = vector.broadcast %cst_18 : f32 to vector<16x16xf32>
    %67 = arith.cmpf oge, %65, %66 : vector<16x16xf32>
    %cst_19 = arith.constant 2.000000e-01 : f32
    %68 = vector.broadcast %cst_19 : f32 to vector<16x16xf32>
    %69 = arith.mulf %68, %65 : vector<16x16xf32>
    %70 = arith.select %67, %65, %69 : vector<16x16xi1>, vector<16x16xf32>
    %71 = vector.extract_strided_slice %9 {offsets = [0, 3], sizes = [1, 1], strides = [1, 1]} : vector<4x8xf32> to vector<1x1xf32>
    %72 = vector.broadcast %71 : vector<1x1xf32> to vector<16x16xf32>
    %73 = arith.mulf %72, %70 : vector<16x16xf32>
    %74 = arith.addf %60, %73 : vector<16x16xf32>
    %75 = vector.extract_strided_slice %18 {offsets = [0, 4], sizes = [16, 1], strides = [1, 1]} : vector<16x32xf32> to vector<16x1xf32>
    %76 = vector.extract_strided_slice %19 {offsets = [4, 0], sizes = [1, 16], strides = [1, 1]} : vector<32x16xf32> to vector<1x16xf32>
    %77 = vector.broadcast %75 : vector<16x1xf32> to vector<16x16xf32>
    %78 = vector.broadcast %76 : vector<1x16xf32> to vector<16x16xf32>
    %79 = arith.addf %77, %78 : vector<16x16xf32>
    %cst_20 = arith.constant 0.000000e+00 : f32
    %80 = vector.broadcast %cst_20 : f32 to vector<16x16xf32>
    %81 = arith.cmpf oge, %79, %80 : vector<16x16xf32>
    %cst_21 = arith.constant 2.000000e-01 : f32
    %82 = vector.broadcast %cst_21 : f32 to vector<16x16xf32>
    %83 = arith.mulf %82, %79 : vector<16x16xf32>
    %84 = arith.select %81, %79, %83 : vector<16x16xi1>, vector<16x16xf32>
    %85 = vector.extract_strided_slice %9 {offsets = [0, 4], sizes = [1, 1], strides = [1, 1]} : vector<4x8xf32> to vector<1x1xf32>
    %86 = vector.broadcast %85 : vector<1x1xf32> to vector<16x16xf32>
    %87 = arith.mulf %86, %84 : vector<16x16xf32>
    %88 = arith.addf %74, %87 : vector<16x16xf32>
    %89 = vector.extract_strided_slice %18 {offsets = [0, 5], sizes = [16, 1], strides = [1, 1]} : vector<16x32xf32> to vector<16x1xf32>
    %90 = vector.extract_strided_slice %19 {offsets = [5, 0], sizes = [1, 16], strides = [1, 1]} : vector<32x16xf32> to vector<1x16xf32>
    %91 = vector.broadcast %89 : vector<16x1xf32> to vector<16x16xf32>
    %92 = vector.broadcast %90 : vector<1x16xf32> to vector<16x16xf32>
    %93 = arith.addf %91, %92 : vector<16x16xf32>
    %cst_22 = arith.constant 0.000000e+00 : f32
    %94 = vector.broadcast %cst_22 : f32 to vector<16x16xf32>
    %95 = arith.cmpf oge, %93, %94 : vector<16x16xf32>
    %cst_23 = arith.constant 2.000000e-01 : f32
    %96 = vector.broadcast %cst_23 : f32 to vector<16x16xf32>
    %97 = arith.mulf %96, %93 : vector<16x16xf32>
    %98 = arith.select %95, %93, %97 : vector<16x16xi1>, vector<16x16xf32>
    %99 = vector.extract_strided_slice %9 {offsets = [0, 5], sizes = [1, 1], strides = [1, 1]} : vector<4x8xf32> to vector<1x1xf32>
    %100 = vector.broadcast %99 : vector<1x1xf32> to vector<16x16xf32>
    %101 = arith.mulf %100, %98 : vector<16x16xf32>
    %102 = arith.addf %88, %101 : vector<16x16xf32>
    %103 = vector.extract_strided_slice %18 {offsets = [0, 6], sizes = [16, 1], strides = [1, 1]} : vector<16x32xf32> to vector<16x1xf32>
    %104 = vector.extract_strided_slice %19 {offsets = [6, 0], sizes = [1, 16], strides = [1, 1]} : vector<32x16xf32> to vector<1x16xf32>
    %105 = vector.broadcast %103 : vector<16x1xf32> to vector<16x16xf32>
    %106 = vector.broadcast %104 : vector<1x16xf32> to vector<16x16xf32>
    %107 = arith.addf %105, %106 : vector<16x16xf32>
    %cst_24 = arith.constant 0.000000e+00 : f32
    %108 = vector.broadcast %cst_24 : f32 to vector<16x16xf32>
    %109 = arith.cmpf oge, %107, %108 : vector<16x16xf32>
    %cst_25 = arith.constant 2.000000e-01 : f32
    %110 = vector.broadcast %cst_25 : f32 to vector<16x16xf32>
    %111 = arith.mulf %110, %107 : vector<16x16xf32>
    %112 = arith.select %109, %107, %111 : vector<16x16xi1>, vector<16x16xf32>
    %113 = vector.extract_strided_slice %9 {offsets = [0, 6], sizes = [1, 1], strides = [1, 1]} : vector<4x8xf32> to vector<1x1xf32>
    %114 = vector.broadcast %113 : vector<1x1xf32> to vector<16x16xf32>
    %115 = arith.mulf %114, %112 : vector<16x16xf32>
    %116 = arith.addf %102, %115 : vector<16x16xf32>
    %117 = vector.extract_strided_slice %18 {offsets = [0, 7], sizes = [16, 1], strides = [1, 1]} : vector<16x32xf32> to vector<16x1xf32>
    %118 = vector.extract_strided_slice %19 {offsets = [7, 0], sizes = [1, 16], strides = [1, 1]} : vector<32x16xf32> to vector<1x16xf32>
    %119 = vector.broadcast %117 : vector<16x1xf32> to vector<16x16xf32>
    %120 = vector.broadcast %118 : vector<1x16xf32> to vector<16x16xf32>
    %121 = arith.addf %119, %120 : vector<16x16xf32>
    %cst_26 = arith.constant 0.000000e+00 : f32
    %122 = vector.broadcast %cst_26 : f32 to vector<16x16xf32>
    %123 = arith.cmpf oge, %121, %122 : vector<16x16xf32>
    %cst_27 = arith.constant 2.000000e-01 : f32
    %124 = vector.broadcast %cst_27 : f32 to vector<16x16xf32>
    %125 = arith.mulf %124, %121 : vector<16x16xf32>
    %126 = arith.select %123, %121, %125 : vector<16x16xi1>, vector<16x16xf32>
    %127 = vector.extract_strided_slice %9 {offsets = [0, 7], sizes = [1, 1], strides = [1, 1]} : vector<4x8xf32> to vector<1x1xf32>
    %128 = vector.broadcast %127 : vector<1x1xf32> to vector<16x16xf32>
    %129 = arith.mulf %128, %126 : vector<16x16xf32>
    %130 = arith.addf %116, %129 : vector<16x16xf32>
    %131 = arith.addf %130, %6 : vector<16x16xf32>
    %cst_28 = arith.constant dense<0xFF800000> : vector<16xf32>
    %132 = vector.multi_reduction <maximumf>, %131, %cst_28 [1] : vector<16x16xf32> to vector<16xf32>
    %133 = vector.shape_cast %132 : vector<16xf32> to vector<16x1xf32>
    %134 = vector.broadcast %133 : vector<16x1xf32> to vector<16x16xf32>
    %135 = arith.subf %131, %134 : vector<16x16xf32>
    %136 = math.exp %135 : vector<16x16xf32>
    %cst_29 = arith.constant dense<0.000000e+00> : vector<16xf32>
    %137 = vector.multi_reduction <add>, %136, %cst_29 [1] : vector<16x16xf32> to vector<16xf32>
    %138 = vector.shape_cast %137 : vector<16xf32> to vector<16x1xf32>
    %139 = tpu.reciprocal %138 {approx = true} : vector<16x1xf32> -> vector<16x1xf32>
    %140 = vector.broadcast %139 : vector<16x1xf32> to vector<16x16xf32>
    %141 = arith.mulf %136, %140 : vector<16x16xf32>
    %142 = arith.truncf %141 : vector<16x16xf32> to vector<16x16xbf16>
    %143 = vector.extract_strided_slice %17 {offsets = [0, 0], sizes = [16, 8], strides = [1, 1]} : vector<16x32xf32> to vector<16x8xf32>
    %144 = arith.truncf %143 : vector<16x8xf32> to vector<16x8xbf16>
    %cst_30 = arith.constant dense<0.000000e+00> : vector<16x8xf32>
    %145 = tpu.matmul %142, %144, %cst_30 {dimension_numbers = #tpu.dot_dimension_numbers<[1], [0], [0], [1], [0, 0, 1, 1], [], []>} : vector<16x16xbf16>, vector<16x8xbf16>, vector<16x8xf32> -> vector<16x8xf32>
    %146 = vector.extract_strided_slice %18 {offsets = [0, 8], sizes = [16, 1], strides = [1, 1]} : vector<16x32xf32> to vector<16x1xf32>
    %147 = vector.extract_strided_slice %19 {offsets = [8, 0], sizes = [1, 16], strides = [1, 1]} : vector<32x16xf32> to vector<1x16xf32>
    %148 = vector.broadcast %146 : vector<16x1xf32> to vector<16x16xf32>
    %149 = vector.broadcast %147 : vector<1x16xf32> to vector<16x16xf32>
    %150 = arith.addf %148, %149 : vector<16x16xf32>
    %cst_31 = arith.constant 0.000000e+00 : f32
    %151 = vector.broadcast %cst_31 : f32 to vector<16x16xf32>
    %152 = arith.cmpf oge, %150, %151 : vector<16x16xf32>
    %cst_32 = arith.constant 2.000000e-01 : f32
    %153 = vector.broadcast %cst_32 : f32 to vector<16x16xf32>
    %154 = arith.mulf %153, %150 : vector<16x16xf32>
    %155 = arith.select %152, %150, %154 : vector<16x16xi1>, vector<16x16xf32>
    %156 = vector.extract_strided_slice %9 {offsets = [1, 0], sizes = [1, 1], strides = [1, 1]} : vector<4x8xf32> to vector<1x1xf32>
    %157 = vector.broadcast %156 : vector<1x1xf32> to vector<16x16xf32>
    %158 = arith.mulf %157, %155 : vector<16x16xf32>
    %159 = vector.extract_strided_slice %18 {offsets = [0, 9], sizes = [16, 1], strides = [1, 1]} : vector<16x32xf32> to vector<16x1xf32>
    %160 = vector.extract_strided_slice %19 {offsets = [9, 0], sizes = [1, 16], strides = [1, 1]} : vector<32x16xf32> to vector<1x16xf32>
    %161 = vector.broadcast %159 : vector<16x1xf32> to vector<16x16xf32>
    %162 = vector.broadcast %160 : vector<1x16xf32> to vector<16x16xf32>
    %163 = arith.addf %161, %162 : vector<16x16xf32>
    %cst_33 = arith.constant 0.000000e+00 : f32
    %164 = vector.broadcast %cst_33 : f32 to vector<16x16xf32>
    %165 = arith.cmpf oge, %163, %164 : vector<16x16xf32>
    %cst_34 = arith.constant 2.000000e-01 : f32
    %166 = vector.broadcast %cst_34 : f32 to vector<16x16xf32>
    %167 = arith.mulf %166, %163 : vector<16x16xf32>
    %168 = arith.select %165, %163, %167 : vector<16x16xi1>, vector<16x16xf32>
    %169 = vector.extract_strided_slice %9 {offsets = [1, 1], sizes = [1, 1], strides = [1, 1]} : vector<4x8xf32> to vector<1x1xf32>
    %170 = vector.broadcast %169 : vector<1x1xf32> to vector<16x16xf32>
    %171 = arith.mulf %170, %168 : vector<16x16xf32>
    %172 = arith.addf %158, %171 : vector<16x16xf32>
    %173 = vector.extract_strided_slice %18 {offsets = [0, 10], sizes = [16, 1], strides = [1, 1]} : vector<16x32xf32> to vector<16x1xf32>
    %174 = vector.extract_strided_slice %19 {offsets = [10, 0], sizes = [1, 16], strides = [1, 1]} : vector<32x16xf32> to vector<1x16xf32>
    %175 = vector.broadcast %173 : vector<16x1xf32> to vector<16x16xf32>
    %176 = vector.broadcast %174 : vector<1x16xf32> to vector<16x16xf32>
    %177 = arith.addf %175, %176 : vector<16x16xf32>
    %cst_35 = arith.constant 0.000000e+00 : f32
    %178 = vector.broadcast %cst_35 : f32 to vector<16x16xf32>
    %179 = arith.cmpf oge, %177, %178 : vector<16x16xf32>
    %cst_36 = arith.constant 2.000000e-01 : f32
    %180 = vector.broadcast %cst_36 : f32 to vector<16x16xf32>
    %181 = arith.mulf %180, %177 : vector<16x16xf32>
    %182 = arith.select %179, %177, %181 : vector<16x16xi1>, vector<16x16xf32>
    %183 = vector.extract_strided_slice %9 {offsets = [1, 2], sizes = [1, 1], strides = [1, 1]} : vector<4x8xf32> to vector<1x1xf32>
    %184 = vector.broadcast %183 : vector<1x1xf32> to vector<16x16xf32>
    %185 = arith.mulf %184, %182 : vector<16x16xf32>
    %186 = arith.addf %172, %185 : vector<16x16xf32>
    %187 = vector.extract_strided_slice %18 {offsets = [0, 11], sizes = [16, 1], strides = [1, 1]} : vector<16x32xf32> to vector<16x1xf32>
    %188 = vector.extract_strided_slice %19 {offsets = [11, 0], sizes = [1, 16], strides = [1, 1]} : vector<32x16xf32> to vector<1x16xf32>
    %189 = vector.broadcast %187 : vector<16x1xf32> to vector<16x16xf32>
    %190 = vector.broadcast %188 : vector<1x16xf32> to vector<16x16xf32>
    %191 = arith.addf %189, %190 : vector<16x16xf32>
    %cst_37 = arith.constant 0.000000e+00 : f32
    %192 = vector.broadcast %cst_37 : f32 to vector<16x16xf32>
    %193 = arith.cmpf oge, %191, %192 : vector<16x16xf32>
    %cst_38 = arith.constant 2.000000e-01 : f32
    %194 = vector.broadcast %cst_38 : f32 to vector<16x16xf32>
    %195 = arith.mulf %194, %191 : vector<16x16xf32>
    %196 = arith.select %193, %191, %195 : vector<16x16xi1>, vector<16x16xf32>
    %197 = vector.extract_strided_slice %9 {offsets = [1, 3], sizes = [1, 1], strides = [1, 1]} : vector<4x8xf32> to vector<1x1xf32>
    %198 = vector.broadcast %197 : vector<1x1xf32> to vector<16x16xf32>
    %199 = arith.mulf %198, %196 : vector<16x16xf32>
    %200 = arith.addf %186, %199 : vector<16x16xf32>
    %201 = vector.extract_strided_slice %18 {offsets = [0, 12], sizes = [16, 1], strides = [1, 1]} : vector<16x32xf32> to vector<16x1xf32>
    %202 = vector.extract_strided_slice %19 {offsets = [12, 0], sizes = [1, 16], strides = [1, 1]} : vector<32x16xf32> to vector<1x16xf32>
    %203 = vector.broadcast %201 : vector<16x1xf32> to vector<16x16xf32>
    %204 = vector.broadcast %202 : vector<1x16xf32> to vector<16x16xf32>
    %205 = arith.addf %203, %204 : vector<16x16xf32>
    %cst_39 = arith.constant 0.000000e+00 : f32
    %206 = vector.broadcast %cst_39 : f32 to vector<16x16xf32>
    %207 = arith.cmpf oge, %205, %206 : vector<16x16xf32>
    %cst_40 = arith.constant 2.000000e-01 : f32
    %208 = vector.broadcast %cst_40 : f32 to vector<16x16xf32>
    %209 = arith.mulf %208, %205 : vector<16x16xf32>
    %210 = arith.select %207, %205, %209 : vector<16x16xi1>, vector<16x16xf32>
    %211 = vector.extract_strided_slice %9 {offsets = [1, 4], sizes = [1, 1], strides = [1, 1]} : vector<4x8xf32> to vector<1x1xf32>
    %212 = vector.broadcast %211 : vector<1x1xf32> to vector<16x16xf32>
    %213 = arith.mulf %212, %210 : vector<16x16xf32>
    %214 = arith.addf %200, %213 : vector<16x16xf32>
    %215 = vector.extract_strided_slice %18 {offsets = [0, 13], sizes = [16, 1], strides = [1, 1]} : vector<16x32xf32> to vector<16x1xf32>
    %216 = vector.extract_strided_slice %19 {offsets = [13, 0], sizes = [1, 16], strides = [1, 1]} : vector<32x16xf32> to vector<1x16xf32>
    %217 = vector.broadcast %215 : vector<16x1xf32> to vector<16x16xf32>
    %218 = vector.broadcast %216 : vector<1x16xf32> to vector<16x16xf32>
    %219 = arith.addf %217, %218 : vector<16x16xf32>
    %cst_41 = arith.constant 0.000000e+00 : f32
    %220 = vector.broadcast %cst_41 : f32 to vector<16x16xf32>
    %221 = arith.cmpf oge, %219, %220 : vector<16x16xf32>
    %cst_42 = arith.constant 2.000000e-01 : f32
    %222 = vector.broadcast %cst_42 : f32 to vector<16x16xf32>
    %223 = arith.mulf %222, %219 : vector<16x16xf32>
    %224 = arith.select %221, %219, %223 : vector<16x16xi1>, vector<16x16xf32>
    %225 = vector.extract_strided_slice %9 {offsets = [1, 5], sizes = [1, 1], strides = [1, 1]} : vector<4x8xf32> to vector<1x1xf32>
    %226 = vector.broadcast %225 : vector<1x1xf32> to vector<16x16xf32>
    %227 = arith.mulf %226, %224 : vector<16x16xf32>
    %228 = arith.addf %214, %227 : vector<16x16xf32>
    %229 = vector.extract_strided_slice %18 {offsets = [0, 14], sizes = [16, 1], strides = [1, 1]} : vector<16x32xf32> to vector<16x1xf32>
    %230 = vector.extract_strided_slice %19 {offsets = [14, 0], sizes = [1, 16], strides = [1, 1]} : vector<32x16xf32> to vector<1x16xf32>
    %231 = vector.broadcast %229 : vector<16x1xf32> to vector<16x16xf32>
    %232 = vector.broadcast %230 : vector<1x16xf32> to vector<16x16xf32>
    %233 = arith.addf %231, %232 : vector<16x16xf32>
    %cst_43 = arith.constant 0.000000e+00 : f32
    %234 = vector.broadcast %cst_43 : f32 to vector<16x16xf32>
    %235 = arith.cmpf oge, %233, %234 : vector<16x16xf32>
    %cst_44 = arith.constant 2.000000e-01 : f32
    %236 = vector.broadcast %cst_44 : f32 to vector<16x16xf32>
    %237 = arith.mulf %236, %233 : vector<16x16xf32>
    %238 = arith.select %235, %233, %237 : vector<16x16xi1>, vector<16x16xf32>
    %239 = vector.extract_strided_slice %9 {offsets = [1, 6], sizes = [1, 1], strides = [1, 1]} : vector<4x8xf32> to vector<1x1xf32>
    %240 = vector.broadcast %239 : vector<1x1xf32> to vector<16x16xf32>
    %241 = arith.mulf %240, %238 : vector<16x16xf32>
    %242 = arith.addf %228, %241 : vector<16x16xf32>
    %243 = vector.extract_strided_slice %18 {offsets = [0, 15], sizes = [16, 1], strides = [1, 1]} : vector<16x32xf32> to vector<16x1xf32>
    %244 = vector.extract_strided_slice %19 {offsets = [15, 0], sizes = [1, 16], strides = [1, 1]} : vector<32x16xf32> to vector<1x16xf32>
    %245 = vector.broadcast %243 : vector<16x1xf32> to vector<16x16xf32>
    %246 = vector.broadcast %244 : vector<1x16xf32> to vector<16x16xf32>
    %247 = arith.addf %245, %246 : vector<16x16xf32>
    %cst_45 = arith.constant 0.000000e+00 : f32
    %248 = vector.broadcast %cst_45 : f32 to vector<16x16xf32>
    %249 = arith.cmpf oge, %247, %248 : vector<16x16xf32>
    %cst_46 = arith.constant 2.000000e-01 : f32
    %250 = vector.broadcast %cst_46 : f32 to vector<16x16xf32>
    %251 = arith.mulf %250, %247 : vector<16x16xf32>
    %252 = arith.select %249, %247, %251 : vector<16x16xi1>, vector<16x16xf32>
    %253 = vector.extract_strided_slice %9 {offsets = [1, 7], sizes = [1, 1], strides = [1, 1]} : vector<4x8xf32> to vector<1x1xf32>
    %254 = vector.broadcast %253 : vector<1x1xf32> to vector<16x16xf32>
    %255 = arith.mulf %254, %252 : vector<16x16xf32>
    %256 = arith.addf %242, %255 : vector<16x16xf32>
    %257 = arith.addf %256, %6 : vector<16x16xf32>
    %cst_47 = arith.constant dense<0xFF800000> : vector<16xf32>
    %258 = vector.multi_reduction <maximumf>, %257, %cst_47 [1] : vector<16x16xf32> to vector<16xf32>
    %259 = vector.shape_cast %258 : vector<16xf32> to vector<16x1xf32>
    %260 = vector.broadcast %259 : vector<16x1xf32> to vector<16x16xf32>
    %261 = arith.subf %257, %260 : vector<16x16xf32>
    %262 = math.exp %261 : vector<16x16xf32>
    %cst_48 = arith.constant dense<0.000000e+00> : vector<16xf32>
    %263 = vector.multi_reduction <add>, %262, %cst_48 [1] : vector<16x16xf32> to vector<16xf32>
    %264 = vector.shape_cast %263 : vector<16xf32> to vector<16x1xf32>
    %265 = tpu.reciprocal %264 {approx = true} : vector<16x1xf32> -> vector<16x1xf32>
    %266 = vector.broadcast %265 : vector<16x1xf32> to vector<16x16xf32>
    %267 = arith.mulf %262, %266 : vector<16x16xf32>
    %268 = arith.truncf %267 : vector<16x16xf32> to vector<16x16xbf16>
    %269 = vector.extract_strided_slice %17 {offsets = [0, 8], sizes = [16, 8], strides = [1, 1]} : vector<16x32xf32> to vector<16x8xf32>
    %270 = arith.truncf %269 : vector<16x8xf32> to vector<16x8xbf16>
    %cst_49 = arith.constant dense<0.000000e+00> : vector<16x8xf32>
    %271 = tpu.matmul %268, %270, %cst_49 {dimension_numbers = #tpu.dot_dimension_numbers<[1], [0], [0], [1], [0, 0, 1, 1], [], []>} : vector<16x16xbf16>, vector<16x8xbf16>, vector<16x8xf32> -> vector<16x8xf32>
    %272 = vector.extract_strided_slice %18 {offsets = [0, 16], sizes = [16, 1], strides = [1, 1]} : vector<16x32xf32> to vector<16x1xf32>
    %273 = vector.extract_strided_slice %19 {offsets = [16, 0], sizes = [1, 16], strides = [1, 1]} : vector<32x16xf32> to vector<1x16xf32>
    %274 = vector.broadcast %272 : vector<16x1xf32> to vector<16x16xf32>
    %275 = vector.broadcast %273 : vector<1x16xf32> to vector<16x16xf32>
    %276 = arith.addf %274, %275 : vector<16x16xf32>
    %cst_50 = arith.constant 0.000000e+00 : f32
    %277 = vector.broadcast %cst_50 : f32 to vector<16x16xf32>
    %278 = arith.cmpf oge, %276, %277 : vector<16x16xf32>
    %cst_51 = arith.constant 2.000000e-01 : f32
    %279 = vector.broadcast %cst_51 : f32 to vector<16x16xf32>
    %280 = arith.mulf %279, %276 : vector<16x16xf32>
    %281 = arith.select %278, %276, %280 : vector<16x16xi1>, vector<16x16xf32>
    %282 = vector.extract_strided_slice %9 {offsets = [2, 0], sizes = [1, 1], strides = [1, 1]} : vector<4x8xf32> to vector<1x1xf32>
    %283 = vector.broadcast %282 : vector<1x1xf32> to vector<16x16xf32>
    %284 = arith.mulf %283, %281 : vector<16x16xf32>
    %285 = vector.extract_strided_slice %18 {offsets = [0, 17], sizes = [16, 1], strides = [1, 1]} : vector<16x32xf32> to vector<16x1xf32>
    %286 = vector.extract_strided_slice %19 {offsets = [17, 0], sizes = [1, 16], strides = [1, 1]} : vector<32x16xf32> to vector<1x16xf32>
    %287 = vector.broadcast %285 : vector<16x1xf32> to vector<16x16xf32>
    %288 = vector.broadcast %286 : vector<1x16xf32> to vector<16x16xf32>
    %289 = arith.addf %287, %288 : vector<16x16xf32>
    %cst_52 = arith.constant 0.000000e+00 : f32
    %290 = vector.broadcast %cst_52 : f32 to vector<16x16xf32>
    %291 = arith.cmpf oge, %289, %290 : vector<16x16xf32>
    %cst_53 = arith.constant 2.000000e-01 : f32
    %292 = vector.broadcast %cst_53 : f32 to vector<16x16xf32>
    %293 = arith.mulf %292, %289 : vector<16x16xf32>
    %294 = arith.select %291, %289, %293 : vector<16x16xi1>, vector<16x16xf32>
    %295 = vector.extract_strided_slice %9 {offsets = [2, 1], sizes = [1, 1], strides = [1, 1]} : vector<4x8xf32> to vector<1x1xf32>
    %296 = vector.broadcast %295 : vector<1x1xf32> to vector<16x16xf32>
    %297 = arith.mulf %296, %294 : vector<16x16xf32>
    %298 = arith.addf %284, %297 : vector<16x16xf32>
    %299 = vector.extract_strided_slice %18 {offsets = [0, 18], sizes = [16, 1], strides = [1, 1]} : vector<16x32xf32> to vector<16x1xf32>
    %300 = vector.extract_strided_slice %19 {offsets = [18, 0], sizes = [1, 16], strides = [1, 1]} : vector<32x16xf32> to vector<1x16xf32>
    %301 = vector.broadcast %299 : vector<16x1xf32> to vector<16x16xf32>
    %302 = vector.broadcast %300 : vector<1x16xf32> to vector<16x16xf32>
    %303 = arith.addf %301, %302 : vector<16x16xf32>
    %cst_54 = arith.constant 0.000000e+00 : f32
    %304 = vector.broadcast %cst_54 : f32 to vector<16x16xf32>
    %305 = arith.cmpf oge, %303, %304 : vector<16x16xf32>
    %cst_55 = arith.constant 2.000000e-01 : f32
    %306 = vector.broadcast %cst_55 : f32 to vector<16x16xf32>
    %307 = arith.mulf %306, %303 : vector<16x16xf32>
    %308 = arith.select %305, %303, %307 : vector<16x16xi1>, vector<16x16xf32>
    %309 = vector.extract_strided_slice %9 {offsets = [2, 2], sizes = [1, 1], strides = [1, 1]} : vector<4x8xf32> to vector<1x1xf32>
    %310 = vector.broadcast %309 : vector<1x1xf32> to vector<16x16xf32>
    %311 = arith.mulf %310, %308 : vector<16x16xf32>
    %312 = arith.addf %298, %311 : vector<16x16xf32>
    %313 = vector.extract_strided_slice %18 {offsets = [0, 19], sizes = [16, 1], strides = [1, 1]} : vector<16x32xf32> to vector<16x1xf32>
    %314 = vector.extract_strided_slice %19 {offsets = [19, 0], sizes = [1, 16], strides = [1, 1]} : vector<32x16xf32> to vector<1x16xf32>
    %315 = vector.broadcast %313 : vector<16x1xf32> to vector<16x16xf32>
    %316 = vector.broadcast %314 : vector<1x16xf32> to vector<16x16xf32>
    %317 = arith.addf %315, %316 : vector<16x16xf32>
    %cst_56 = arith.constant 0.000000e+00 : f32
    %318 = vector.broadcast %cst_56 : f32 to vector<16x16xf32>
    %319 = arith.cmpf oge, %317, %318 : vector<16x16xf32>
    %cst_57 = arith.constant 2.000000e-01 : f32
    %320 = vector.broadcast %cst_57 : f32 to vector<16x16xf32>
    %321 = arith.mulf %320, %317 : vector<16x16xf32>
    %322 = arith.select %319, %317, %321 : vector<16x16xi1>, vector<16x16xf32>
    %323 = vector.extract_strided_slice %9 {offsets = [2, 3], sizes = [1, 1], strides = [1, 1]} : vector<4x8xf32> to vector<1x1xf32>
    %324 = vector.broadcast %323 : vector<1x1xf32> to vector<16x16xf32>
    %325 = arith.mulf %324, %322 : vector<16x16xf32>
    %326 = arith.addf %312, %325 : vector<16x16xf32>
    %327 = vector.extract_strided_slice %18 {offsets = [0, 20], sizes = [16, 1], strides = [1, 1]} : vector<16x32xf32> to vector<16x1xf32>
    %328 = vector.extract_strided_slice %19 {offsets = [20, 0], sizes = [1, 16], strides = [1, 1]} : vector<32x16xf32> to vector<1x16xf32>
    %329 = vector.broadcast %327 : vector<16x1xf32> to vector<16x16xf32>
    %330 = vector.broadcast %328 : vector<1x16xf32> to vector<16x16xf32>
    %331 = arith.addf %329, %330 : vector<16x16xf32>
    %cst_58 = arith.constant 0.000000e+00 : f32
    %332 = vector.broadcast %cst_58 : f32 to vector<16x16xf32>
    %333 = arith.cmpf oge, %331, %332 : vector<16x16xf32>
    %cst_59 = arith.constant 2.000000e-01 : f32
    %334 = vector.broadcast %cst_59 : f32 to vector<16x16xf32>
    %335 = arith.mulf %334, %331 : vector<16x16xf32>
    %336 = arith.select %333, %331, %335 : vector<16x16xi1>, vector<16x16xf32>
    %337 = vector.extract_strided_slice %9 {offsets = [2, 4], sizes = [1, 1], strides = [1, 1]} : vector<4x8xf32> to vector<1x1xf32>
    %338 = vector.broadcast %337 : vector<1x1xf32> to vector<16x16xf32>
    %339 = arith.mulf %338, %336 : vector<16x16xf32>
    %340 = arith.addf %326, %339 : vector<16x16xf32>
    %341 = vector.extract_strided_slice %18 {offsets = [0, 21], sizes = [16, 1], strides = [1, 1]} : vector<16x32xf32> to vector<16x1xf32>
    %342 = vector.extract_strided_slice %19 {offsets = [21, 0], sizes = [1, 16], strides = [1, 1]} : vector<32x16xf32> to vector<1x16xf32>
    %343 = vector.broadcast %341 : vector<16x1xf32> to vector<16x16xf32>
    %344 = vector.broadcast %342 : vector<1x16xf32> to vector<16x16xf32>
    %345 = arith.addf %343, %344 : vector<16x16xf32>
    %cst_60 = arith.constant 0.000000e+00 : f32
    %346 = vector.broadcast %cst_60 : f32 to vector<16x16xf32>
    %347 = arith.cmpf oge, %345, %346 : vector<16x16xf32>
    %cst_61 = arith.constant 2.000000e-01 : f32
    %348 = vector.broadcast %cst_61 : f32 to vector<16x16xf32>
    %349 = arith.mulf %348, %345 : vector<16x16xf32>
    %350 = arith.select %347, %345, %349 : vector<16x16xi1>, vector<16x16xf32>
    %351 = vector.extract_strided_slice %9 {offsets = [2, 5], sizes = [1, 1], strides = [1, 1]} : vector<4x8xf32> to vector<1x1xf32>
    %352 = vector.broadcast %351 : vector<1x1xf32> to vector<16x16xf32>
    %353 = arith.mulf %352, %350 : vector<16x16xf32>
    %354 = arith.addf %340, %353 : vector<16x16xf32>
    %355 = vector.extract_strided_slice %18 {offsets = [0, 22], sizes = [16, 1], strides = [1, 1]} : vector<16x32xf32> to vector<16x1xf32>
    %356 = vector.extract_strided_slice %19 {offsets = [22, 0], sizes = [1, 16], strides = [1, 1]} : vector<32x16xf32> to vector<1x16xf32>
    %357 = vector.broadcast %355 : vector<16x1xf32> to vector<16x16xf32>
    %358 = vector.broadcast %356 : vector<1x16xf32> to vector<16x16xf32>
    %359 = arith.addf %357, %358 : vector<16x16xf32>
    %cst_62 = arith.constant 0.000000e+00 : f32
    %360 = vector.broadcast %cst_62 : f32 to vector<16x16xf32>
    %361 = arith.cmpf oge, %359, %360 : vector<16x16xf32>
    %cst_63 = arith.constant 2.000000e-01 : f32
    %362 = vector.broadcast %cst_63 : f32 to vector<16x16xf32>
    %363 = arith.mulf %362, %359 : vector<16x16xf32>
    %364 = arith.select %361, %359, %363 : vector<16x16xi1>, vector<16x16xf32>
    %365 = vector.extract_strided_slice %9 {offsets = [2, 6], sizes = [1, 1], strides = [1, 1]} : vector<4x8xf32> to vector<1x1xf32>
    %366 = vector.broadcast %365 : vector<1x1xf32> to vector<16x16xf32>
    %367 = arith.mulf %366, %364 : vector<16x16xf32>
    %368 = arith.addf %354, %367 : vector<16x16xf32>
    %369 = vector.extract_strided_slice %18 {offsets = [0, 23], sizes = [16, 1], strides = [1, 1]} : vector<16x32xf32> to vector<16x1xf32>
    %370 = vector.extract_strided_slice %19 {offsets = [23, 0], sizes = [1, 16], strides = [1, 1]} : vector<32x16xf32> to vector<1x16xf32>
    %371 = vector.broadcast %369 : vector<16x1xf32> to vector<16x16xf32>
    %372 = vector.broadcast %370 : vector<1x16xf32> to vector<16x16xf32>
    %373 = arith.addf %371, %372 : vector<16x16xf32>
    %cst_64 = arith.constant 0.000000e+00 : f32
    %374 = vector.broadcast %cst_64 : f32 to vector<16x16xf32>
    %375 = arith.cmpf oge, %373, %374 : vector<16x16xf32>
    %cst_65 = arith.constant 2.000000e-01 : f32
    %376 = vector.broadcast %cst_65 : f32 to vector<16x16xf32>
    %377 = arith.mulf %376, %373 : vector<16x16xf32>
    %378 = arith.select %375, %373, %377 : vector<16x16xi1>, vector<16x16xf32>
    %379 = vector.extract_strided_slice %9 {offsets = [2, 7], sizes = [1, 1], strides = [1, 1]} : vector<4x8xf32> to vector<1x1xf32>
    %380 = vector.broadcast %379 : vector<1x1xf32> to vector<16x16xf32>
    %381 = arith.mulf %380, %378 : vector<16x16xf32>
    %382 = arith.addf %368, %381 : vector<16x16xf32>
    %383 = arith.addf %382, %6 : vector<16x16xf32>
    %cst_66 = arith.constant dense<0xFF800000> : vector<16xf32>
    %384 = vector.multi_reduction <maximumf>, %383, %cst_66 [1] : vector<16x16xf32> to vector<16xf32>
    %385 = vector.shape_cast %384 : vector<16xf32> to vector<16x1xf32>
    %386 = vector.broadcast %385 : vector<16x1xf32> to vector<16x16xf32>
    %387 = arith.subf %383, %386 : vector<16x16xf32>
    %388 = math.exp %387 : vector<16x16xf32>
    %cst_67 = arith.constant dense<0.000000e+00> : vector<16xf32>
    %389 = vector.multi_reduction <add>, %388, %cst_67 [1] : vector<16x16xf32> to vector<16xf32>
    %390 = vector.shape_cast %389 : vector<16xf32> to vector<16x1xf32>
    %391 = tpu.reciprocal %390 {approx = true} : vector<16x1xf32> -> vector<16x1xf32>
    %392 = vector.broadcast %391 : vector<16x1xf32> to vector<16x16xf32>
    %393 = arith.mulf %388, %392 : vector<16x16xf32>
    %394 = arith.truncf %393 : vector<16x16xf32> to vector<16x16xbf16>
    %395 = vector.extract_strided_slice %17 {offsets = [0, 16], sizes = [16, 8], strides = [1, 1]} : vector<16x32xf32> to vector<16x8xf32>
    %396 = arith.truncf %395 : vector<16x8xf32> to vector<16x8xbf16>
    %cst_68 = arith.constant dense<0.000000e+00> : vector<16x8xf32>
    %397 = tpu.matmul %394, %396, %cst_68 {dimension_numbers = #tpu.dot_dimension_numbers<[1], [0], [0], [1], [0, 0, 1, 1], [], []>} : vector<16x16xbf16>, vector<16x8xbf16>, vector<16x8xf32> -> vector<16x8xf32>
    %398 = vector.extract_strided_slice %18 {offsets = [0, 24], sizes = [16, 1], strides = [1, 1]} : vector<16x32xf32> to vector<16x1xf32>
    %399 = vector.extract_strided_slice %19 {offsets = [24, 0], sizes = [1, 16], strides = [1, 1]} : vector<32x16xf32> to vector<1x16xf32>
    %400 = vector.broadcast %398 : vector<16x1xf32> to vector<16x16xf32>
    %401 = vector.broadcast %399 : vector<1x16xf32> to vector<16x16xf32>
    %402 = arith.addf %400, %401 : vector<16x16xf32>
    %cst_69 = arith.constant 0.000000e+00 : f32
    %403 = vector.broadcast %cst_69 : f32 to vector<16x16xf32>
    %404 = arith.cmpf oge, %402, %403 : vector<16x16xf32>
    %cst_70 = arith.constant 2.000000e-01 : f32
    %405 = vector.broadcast %cst_70 : f32 to vector<16x16xf32>
    %406 = arith.mulf %405, %402 : vector<16x16xf32>
    %407 = arith.select %404, %402, %406 : vector<16x16xi1>, vector<16x16xf32>
    %408 = vector.extract_strided_slice %9 {offsets = [3, 0], sizes = [1, 1], strides = [1, 1]} : vector<4x8xf32> to vector<1x1xf32>
    %409 = vector.broadcast %408 : vector<1x1xf32> to vector<16x16xf32>
    %410 = arith.mulf %409, %407 : vector<16x16xf32>
    %411 = vector.extract_strided_slice %18 {offsets = [0, 25], sizes = [16, 1], strides = [1, 1]} : vector<16x32xf32> to vector<16x1xf32>
    %412 = vector.extract_strided_slice %19 {offsets = [25, 0], sizes = [1, 16], strides = [1, 1]} : vector<32x16xf32> to vector<1x16xf32>
    %413 = vector.broadcast %411 : vector<16x1xf32> to vector<16x16xf32>
    %414 = vector.broadcast %412 : vector<1x16xf32> to vector<16x16xf32>
    %415 = arith.addf %413, %414 : vector<16x16xf32>
    %cst_71 = arith.constant 0.000000e+00 : f32
    %416 = vector.broadcast %cst_71 : f32 to vector<16x16xf32>
    %417 = arith.cmpf oge, %415, %416 : vector<16x16xf32>
    %cst_72 = arith.constant 2.000000e-01 : f32
    %418 = vector.broadcast %cst_72 : f32 to vector<16x16xf32>
    %419 = arith.mulf %418, %415 : vector<16x16xf32>
    %420 = arith.select %417, %415, %419 : vector<16x16xi1>, vector<16x16xf32>
    %421 = vector.extract_strided_slice %9 {offsets = [3, 1], sizes = [1, 1], strides = [1, 1]} : vector<4x8xf32> to vector<1x1xf32>
    %422 = vector.broadcast %421 : vector<1x1xf32> to vector<16x16xf32>
    %423 = arith.mulf %422, %420 : vector<16x16xf32>
    %424 = arith.addf %410, %423 : vector<16x16xf32>
    %425 = vector.extract_strided_slice %18 {offsets = [0, 26], sizes = [16, 1], strides = [1, 1]} : vector<16x32xf32> to vector<16x1xf32>
    %426 = vector.extract_strided_slice %19 {offsets = [26, 0], sizes = [1, 16], strides = [1, 1]} : vector<32x16xf32> to vector<1x16xf32>
    %427 = vector.broadcast %425 : vector<16x1xf32> to vector<16x16xf32>
    %428 = vector.broadcast %426 : vector<1x16xf32> to vector<16x16xf32>
    %429 = arith.addf %427, %428 : vector<16x16xf32>
    %cst_73 = arith.constant 0.000000e+00 : f32
    %430 = vector.broadcast %cst_73 : f32 to vector<16x16xf32>
    %431 = arith.cmpf oge, %429, %430 : vector<16x16xf32>
    %cst_74 = arith.constant 2.000000e-01 : f32
    %432 = vector.broadcast %cst_74 : f32 to vector<16x16xf32>
    %433 = arith.mulf %432, %429 : vector<16x16xf32>
    %434 = arith.select %431, %429, %433 : vector<16x16xi1>, vector<16x16xf32>
    %435 = vector.extract_strided_slice %9 {offsets = [3, 2], sizes = [1, 1], strides = [1, 1]} : vector<4x8xf32> to vector<1x1xf32>
    %436 = vector.broadcast %435 : vector<1x1xf32> to vector<16x16xf32>
    %437 = arith.mulf %436, %434 : vector<16x16xf32>
    %438 = arith.addf %424, %437 : vector<16x16xf32>
    %439 = vector.extract_strided_slice %18 {offsets = [0, 27], sizes = [16, 1], strides = [1, 1]} : vector<16x32xf32> to vector<16x1xf32>
    %440 = vector.extract_strided_slice %19 {offsets = [27, 0], sizes = [1, 16], strides = [1, 1]} : vector<32x16xf32> to vector<1x16xf32>
    %441 = vector.broadcast %439 : vector<16x1xf32> to vector<16x16xf32>
    %442 = vector.broadcast %440 : vector<1x16xf32> to vector<16x16xf32>
    %443 = arith.addf %441, %442 : vector<16x16xf32>
    %cst_75 = arith.constant 0.000000e+00 : f32
    %444 = vector.broadcast %cst_75 : f32 to vector<16x16xf32>
    %445 = arith.cmpf oge, %443, %444 : vector<16x16xf32>
    %cst_76 = arith.constant 2.000000e-01 : f32
    %446 = vector.broadcast %cst_76 : f32 to vector<16x16xf32>
    %447 = arith.mulf %446, %443 : vector<16x16xf32>
    %448 = arith.select %445, %443, %447 : vector<16x16xi1>, vector<16x16xf32>
    %449 = vector.extract_strided_slice %9 {offsets = [3, 3], sizes = [1, 1], strides = [1, 1]} : vector<4x8xf32> to vector<1x1xf32>
    %450 = vector.broadcast %449 : vector<1x1xf32> to vector<16x16xf32>
    %451 = arith.mulf %450, %448 : vector<16x16xf32>
    %452 = arith.addf %438, %451 : vector<16x16xf32>
    %453 = vector.extract_strided_slice %18 {offsets = [0, 28], sizes = [16, 1], strides = [1, 1]} : vector<16x32xf32> to vector<16x1xf32>
    %454 = vector.extract_strided_slice %19 {offsets = [28, 0], sizes = [1, 16], strides = [1, 1]} : vector<32x16xf32> to vector<1x16xf32>
    %455 = vector.broadcast %453 : vector<16x1xf32> to vector<16x16xf32>
    %456 = vector.broadcast %454 : vector<1x16xf32> to vector<16x16xf32>
    %457 = arith.addf %455, %456 : vector<16x16xf32>
    %cst_77 = arith.constant 0.000000e+00 : f32
    %458 = vector.broadcast %cst_77 : f32 to vector<16x16xf32>
    %459 = arith.cmpf oge, %457, %458 : vector<16x16xf32>
    %cst_78 = arith.constant 2.000000e-01 : f32
    %460 = vector.broadcast %cst_78 : f32 to vector<16x16xf32>
    %461 = arith.mulf %460, %457 : vector<16x16xf32>
    %462 = arith.select %459, %457, %461 : vector<16x16xi1>, vector<16x16xf32>
    %463 = vector.extract_strided_slice %9 {offsets = [3, 4], sizes = [1, 1], strides = [1, 1]} : vector<4x8xf32> to vector<1x1xf32>
    %464 = vector.broadcast %463 : vector<1x1xf32> to vector<16x16xf32>
    %465 = arith.mulf %464, %462 : vector<16x16xf32>
    %466 = arith.addf %452, %465 : vector<16x16xf32>
    %467 = vector.extract_strided_slice %18 {offsets = [0, 29], sizes = [16, 1], strides = [1, 1]} : vector<16x32xf32> to vector<16x1xf32>
    %468 = vector.extract_strided_slice %19 {offsets = [29, 0], sizes = [1, 16], strides = [1, 1]} : vector<32x16xf32> to vector<1x16xf32>
    %469 = vector.broadcast %467 : vector<16x1xf32> to vector<16x16xf32>
    %470 = vector.broadcast %468 : vector<1x16xf32> to vector<16x16xf32>
    %471 = arith.addf %469, %470 : vector<16x16xf32>
    %cst_79 = arith.constant 0.000000e+00 : f32
    %472 = vector.broadcast %cst_79 : f32 to vector<16x16xf32>
    %473 = arith.cmpf oge, %471, %472 : vector<16x16xf32>
    %cst_80 = arith.constant 2.000000e-01 : f32
    %474 = vector.broadcast %cst_80 : f32 to vector<16x16xf32>
    %475 = arith.mulf %474, %471 : vector<16x16xf32>
    %476 = arith.select %473, %471, %475 : vector<16x16xi1>, vector<16x16xf32>
    %477 = vector.extract_strided_slice %9 {offsets = [3, 5], sizes = [1, 1], strides = [1, 1]} : vector<4x8xf32> to vector<1x1xf32>
    %478 = vector.broadcast %477 : vector<1x1xf32> to vector<16x16xf32>
    %479 = arith.mulf %478, %476 : vector<16x16xf32>
    %480 = arith.addf %466, %479 : vector<16x16xf32>
    %481 = vector.extract_strided_slice %18 {offsets = [0, 30], sizes = [16, 1], strides = [1, 1]} : vector<16x32xf32> to vector<16x1xf32>
    %482 = vector.extract_strided_slice %19 {offsets = [30, 0], sizes = [1, 16], strides = [1, 1]} : vector<32x16xf32> to vector<1x16xf32>
    %483 = vector.broadcast %481 : vector<16x1xf32> to vector<16x16xf32>
    %484 = vector.broadcast %482 : vector<1x16xf32> to vector<16x16xf32>
    %485 = arith.addf %483, %484 : vector<16x16xf32>
    %cst_81 = arith.constant 0.000000e+00 : f32
    %486 = vector.broadcast %cst_81 : f32 to vector<16x16xf32>
    %487 = arith.cmpf oge, %485, %486 : vector<16x16xf32>
    %cst_82 = arith.constant 2.000000e-01 : f32
    %488 = vector.broadcast %cst_82 : f32 to vector<16x16xf32>
    %489 = arith.mulf %488, %485 : vector<16x16xf32>
    %490 = arith.select %487, %485, %489 : vector<16x16xi1>, vector<16x16xf32>
    %491 = vector.extract_strided_slice %9 {offsets = [3, 6], sizes = [1, 1], strides = [1, 1]} : vector<4x8xf32> to vector<1x1xf32>
    %492 = vector.broadcast %491 : vector<1x1xf32> to vector<16x16xf32>
    %493 = arith.mulf %492, %490 : vector<16x16xf32>
    %494 = arith.addf %480, %493 : vector<16x16xf32>
    %495 = vector.extract_strided_slice %18 {offsets = [0, 31], sizes = [16, 1], strides = [1, 1]} : vector<16x32xf32> to vector<16x1xf32>
    %496 = vector.extract_strided_slice %19 {offsets = [31, 0], sizes = [1, 16], strides = [1, 1]} : vector<32x16xf32> to vector<1x16xf32>
    %497 = vector.broadcast %495 : vector<16x1xf32> to vector<16x16xf32>
    %498 = vector.broadcast %496 : vector<1x16xf32> to vector<16x16xf32>
    %499 = arith.addf %497, %498 : vector<16x16xf32>
    %cst_83 = arith.constant 0.000000e+00 : f32
    %500 = vector.broadcast %cst_83 : f32 to vector<16x16xf32>
    %501 = arith.cmpf oge, %499, %500 : vector<16x16xf32>
    %cst_84 = arith.constant 2.000000e-01 : f32
    %502 = vector.broadcast %cst_84 : f32 to vector<16x16xf32>
    %503 = arith.mulf %502, %499 : vector<16x16xf32>
    %504 = arith.select %501, %499, %503 : vector<16x16xi1>, vector<16x16xf32>
    %505 = vector.extract_strided_slice %9 {offsets = [3, 7], sizes = [1, 1], strides = [1, 1]} : vector<4x8xf32> to vector<1x1xf32>
    %506 = vector.broadcast %505 : vector<1x1xf32> to vector<16x16xf32>
    %507 = arith.mulf %506, %504 : vector<16x16xf32>
    %508 = arith.addf %494, %507 : vector<16x16xf32>
    %509 = arith.addf %508, %6 : vector<16x16xf32>
    %cst_85 = arith.constant dense<0xFF800000> : vector<16xf32>
    %510 = vector.multi_reduction <maximumf>, %509, %cst_85 [1] : vector<16x16xf32> to vector<16xf32>
    %511 = vector.shape_cast %510 : vector<16xf32> to vector<16x1xf32>
    %512 = vector.broadcast %511 : vector<16x1xf32> to vector<16x16xf32>
    %513 = arith.subf %509, %512 : vector<16x16xf32>
    %514 = math.exp %513 : vector<16x16xf32>
    %cst_86 = arith.constant dense<0.000000e+00> : vector<16xf32>
    %515 = vector.multi_reduction <add>, %514, %cst_86 [1] : vector<16x16xf32> to vector<16xf32>
    %516 = vector.shape_cast %515 : vector<16xf32> to vector<16x1xf32>
    %517 = tpu.reciprocal %516 {approx = true} : vector<16x1xf32> -> vector<16x1xf32>
    %518 = vector.broadcast %517 : vector<16x1xf32> to vector<16x16xf32>
    %519 = arith.mulf %514, %518 : vector<16x16xf32>
    %520 = arith.truncf %519 : vector<16x16xf32> to vector<16x16xbf16>
    %521 = vector.extract_strided_slice %17 {offsets = [0, 24], sizes = [16, 8], strides = [1, 1]} : vector<16x32xf32> to vector<16x8xf32>
    %522 = arith.truncf %521 : vector<16x8xf32> to vector<16x8xbf16>
    %cst_87 = arith.constant dense<0.000000e+00> : vector<16x8xf32>
    %523 = tpu.matmul %520, %522, %cst_87 {dimension_numbers = #tpu.dot_dimension_numbers<[1], [0], [0], [1], [0, 0, 1, 1], [], []>} : vector<16x16xbf16>, vector<16x8xbf16>, vector<16x8xf32> -> vector<16x8xf32>
    %524 = tpu.concatenate %145, %271, %397, %523 in 1 : vector<16x8xf32>, vector<16x8xf32>, vector<16x8xf32>, vector<16x8xf32> -> vector<16x32xf32>
    %525 = vector.broadcast %10 : vector<1x32xf32> to vector<16x32xf32>
    %526 = arith.addf %524, %525 : vector<16x32xf32>
    %cst_88 = arith.constant 0.000000e+00 : f32
    %527 = vector.broadcast %cst_88 : f32 to vector<16x32xf32>
    %528 = arith.maximumf %526, %527 : vector<16x32xf32>
    %c24 = arith.constant 24 : index
    %c0_89 = arith.constant 0 : index
    %529 = vector.load %arg5[%c24, %c0_89] : memref<72x64xf32, #tpu.memory_space<vmem>>, vector<1x16xf32>
    %c32 = arith.constant 32 : index
    %c0_90 = arith.constant 0 : index
    %530 = vector.load %arg5[%c32, %c0_90] : memref<72x64xf32, #tpu.memory_space<vmem>>, vector<4x2xf32>
    %c40 = arith.constant 40 : index
    %c0_91 = arith.constant 0 : index
    %531 = vector.load %arg5[%c40, %c0_91] : memref<72x64xf32, #tpu.memory_space<vmem>>, vector<1x8xf32>
    %c0_92 = arith.constant 0 : index
    %c0_93 = arith.constant 0 : index
    %532 = vector.load %arg3[%c0_92, %c0_93] : memref<32x16xf32, #tpu.memory_space<vmem>>, vector<32x16xf32>
    %533 = arith.truncf %528 : vector<16x32xf32> to vector<16x32xbf16>
    %534 = arith.truncf %532 : vector<32x16xf32> to vector<32x16xbf16>
    %cst_94 = arith.constant dense<0.000000e+00> : vector<16x16xf32>
    %535 = tpu.matmul %533, %534, %cst_94 {dimension_numbers = #tpu.dot_dimension_numbers<[1], [0], [0], [1], [0, 0, 1, 1], [], []>} : vector<16x32xbf16>, vector<32x16xbf16>, vector<16x16xf32> -> vector<16x16xf32>
    %536 = vector.broadcast %529 : vector<1x16xf32> to vector<16x16xf32>
    %537 = arith.addf %535, %536 : vector<16x16xf32>
    %538 = vector.extract_strided_slice %537 {offsets = [0, 0], sizes = [16, 8], strides = [1, 1]} : vector<16x16xf32> to vector<16x8xf32>
    %539 = vector.extract_strided_slice %537 {offsets = [0, 8], sizes = [16, 8], strides = [1, 1]} : vector<16x16xf32> to vector<16x8xf32>
    %540 = tpu.transpose %538, [1, 0] : vector<16x8xf32> -> vector<8x16xf32>
    %541 = vector.extract_strided_slice %539 {offsets = [0, 0], sizes = [16, 1], strides = [1, 1]} : vector<16x8xf32> to vector<16x1xf32>
    %542 = vector.extract_strided_slice %540 {offsets = [0, 0], sizes = [1, 16], strides = [1, 1]} : vector<8x16xf32> to vector<1x16xf32>
    %543 = vector.broadcast %541 : vector<16x1xf32> to vector<16x16xf32>
    %544 = vector.broadcast %542 : vector<1x16xf32> to vector<16x16xf32>
    %545 = arith.addf %543, %544 : vector<16x16xf32>
    %cst_95 = arith.constant 0.000000e+00 : f32
    %546 = vector.broadcast %cst_95 : f32 to vector<16x16xf32>
    %547 = arith.cmpf oge, %545, %546 : vector<16x16xf32>
    %cst_96 = arith.constant 2.000000e-01 : f32
    %548 = vector.broadcast %cst_96 : f32 to vector<16x16xf32>
    %549 = arith.mulf %548, %545 : vector<16x16xf32>
    %550 = arith.select %547, %545, %549 : vector<16x16xi1>, vector<16x16xf32>
    %551 = vector.extract_strided_slice %530 {offsets = [0, 0], sizes = [1, 1], strides = [1, 1]} : vector<4x2xf32> to vector<1x1xf32>
    %552 = vector.broadcast %551 : vector<1x1xf32> to vector<16x16xf32>
    %553 = arith.mulf %552, %550 : vector<16x16xf32>
    %554 = vector.extract_strided_slice %539 {offsets = [0, 1], sizes = [16, 1], strides = [1, 1]} : vector<16x8xf32> to vector<16x1xf32>
    %555 = vector.extract_strided_slice %540 {offsets = [1, 0], sizes = [1, 16], strides = [1, 1]} : vector<8x16xf32> to vector<1x16xf32>
    %556 = vector.broadcast %554 : vector<16x1xf32> to vector<16x16xf32>
    %557 = vector.broadcast %555 : vector<1x16xf32> to vector<16x16xf32>
    %558 = arith.addf %556, %557 : vector<16x16xf32>
    %cst_97 = arith.constant 0.000000e+00 : f32
    %559 = vector.broadcast %cst_97 : f32 to vector<16x16xf32>
    %560 = arith.cmpf oge, %558, %559 : vector<16x16xf32>
    %cst_98 = arith.constant 2.000000e-01 : f32
    %561 = vector.broadcast %cst_98 : f32 to vector<16x16xf32>
    %562 = arith.mulf %561, %558 : vector<16x16xf32>
    %563 = arith.select %560, %558, %562 : vector<16x16xi1>, vector<16x16xf32>
    %564 = vector.extract_strided_slice %530 {offsets = [0, 1], sizes = [1, 1], strides = [1, 1]} : vector<4x2xf32> to vector<1x1xf32>
    %565 = vector.broadcast %564 : vector<1x1xf32> to vector<16x16xf32>
    %566 = arith.mulf %565, %563 : vector<16x16xf32>
    %567 = arith.addf %553, %566 : vector<16x16xf32>
    %568 = arith.addf %567, %6 : vector<16x16xf32>
    %cst_99 = arith.constant dense<0xFF800000> : vector<16xf32>
    %569 = vector.multi_reduction <maximumf>, %568, %cst_99 [1] : vector<16x16xf32> to vector<16xf32>
    %570 = vector.shape_cast %569 : vector<16xf32> to vector<16x1xf32>
    %571 = vector.broadcast %570 : vector<16x1xf32> to vector<16x16xf32>
    %572 = arith.subf %568, %571 : vector<16x16xf32>
    %573 = math.exp %572 : vector<16x16xf32>
    %cst_100 = arith.constant dense<0.000000e+00> : vector<16xf32>
    %574 = vector.multi_reduction <add>, %573, %cst_100 [1] : vector<16x16xf32> to vector<16xf32>
    %575 = vector.shape_cast %574 : vector<16xf32> to vector<16x1xf32>
    %576 = tpu.reciprocal %575 {approx = true} : vector<16x1xf32> -> vector<16x1xf32>
    %577 = vector.broadcast %576 : vector<16x1xf32> to vector<16x16xf32>
    %578 = arith.mulf %573, %577 : vector<16x16xf32>
    %579 = arith.truncf %578 : vector<16x16xf32> to vector<16x16xbf16>
    %580 = vector.extract_strided_slice %538 {offsets = [0, 0], sizes = [16, 2], strides = [1, 1]} : vector<16x8xf32> to vector<16x2xf32>
    %581 = arith.truncf %580 : vector<16x2xf32> to vector<16x2xbf16>
    %cst_101 = arith.constant dense<0.000000e+00> : vector<16x2xf32>
    %582 = tpu.matmul %579, %581, %cst_101 {dimension_numbers = #tpu.dot_dimension_numbers<[1], [0], [0], [1], [0, 0, 1, 1], [], []>} : vector<16x16xbf16>, vector<16x2xbf16>, vector<16x2xf32> -> vector<16x2xf32>
    %583 = vector.extract_strided_slice %539 {offsets = [0, 2], sizes = [16, 1], strides = [1, 1]} : vector<16x8xf32> to vector<16x1xf32>
    %584 = vector.extract_strided_slice %540 {offsets = [2, 0], sizes = [1, 16], strides = [1, 1]} : vector<8x16xf32> to vector<1x16xf32>
    %585 = vector.broadcast %583 : vector<16x1xf32> to vector<16x16xf32>
    %586 = vector.broadcast %584 : vector<1x16xf32> to vector<16x16xf32>
    %587 = arith.addf %585, %586 : vector<16x16xf32>
    %cst_102 = arith.constant 0.000000e+00 : f32
    %588 = vector.broadcast %cst_102 : f32 to vector<16x16xf32>
    %589 = arith.cmpf oge, %587, %588 : vector<16x16xf32>
    %cst_103 = arith.constant 2.000000e-01 : f32
    %590 = vector.broadcast %cst_103 : f32 to vector<16x16xf32>
    %591 = arith.mulf %590, %587 : vector<16x16xf32>
    %592 = arith.select %589, %587, %591 : vector<16x16xi1>, vector<16x16xf32>
    %593 = vector.extract_strided_slice %530 {offsets = [1, 0], sizes = [1, 1], strides = [1, 1]} : vector<4x2xf32> to vector<1x1xf32>
    %594 = vector.broadcast %593 : vector<1x1xf32> to vector<16x16xf32>
    %595 = arith.mulf %594, %592 : vector<16x16xf32>
    %596 = vector.extract_strided_slice %539 {offsets = [0, 3], sizes = [16, 1], strides = [1, 1]} : vector<16x8xf32> to vector<16x1xf32>
    %597 = vector.extract_strided_slice %540 {offsets = [3, 0], sizes = [1, 16], strides = [1, 1]} : vector<8x16xf32> to vector<1x16xf32>
    %598 = vector.broadcast %596 : vector<16x1xf32> to vector<16x16xf32>
    %599 = vector.broadcast %597 : vector<1x16xf32> to vector<16x16xf32>
    %600 = arith.addf %598, %599 : vector<16x16xf32>
    %cst_104 = arith.constant 0.000000e+00 : f32
    %601 = vector.broadcast %cst_104 : f32 to vector<16x16xf32>
    %602 = arith.cmpf oge, %600, %601 : vector<16x16xf32>
    %cst_105 = arith.constant 2.000000e-01 : f32
    %603 = vector.broadcast %cst_105 : f32 to vector<16x16xf32>
    %604 = arith.mulf %603, %600 : vector<16x16xf32>
    %605 = arith.select %602, %600, %604 : vector<16x16xi1>, vector<16x16xf32>
    %606 = vector.extract_strided_slice %530 {offsets = [1, 1], sizes = [1, 1], strides = [1, 1]} : vector<4x2xf32> to vector<1x1xf32>
    %607 = vector.broadcast %606 : vector<1x1xf32> to vector<16x16xf32>
    %608 = arith.mulf %607, %605 : vector<16x16xf32>
    %609 = arith.addf %595, %608 : vector<16x16xf32>
    %610 = arith.addf %609, %6 : vector<16x16xf32>
    %cst_106 = arith.constant dense<0xFF800000> : vector<16xf32>
    %611 = vector.multi_reduction <maximumf>, %610, %cst_106 [1] : vector<16x16xf32> to vector<16xf32>
    %612 = vector.shape_cast %611 : vector<16xf32> to vector<16x1xf32>
    %613 = vector.broadcast %612 : vector<16x1xf32> to vector<16x16xf32>
    %614 = arith.subf %610, %613 : vector<16x16xf32>
    %615 = math.exp %614 : vector<16x16xf32>
    %cst_107 = arith.constant dense<0.000000e+00> : vector<16xf32>
    %616 = vector.multi_reduction <add>, %615, %cst_107 [1] : vector<16x16xf32> to vector<16xf32>
    %617 = vector.shape_cast %616 : vector<16xf32> to vector<16x1xf32>
    %618 = tpu.reciprocal %617 {approx = true} : vector<16x1xf32> -> vector<16x1xf32>
    %619 = vector.broadcast %618 : vector<16x1xf32> to vector<16x16xf32>
    %620 = arith.mulf %615, %619 : vector<16x16xf32>
    %621 = arith.truncf %620 : vector<16x16xf32> to vector<16x16xbf16>
    %622 = vector.extract_strided_slice %538 {offsets = [0, 2], sizes = [16, 2], strides = [1, 1]} : vector<16x8xf32> to vector<16x2xf32>
    %623 = arith.truncf %622 : vector<16x2xf32> to vector<16x2xbf16>
    %cst_108 = arith.constant dense<0.000000e+00> : vector<16x2xf32>
    %624 = tpu.matmul %621, %623, %cst_108 {dimension_numbers = #tpu.dot_dimension_numbers<[1], [0], [0], [1], [0, 0, 1, 1], [], []>} : vector<16x16xbf16>, vector<16x2xbf16>, vector<16x2xf32> -> vector<16x2xf32>
    %625 = vector.extract_strided_slice %539 {offsets = [0, 4], sizes = [16, 1], strides = [1, 1]} : vector<16x8xf32> to vector<16x1xf32>
    %626 = vector.extract_strided_slice %540 {offsets = [4, 0], sizes = [1, 16], strides = [1, 1]} : vector<8x16xf32> to vector<1x16xf32>
    %627 = vector.broadcast %625 : vector<16x1xf32> to vector<16x16xf32>
    %628 = vector.broadcast %626 : vector<1x16xf32> to vector<16x16xf32>
    %629 = arith.addf %627, %628 : vector<16x16xf32>
    %cst_109 = arith.constant 0.000000e+00 : f32
    %630 = vector.broadcast %cst_109 : f32 to vector<16x16xf32>
    %631 = arith.cmpf oge, %629, %630 : vector<16x16xf32>
    %cst_110 = arith.constant 2.000000e-01 : f32
    %632 = vector.broadcast %cst_110 : f32 to vector<16x16xf32>
    %633 = arith.mulf %632, %629 : vector<16x16xf32>
    %634 = arith.select %631, %629, %633 : vector<16x16xi1>, vector<16x16xf32>
    %635 = vector.extract_strided_slice %530 {offsets = [2, 0], sizes = [1, 1], strides = [1, 1]} : vector<4x2xf32> to vector<1x1xf32>
    %636 = vector.broadcast %635 : vector<1x1xf32> to vector<16x16xf32>
    %637 = arith.mulf %636, %634 : vector<16x16xf32>
    %638 = vector.extract_strided_slice %539 {offsets = [0, 5], sizes = [16, 1], strides = [1, 1]} : vector<16x8xf32> to vector<16x1xf32>
    %639 = vector.extract_strided_slice %540 {offsets = [5, 0], sizes = [1, 16], strides = [1, 1]} : vector<8x16xf32> to vector<1x16xf32>
    %640 = vector.broadcast %638 : vector<16x1xf32> to vector<16x16xf32>
    %641 = vector.broadcast %639 : vector<1x16xf32> to vector<16x16xf32>
    %642 = arith.addf %640, %641 : vector<16x16xf32>
    %cst_111 = arith.constant 0.000000e+00 : f32
    %643 = vector.broadcast %cst_111 : f32 to vector<16x16xf32>
    %644 = arith.cmpf oge, %642, %643 : vector<16x16xf32>
    %cst_112 = arith.constant 2.000000e-01 : f32
    %645 = vector.broadcast %cst_112 : f32 to vector<16x16xf32>
    %646 = arith.mulf %645, %642 : vector<16x16xf32>
    %647 = arith.select %644, %642, %646 : vector<16x16xi1>, vector<16x16xf32>
    %648 = vector.extract_strided_slice %530 {offsets = [2, 1], sizes = [1, 1], strides = [1, 1]} : vector<4x2xf32> to vector<1x1xf32>
    %649 = vector.broadcast %648 : vector<1x1xf32> to vector<16x16xf32>
    %650 = arith.mulf %649, %647 : vector<16x16xf32>
    %651 = arith.addf %637, %650 : vector<16x16xf32>
    %652 = arith.addf %651, %6 : vector<16x16xf32>
    %cst_113 = arith.constant dense<0xFF800000> : vector<16xf32>
    %653 = vector.multi_reduction <maximumf>, %652, %cst_113 [1] : vector<16x16xf32> to vector<16xf32>
    %654 = vector.shape_cast %653 : vector<16xf32> to vector<16x1xf32>
    %655 = vector.broadcast %654 : vector<16x1xf32> to vector<16x16xf32>
    %656 = arith.subf %652, %655 : vector<16x16xf32>
    %657 = math.exp %656 : vector<16x16xf32>
    %cst_114 = arith.constant dense<0.000000e+00> : vector<16xf32>
    %658 = vector.multi_reduction <add>, %657, %cst_114 [1] : vector<16x16xf32> to vector<16xf32>
    %659 = vector.shape_cast %658 : vector<16xf32> to vector<16x1xf32>
    %660 = tpu.reciprocal %659 {approx = true} : vector<16x1xf32> -> vector<16x1xf32>
    %661 = vector.broadcast %660 : vector<16x1xf32> to vector<16x16xf32>
    %662 = arith.mulf %657, %661 : vector<16x16xf32>
    %663 = arith.truncf %662 : vector<16x16xf32> to vector<16x16xbf16>
    %664 = vector.extract_strided_slice %538 {offsets = [0, 4], sizes = [16, 2], strides = [1, 1]} : vector<16x8xf32> to vector<16x2xf32>
    %665 = arith.truncf %664 : vector<16x2xf32> to vector<16x2xbf16>
    %cst_115 = arith.constant dense<0.000000e+00> : vector<16x2xf32>
    %666 = tpu.matmul %663, %665, %cst_115 {dimension_numbers = #tpu.dot_dimension_numbers<[1], [0], [0], [1], [0, 0, 1, 1], [], []>} : vector<16x16xbf16>, vector<16x2xbf16>, vector<16x2xf32> -> vector<16x2xf32>
    %667 = vector.extract_strided_slice %539 {offsets = [0, 6], sizes = [16, 1], strides = [1, 1]} : vector<16x8xf32> to vector<16x1xf32>
    %668 = vector.extract_strided_slice %540 {offsets = [6, 0], sizes = [1, 16], strides = [1, 1]} : vector<8x16xf32> to vector<1x16xf32>
    %669 = vector.broadcast %667 : vector<16x1xf32> to vector<16x16xf32>
    %670 = vector.broadcast %668 : vector<1x16xf32> to vector<16x16xf32>
    %671 = arith.addf %669, %670 : vector<16x16xf32>
    %cst_116 = arith.constant 0.000000e+00 : f32
    %672 = vector.broadcast %cst_116 : f32 to vector<16x16xf32>
    %673 = arith.cmpf oge, %671, %672 : vector<16x16xf32>
    %cst_117 = arith.constant 2.000000e-01 : f32
    %674 = vector.broadcast %cst_117 : f32 to vector<16x16xf32>
    %675 = arith.mulf %674, %671 : vector<16x16xf32>
    %676 = arith.select %673, %671, %675 : vector<16x16xi1>, vector<16x16xf32>
    %677 = vector.extract_strided_slice %530 {offsets = [3, 0], sizes = [1, 1], strides = [1, 1]} : vector<4x2xf32> to vector<1x1xf32>
    %678 = vector.broadcast %677 : vector<1x1xf32> to vector<16x16xf32>
    %679 = arith.mulf %678, %676 : vector<16x16xf32>
    %680 = vector.extract_strided_slice %539 {offsets = [0, 7], sizes = [16, 1], strides = [1, 1]} : vector<16x8xf32> to vector<16x1xf32>
    %681 = vector.extract_strided_slice %540 {offsets = [7, 0], sizes = [1, 16], strides = [1, 1]} : vector<8x16xf32> to vector<1x16xf32>
    %682 = vector.broadcast %680 : vector<16x1xf32> to vector<16x16xf32>
    %683 = vector.broadcast %681 : vector<1x16xf32> to vector<16x16xf32>
    %684 = arith.addf %682, %683 : vector<16x16xf32>
    %cst_118 = arith.constant 0.000000e+00 : f32
    %685 = vector.broadcast %cst_118 : f32 to vector<16x16xf32>
    %686 = arith.cmpf oge, %684, %685 : vector<16x16xf32>
    %cst_119 = arith.constant 2.000000e-01 : f32
    %687 = vector.broadcast %cst_119 : f32 to vector<16x16xf32>
    %688 = arith.mulf %687, %684 : vector<16x16xf32>
    %689 = arith.select %686, %684, %688 : vector<16x16xi1>, vector<16x16xf32>
    %690 = vector.extract_strided_slice %530 {offsets = [3, 1], sizes = [1, 1], strides = [1, 1]} : vector<4x2xf32> to vector<1x1xf32>
    %691 = vector.broadcast %690 : vector<1x1xf32> to vector<16x16xf32>
    %692 = arith.mulf %691, %689 : vector<16x16xf32>
    %693 = arith.addf %679, %692 : vector<16x16xf32>
    %694 = arith.addf %693, %6 : vector<16x16xf32>
    %cst_120 = arith.constant dense<0xFF800000> : vector<16xf32>
    %695 = vector.multi_reduction <maximumf>, %694, %cst_120 [1] : vector<16x16xf32> to vector<16xf32>
    %696 = vector.shape_cast %695 : vector<16xf32> to vector<16x1xf32>
    %697 = vector.broadcast %696 : vector<16x1xf32> to vector<16x16xf32>
    %698 = arith.subf %694, %697 : vector<16x16xf32>
    %699 = math.exp %698 : vector<16x16xf32>
    %cst_121 = arith.constant dense<0.000000e+00> : vector<16xf32>
    %700 = vector.multi_reduction <add>, %699, %cst_121 [1] : vector<16x16xf32> to vector<16xf32>
    %701 = vector.shape_cast %700 : vector<16xf32> to vector<16x1xf32>
    %702 = tpu.reciprocal %701 {approx = true} : vector<16x1xf32> -> vector<16x1xf32>
    %703 = vector.broadcast %702 : vector<16x1xf32> to vector<16x16xf32>
    %704 = arith.mulf %699, %703 : vector<16x16xf32>
    %705 = arith.truncf %704 : vector<16x16xf32> to vector<16x16xbf16>
    %706 = vector.extract_strided_slice %538 {offsets = [0, 6], sizes = [16, 2], strides = [1, 1]} : vector<16x8xf32> to vector<16x2xf32>
    %707 = arith.truncf %706 : vector<16x2xf32> to vector<16x2xbf16>
    %cst_122 = arith.constant dense<0.000000e+00> : vector<16x2xf32>
    %708 = tpu.matmul %705, %707, %cst_122 {dimension_numbers = #tpu.dot_dimension_numbers<[1], [0], [0], [1], [0, 0, 1, 1], [], []>} : vector<16x16xbf16>, vector<16x2xbf16>, vector<16x2xf32> -> vector<16x2xf32>
    %709 = tpu.concatenate %582, %624, %666, %708 in 1 : vector<16x2xf32>, vector<16x2xf32>, vector<16x2xf32>, vector<16x2xf32> -> vector<16x8xf32>
    %710 = vector.broadcast %531 : vector<1x8xf32> to vector<16x8xf32>
    %711 = arith.addf %709, %710 : vector<16x8xf32>
    %cst_123 = arith.constant 0.000000e+00 : f32
    %712 = vector.broadcast %cst_123 : f32 to vector<16x8xf32>
    %713 = arith.maximumf %711, %712 : vector<16x8xf32>
    %c48 = arith.constant 48 : index
    %c0_124 = arith.constant 0 : index
    %714 = vector.load %arg5[%c48, %c0_124] : memref<72x64xf32, #tpu.memory_space<vmem>>, vector<1x2xf32>
    %c56 = arith.constant 56 : index
    %c0_125 = arith.constant 0 : index
    %715 = vector.load %arg5[%c56, %c0_125] : memref<72x64xf32, #tpu.memory_space<vmem>>, vector<1x1xf32>
    %c64 = arith.constant 64 : index
    %c0_126 = arith.constant 0 : index
    %716 = vector.load %arg5[%c64, %c0_126] : memref<72x64xf32, #tpu.memory_space<vmem>>, vector<1x1xf32>
    %c0_127 = arith.constant 0 : index
    %c0_128 = arith.constant 0 : index
    %717 = vector.load %arg4[%c0_127, %c0_128] : memref<8x2xf32, #tpu.memory_space<vmem>>, vector<8x2xf32>
    %718 = arith.truncf %713 : vector<16x8xf32> to vector<16x8xbf16>
    %719 = arith.truncf %717 : vector<8x2xf32> to vector<8x2xbf16>
    %cst_129 = arith.constant dense<0.000000e+00> : vector<16x2xf32>
    %720 = tpu.matmul %718, %719, %cst_129 {dimension_numbers = #tpu.dot_dimension_numbers<[1], [0], [0], [1], [0, 0, 1, 1], [], []>} : vector<16x8xbf16>, vector<8x2xbf16>, vector<16x2xf32> -> vector<16x2xf32>
    %721 = vector.broadcast %714 : vector<1x2xf32> to vector<16x2xf32>
    %722 = arith.addf %720, %721 : vector<16x2xf32>
    %723 = vector.extract_strided_slice %722 {offsets = [0, 0], sizes = [16, 1], strides = [1, 1]} : vector<16x2xf32> to vector<16x1xf32>
    %724 = vector.extract_strided_slice %722 {offsets = [0, 1], sizes = [16, 1], strides = [1, 1]} : vector<16x2xf32> to vector<16x1xf32>
    %725 = tpu.transpose %723, [1, 0] : vector<16x1xf32> -> vector<1x16xf32>
    %726 = vector.broadcast %724 : vector<16x1xf32> to vector<16x16xf32>
    %727 = vector.broadcast %725 : vector<1x16xf32> to vector<16x16xf32>
    %728 = arith.addf %726, %727 : vector<16x16xf32>
    %cst_130 = arith.constant 0.000000e+00 : f32
    %729 = vector.broadcast %cst_130 : f32 to vector<16x16xf32>
    %730 = arith.cmpf oge, %728, %729 : vector<16x16xf32>
    %cst_131 = arith.constant 2.000000e-01 : f32
    %731 = vector.broadcast %cst_131 : f32 to vector<16x16xf32>
    %732 = arith.mulf %731, %728 : vector<16x16xf32>
    %733 = arith.select %730, %728, %732 : vector<16x16xi1>, vector<16x16xf32>
    %734 = vector.broadcast %715 : vector<1x1xf32> to vector<16x16xf32>
    %735 = arith.mulf %734, %733 : vector<16x16xf32>
    %736 = arith.addf %735, %6 : vector<16x16xf32>
    %cst_132 = arith.constant dense<0xFF800000> : vector<16xf32>
    %737 = vector.multi_reduction <maximumf>, %736, %cst_132 [1] : vector<16x16xf32> to vector<16xf32>
    %738 = vector.shape_cast %737 : vector<16xf32> to vector<16x1xf32>
    %739 = vector.broadcast %738 : vector<16x1xf32> to vector<16x16xf32>
    %740 = arith.subf %736, %739 : vector<16x16xf32>
    %741 = math.exp %740 : vector<16x16xf32>
    %cst_133 = arith.constant dense<0.000000e+00> : vector<16xf32>
    %742 = vector.multi_reduction <add>, %741, %cst_133 [1] : vector<16x16xf32> to vector<16xf32>
    %743 = vector.shape_cast %742 : vector<16xf32> to vector<16x1xf32>
    %744 = tpu.reciprocal %743 {approx = true} : vector<16x1xf32> -> vector<16x1xf32>
    %745 = vector.broadcast %744 : vector<16x1xf32> to vector<16x16xf32>
    %746 = arith.mulf %741, %745 : vector<16x16xf32>
    %747 = arith.truncf %746 : vector<16x16xf32> to vector<16x16xbf16>
    %748 = arith.truncf %723 : vector<16x1xf32> to vector<16x1xbf16>
    %cst_134 = arith.constant dense<0.000000e+00> : vector<16x1xf32>
    %749 = tpu.matmul %747, %748, %cst_134 {dimension_numbers = #tpu.dot_dimension_numbers<[1], [0], [0], [1], [0, 0, 1, 1], [], []>} : vector<16x16xbf16>, vector<16x1xbf16>, vector<16x1xf32> -> vector<16x1xf32>
    %750 = vector.broadcast %716 : vector<1x1xf32> to vector<16x1xf32>
    %751 = arith.addf %749, %750 : vector<16x1xf32>
    %cst_135 = arith.constant 0.000000e+00 : f32
    %752 = vector.broadcast %cst_135 : f32 to vector<16x1xf32>
    %753 = arith.maximumf %751, %752 : vector<16x1xf32>
    %cst_136 = arith.constant dense<0xFF800000> : vector<16xf32>
    %754 = vector.multi_reduction <maximumf>, %753, %cst_136 [1] : vector<16x1xf32> to vector<16xf32>
    %755 = vector.shape_cast %754 : vector<16xf32> to vector<16x1xf32>
    %756 = arith.subf %753, %755 : vector<16x1xf32>
    %757 = math.exp %756 : vector<16x1xf32>
    %cst_137 = arith.constant dense<0.000000e+00> : vector<16xf32>
    %758 = vector.multi_reduction <add>, %757, %cst_137 [1] : vector<16x1xf32> to vector<16xf32>
    %759 = vector.shape_cast %758 : vector<16xf32> to vector<16x1xf32>
    %760 = arith.divf %757, %759 : vector<16x1xf32>
    %c0_138 = arith.constant 0 : index
    %c0_139 = arith.constant 0 : index
    %761 = vector.load %arg6[%c0_138, %c0_139] : memref<16x1xf32, #tpu.memory_space<vmem>>, vector<16x1xf32>
    tpu.vector_store %arg6[%c0_138, %c0_139], %760 {strides = array<i32>} : memref<16x1xf32, #tpu.memory_space<vmem>>, vector<16x1xf32>,
    return
  }
}

</mosaic_0001>

<llo_original>
// kernel: tpu_custom_call.1
$region0: #{tpu_custom_call.1}
  #allocation0 [shape = 'u32[]', space=smem, size = 0x4, offset = 0x4, fixed_abs, tag = 'smem constant byte address 0x4 - core index']
  #allocation1 [shape = 'u32[144,128]{1,0:T(1,128)}', space=vmem, size = 0x12000, scoped, tag = 'internal scratch']
  %s0 = inlined_call_operand.vmem [shape: f32[16,8], index: 0, kind: input, shape index: {}]
  %s1 = inlined_call_operand.vmem [shape: s8[16,16], index: 1, kind: input, shape index: {}]
  %s2 = inlined_call_operand.vmem [shape: f32[8,64], index: 2, kind: input, shape index: {}]
  %s3 = inlined_call_operand.vmem [shape: f32[32,16], index: 3, kind: input, shape index: {}]
  %s4 = inlined_call_operand.vmem [shape: f32[8,2], index: 4, kind: input, shape index: {}]
  %s5 = inlined_call_operand.vmem [shape: f32[72,64], index: 5, kind: input, shape index: {}]
  %s6 = inlined_call_operand.vmem [shape: f32[16,1], index: 6, kind: output, shape index: {}]
  %s7 = sld [smem:[#allocation0]]
  $region34: #{tpu_custom_call.1} parent=0
    _
  %s9 = ssub.s32 1, %s7
  %s10 = scalar_select 0, %s9, %s7
  // Predicated region
  $region2: #{tpu_custom_call.1} parent=0 // pred_check
    _
  $region3: #{tpu_custom_call.1} parent=0 // pred_check_branch
    %12 = sbr.rel (0) target = $region5
  $region4: #{tpu_custom_call.1} parent=0 // pred_region
    _
  $region5: #{tpu_custom_call.1} parent=0 // pred_fallthru
    _
  // Predicated region
  $region6: #{tpu_custom_call.1} parent=0 // pred_check
    _
  $region7: #{tpu_custom_call.1} parent=0 // pred_check_branch
    %14 = sbr.rel (0) target = $region9
  $region8: #{tpu_custom_call.1} parent=0 // pred_region
    _
  $region9: #{tpu_custom_call.1} parent=0 // pred_fallthru
    _
  // Predicated region
  $region10: #{tpu_custom_call.1} parent=0 // pred_check
    _
  $region11: #{tpu_custom_call.1} parent=0 // pred_check_branch
    %16 = sbr.rel (0) target = $region13
  $region12: #{tpu_custom_call.1} parent=0 // pred_region
    _
  $region13: #{tpu_custom_call.1} parent=0 // pred_fallthru
    _
  // Predicated region
  $region14: #{tpu_custom_call.1} parent=0 // pred_check
    _
  $region15: #{tpu_custom_call.1} parent=0 // pred_check_branch
    %18 = sbr.rel (0) target = $region17
  $region16: #{tpu_custom_call.1} parent=0 // pred_region
    _
  $region17: #{tpu_custom_call.1} parent=0 // pred_fallthru
    _
  // Predicated region
  $region18: #{tpu_custom_call.1} parent=0 // pred_check
    _
  $region19: #{tpu_custom_call.1} parent=0 // pred_check_branch
    %20 = sbr.rel (0) target = $region21
  $region20: #{tpu_custom_call.1} parent=0 // pred_region
    _
  $region21: #{tpu_custom_call.1} parent=0 // pred_fallthru
    _
  // Predicated region
  $region22: #{tpu_custom_call.1} parent=0 // pred_check
    _
  $region23: #{tpu_custom_call.1} parent=0 // pred_check_branch
    %22 = sbr.rel (0) target = $region25
  $region24: #{tpu_custom_call.1} parent=0 // pred_region
    _
  $region25: #{tpu_custom_call.1} parent=0 // pred_fallthru
    _
  %v24 = vld [vmem:[%s1] sm:$0x3]
  %v25 = vld [vmem:[%s1 + $0x2] sm:$0x3]
  %v26 = vunpack.c.0.s8 %v24
  %v27 = vunpack.c.0.s8 %v25
  %v28 = vcvt.s32.f32 %v26
  %v29 = vcvt.s32.f32 %v27
  %vm30 = vcmp.gt.f32.partialorder %v28, 0.0
  %vm31 = vcmp.gt.f32.partialorder %v29, 0.0
  %v32 = vsel %vm30, 0.0, -1e+30
  %v33 = vsel %vm31, 0.0, -1e+30
  %v34 = vld [vmem:[%s0] sm:$0xff]
  %v35 = vld [vmem:[%s0 + $0x8] sm:$0xff]
  %v36 = vld [vmem:[%s5] sm:$0x1]
  %v37 = vld [vmem:[%s5 + $0x8] sm:$0xf]
  %v38 = vld [vmem:[%s5 + $0x10] sm:$0x1]
  %v39 = vld [vmem:[%s2] sm:$0xff]
  %v40 = vpack.c.bf16 %v35, %v34
  %v41 = vpack.c.bf16 %v39, %v39
  %v42 = vlaneseq
  %v43 = vshrl.u32 %v42, 7
  %v44 = vsub.s32 0, %v43
  %v45 = vrot.slane %v36, %v44
  %vm46 = vcmask 64512
  %v48 = vsel %vm46, %v40, 0
  %vm50 = vcmask 1043456
  %v52 = vsel %vm50, %v41, 0
  %54 = vmatprep.subr.bf16.mxu0 0
  %55 = vmatpush1.bf16.msra.mxu0 0
  %56 = vmatprep.subr.bf16.mxu0 0
  %57 = vmatpush1.bf16.msra.mxu0 0
  %58 = vmatprep.subr.bf16.mxu0 0
  %59 = vmatpush1.bf16.msra.mxu0 0
  %60 = vmatprep.subr.bf16.mxu0 0
  %61 = vmatpush1.bf16.msra.mxu0 0
  %62 = vmatprep.subr.bf16.mxu0 0
  %63 = vmatpush1.bf16.msra.mxu0 0
  %64 = vmatprep.subr.bf16.mxu0 0
  %65 = vmatpush1.bf16.msra.mxu0 0
  %66 = vmatprep.subr.bf16.mxu0 0
  %67 = vmatpush1.bf16.msra.mxu0 0
  %68 = vmatprep.subr.bf16.mxu0 0
  %69 = vmatpush1.bf16.msra.mxu0 %v52
  %70 = vmatprep.subr.bf16.mxu0 0
  %71 = vmatpush2.bf16.msra.mxu0 0
  %72 = vmatprep.subr.bf16.mxu0 0
  %73 = vmatpush2.bf16.msra.mxu0 0
  %74 = vmatprep.subr.bf16.mxu0 0
  %75 = vmatpush2.bf16.msra.mxu0 0
  %76 = vmatprep.subr.bf16.mxu0 0
  %77 = vmatpush2.bf16.msra.mxu0 0
  %78 = vmatprep.subr.bf16.mxu0 0
  %79 = vmatpush2.bf16.msra.mxu0 0
  %80 = vmatprep.subr.bf16.mxu0 0
  %81 = vmatpush2.bf16.msra.mxu0 0
  %82 = vmatprep.subr.bf16.mxu0 0
  %83 = vmatpush2.bf16.msra.mxu0 0
  %84 = vmatprep.subr.bf16.mxu0 0
  %85 = vmatpush2.bf16.msra.mxu0 0
  %86 = vmatprep.mubr.bf16.mxu0 0
  %87 = vmatmul.mubr.bf16.gmra.mxu0 %v48
  %v88 = vpop.f32.mrf.mxu0
  %v89 = vadd.f32 %v45, %v88
  %v90 = vpop.f32.mrf.mxu0
  %v91 = vpop.f32.mrf.mxu0
  %v92 = vadd.f32 %v45, %v91
  %v93 = vpop.f32.mrf.mxu0
  %94 = vdwg.mxu0
  %95 = vxpose.xlu0.b32.start [1/16] %v89, 128
  %96 = vxpose.xlu0.b32.cont [2/16] %v92, 128
  %97 = vxpose.xlu0.b32.cont [3/16] 0.0, 128
  %98 = vxpose.xlu0.b32.cont [4/16] 0.0, 128
  %99 = vxpose.xlu0.b32.cont [5/16] 0.0, 128
  %100 = vxpose.xlu0.b32.cont [6/16] 0.0, 128
  %101 = vxpose.xlu0.b32.cont [7/16] 0.0, 128
  %102 = vxpose.xlu0.b32.cont [8/16] 0.0, 128
  %103 = vxpose.xlu0.b32.cont [9/16] 0.0, 128
  %104 = vxpose.xlu0.b32.cont [10/16] 0.0, 128
  %105 = vxpose.xlu0.b32.cont [11/16] 0.0, 128
  %106 = vxpose.xlu0.b32.cont [12/16] 0.0, 128
  %107 = vxpose.xlu0.b32.cont [13/16] 0.0, 128
  %108 = vxpose.xlu0.b32.cont [14/16] 0.0, 128
  %109 = vxpose.xlu0.b32.cont [15/16] 0.0, 128
  %110 = vxpose.xlu0.b32.end [16/16] 0.0, 128
  %v111 = vpop.trf.xlu0
  %v112 = vpop.trf.xlu0
  %v113 = vpop.trf.xlu0
  %v114 = vpop.trf.xlu0
  %v115 = vpop.trf.xlu0
  %v116 = vpop.trf.xlu0
  %v117 = vpop.trf.xlu0
  %v118 = vpop.trf.xlu0
  %v119 = vpop.trf.xlu0
  %v120 = vpop.trf.xlu0
  %v121 = vpop.trf.xlu0
  %v122 = vpop.trf.xlu0
  %v123 = vpop.trf.xlu0
  %v124 = vpop.trf.xlu0
  %v125 = vpop.trf.xlu0
  %v126 = vpop.trf.xlu0
  %128 = vset.pattern.permute.xlu0 32
  %129 = vperm.xlu0 %128, %v89
  %v130 = vpop.permute.xlu0 %129
  %133 = vset.pattern.permute.xlu0 32
  %134 = vperm.xlu0 %133, %v92
  %v135 = vpop.permute.xlu0 %134
  %v137 = vlaneseq
  %v138 = vshrl.u32 %v137, 7
  %v139 = vsub.s32 0, %v138
  %v140 = vrot.slane %v111, %v139
  %v141 = vadd.f32 %v130, %v140
  %v142 = vadd.f32 %v135, %v140
  %vm143 = vcmp.ge.f32.partialorder %v141, 0.0
  %vm144 = vcmp.ge.f32.partialorder %v142, 0.0
  %v145 = vmul.f32 %v141, 0.2
  %v146 = vmul.f32 %v142, 0.2
  %v147 = vsel %vm143, %v141, %v145
  %v148 = vsel %vm144, %v142, %v146
  %s150 = vtos %v37
  %v151 = vstv %s150
  %v153 = vmul.f32 %v151, %v147
  %v154 = vmul.f32 %v151, %v148
  %155 = vset.pattern.permute.xlu0 33
  %156 = vperm.xlu0 %155, %v89
  %v157 = vpop.permute.xlu0 %156
  %159 = vset.pattern.permute.xlu0 33
  %160 = vperm.xlu0 %159, %v92
  %v161 = vpop.permute.xlu0 %160
  %v163 = vlaneseq
  %v164 = vshrl.u32 %v163, 7
  %v165 = vsub.s32 1, %v164
  %v166 = vrot.slane %v111, %v165
  %v167 = vadd.f32 %v157, %v166
  %v168 = vadd.f32 %v161, %v166
  %vm169 = vcmp.ge.f32.partialorder %v167, 0.0
  %vm170 = vcmp.ge.f32.partialorder %v168, 0.0
  %v171 = vmul.f32 %v167, 0.2
  %v172 = vmul.f32 %v168, 0.2
  %v173 = vsel %vm169, %v167, %v171
  %v174 = vsel %vm170, %v168, %v172
  %175 = vrot.lane.b32.xlu0 %v37, 127
  %v176 = vpop.permute.xlu0 %175
  %s177 = vtos %v176
  %v178 = vstv %s177
  %v180 = vmul.f32 %v178, %v173
  %v181 = vmul.f32 %v178, %v174
  %v182 = vadd.f32 %v153, %v180
  %v183 = vadd.f32 %v154, %v181
  %184 = vset.pattern.permute.xlu0 34
  %185 = vperm.xlu0 %184, %v89
  %v186 = vpop.permute.xlu0 %185
  %188 = vset.pattern.permute.xlu0 34
  %189 = vperm.xlu0 %188, %v92
  %v190 = vpop.permute.xlu0 %189
  %v192 = vlaneseq
  %v193 = vshrl.u32 %v192, 7
  %v194 = vsub.s32 2, %v193
  %v195 = vrot.slane %v111, %v194
  %v196 = vadd.f32 %v186, %v195
  %v197 = vadd.f32 %v190, %v195
  %vm198 = vcmp.ge.f32.partialorder %v196, 0.0
  %vm199 = vcmp.ge.f32.partialorder %v197, 0.0
  %v200 = vmul.f32 %v196, 0.2
  %v201 = vmul.f32 %v197, 0.2
  %v202 = vsel %vm198, %v196, %v200
  %v203 = vsel %vm199, %v197, %v201
  %204 = vrot.lane.b32.xlu0 %v37, 126
  %v205 = vpop.permute.xlu0 %204
  %s206 = vtos %v205
  %v207 = vstv %s206
  %v209 = vmul.f32 %v207, %v202
  %v210 = vmul.f32 %v207, %v203
  %v211 = vadd.f32 %v182, %v209
  %v212 = vadd.f32 %v183, %v210
  %213 = vset.pattern.permute.xlu0 35
  %214 = vperm.xlu0 %213, %v89
  %v215 = vpop.permute.xlu0 %214
  %217 = vset.pattern.permute.xlu0 35
  %218 = vperm.xlu0 %217, %v92
  %v219 = vpop.permute.xlu0 %218
  %v221 = vlaneseq
  %v222 = vshrl.u32 %v221, 7
  %v223 = vsub.s32 3, %v222
  %v224 = vrot.slane %v111, %v223
  %v225 = vadd.f32 %v215, %v224
  %v226 = vadd.f32 %v219, %v224
  %vm227 = vcmp.ge.f32.partialorder %v225, 0.0
  %vm228 = vcmp.ge.f32.partialorder %v226, 0.0
  %v229 = vmul.f32 %v225, 0.2
  %v230 = vmul.f32 %v226, 0.2
  %v231 = vsel %vm227, %v225, %v229
  %v232 = vsel %vm228, %v226, %v230
  %233 = vrot.lane.b32.xlu0 %v37, 125
  %v234 = vpop.permute.xlu0 %233
  %s235 = vtos %v234
  %v236 = vstv %s235
  %v238 = vmul.f32 %v236, %v231
  %v239 = vmul.f32 %v236, %v232
  %v240 = vadd.f32 %v211, %v238
  %v241 = vadd.f32 %v212, %v239
  %242 = vset.pattern.permute.xlu0 36
  %243 = vperm.xlu0 %242, %v89
  %v244 = vpop.permute.xlu0 %243
  %246 = vset.pattern.permute.xlu0 36
  %247 = vperm.xlu0 %246, %v92
  %v248 = vpop.permute.xlu0 %247
  %v250 = vlaneseq
  %v251 = vshrl.u32 %v250, 7
  %v252 = vsub.s32 4, %v251
  %v253 = vrot.slane %v111, %v252
  %v254 = vadd.f32 %v244, %v253
  %v255 = vadd.f32 %v248, %v253
  %vm256 = vcmp.ge.f32.partialorder %v254, 0.0
  %vm257 = vcmp.ge.f32.partialorder %v255, 0.0
  %v258 = vmul.f32 %v254, 0.2
  %v259 = vmul.f32 %v255, 0.2
  %v260 = vsel %vm256, %v254, %v258
  %v261 = vsel %vm257, %v255, %v259
  %262 = vrot.lane.b32.xlu0 %v37, 124
  %v263 = vpop.permute.xlu0 %262
  %s264 = vtos %v263
  %v265 = vstv %s264
  %v267 = vmul.f32 %v265, %v260
  %v268 = vmul.f32 %v265, %v261
  %v269 = vadd.f32 %v240, %v267
  %v270 = vadd.f32 %v241, %v268
  %271 = vset.pattern.permute.xlu0 37
  %272 = vperm.xlu0 %271, %v89
  %v273 = vpop.permute.xlu0 %272
  %275 = vset.pattern.permute.xlu0 37
  %276 = vperm.xlu0 %275, %v92
  %v277 = vpop.permute.xlu0 %276
  %v279 = vlaneseq
  %v280 = vshrl.u32 %v279, 7
  %v281 = vsub.s32 5, %v280
  %v282 = vrot.slane %v111, %v281
  %v283 = vadd.f32 %v273, %v282
  %v284 = vadd.f32 %v277, %v282
  %vm285 = vcmp.ge.f32.partialorder %v283, 0.0
  %vm286 = vcmp.ge.f32.partialorder %v284, 0.0
  %v287 = vmul.f32 %v283, 0.2
  %v288 = vmul.f32 %v284, 0.2
  %v289 = vsel %vm285, %v283, %v287
  %v290 = vsel %vm286, %v284, %v288
  %291 = vrot.lane.b32.xlu0 %v37, 123
  %v292 = vpop.permute.xlu0 %291
  %s293 = vtos %v292
  %v294 = vstv %s293
  %v296 = vmul.f32 %v294, %v289
  %v297 = vmul.f32 %v294, %v290
  %v298 = vadd.f32 %v269, %v296
  %v299 = vadd.f32 %v270, %v297
  %300 = vset.pattern.permute.xlu0 38
  %301 = vperm.xlu0 %300, %v89
  %v302 = vpop.permute.xlu0 %301
  %304 = vset.pattern.permute.xlu0 38
  %305 = vperm.xlu0 %304, %v92
  %v306 = vpop.permute.xlu0 %305
  %v308 = vlaneseq
  %v309 = vshrl.u32 %v308, 7
  %v310 = vsub.s32 6, %v309
  %v311 = vrot.slane %v111, %v310
  %v312 = vadd.f32 %v302, %v311
  %v313 = vadd.f32 %v306, %v311
  %vm314 = vcmp.ge.f32.partialorder %v312, 0.0
  %vm315 = vcmp.ge.f32.partialorder %v313, 0.0
  %v316 = vmul.f32 %v312, 0.2
  %v317 = vmul.f32 %v313, 0.2
  %v318 = vsel %vm314, %v312, %v316
  %v319 = vsel %vm315, %v313, %v317
  %320 = vrot.lane.b32.xlu0 %v37, 122
  %v321 = vpop.permute.xlu0 %320
  %s322 = vtos %v321
  %v323 = vstv %s322
  %v325 = vmul.f32 %v323, %v318
  %v326 = vmul.f32 %v323, %v319
  %v327 = vadd.f32 %v298, %v325
  %v328 = vadd.f32 %v299, %v326
  %329 = vset.pattern.permute.xlu0 39
  %330 = vperm.xlu0 %329, %v89
  %v331 = vpop.permute.xlu0 %330
  %333 = vset.pattern.permute.xlu0 39
  %334 = vperm.xlu0 %333, %v92
  %v335 = vpop.permute.xlu0 %334
  %v337 = vlaneseq
  %v338 = vshrl.u32 %v337, 7
  %v339 = vsub.s32 7, %v338
  %v340 = vrot.slane %v111, %v339
  %v341 = vadd.f32 %v331, %v340
  %v342 = vadd.f32 %v335, %v340
  %vm343 = vcmp.ge.f32.partialorder %v341, 0.0
  %vm344 = vcmp.ge.f32.partialorder %v342, 0.0
  %v345 = vmul.f32 %v341, 0.2
  %v346 = vmul.f32 %v342, 0.2
  %v347 = vsel %vm343, %v341, %v345
  %v348 = vsel %vm344, %v342, %v346
  %349 = vrot.lane.b32.xlu0 %v37, 121
  %v350 = vpop.permute.xlu0 %349
  %s351 = vtos %v350
  %v352 = vstv %s351
  %v354 = vmul.f32 %v352, %v347
  %v355 = vmul.f32 %v352, %v348
  %v356 = vadd.f32 %v327, %v354
  %v357 = vadd.f32 %v328, %v355
  %v358 = vadd.f32 %v356, %v32
  %v359 = vadd.f32 %v357, %v33
  %vm360 = vcmask 130048
  %v361 = vsel %vm360, %v358, -inf
  %362 = vmax.xlane.f32.xlu0 %v361
  %v363 = vpop.xlane.xlu0 %362
  %v364 = vsel %vm360, %v359, -inf
  %365 = vmax.xlane.f32.xlu0 %v364
  %v366 = vpop.xlane.xlu0 %365
  %v367 = vsub.f32 %v358, %v363
  %v368 = vsub.f32 %v359, %v366
  %v369 = vmul.f32 %v367, 1.442695
  %v370 = vpow.pop %v369
  %v371 = vmul.f32 %v368, 1.442695
  %v372 = vpow.pop %v371
  %v373 = vsel %vm360, %v370, 0.0
  %374 = vadd.xlane.f32.xlu0 %v373
  %v375 = vpop.xlane.xlu0 %374
  %v376 = vsel %vm360, %v372, 0.0
  %377 = vadd.xlane.f32.xlu0 %v376
  %v378 = vpop.xlane.xlu0 %377
  %v379 = vrcp.pop %v375
  %v380 = vrcp.pop %v378
  %v381 = vmul.f32 %v370, %v379
  %v382 = vmul.f32 %v372, %v380
  %v383 = vpack.c.bf16 %v382, %v381
  %v384 = vpack.c.bf16 %v92, %v89
  %v386 = vsel %vm360, %v383, 0
  %388 = vmatprep.subr.bf16.mxu0 0
  %389 = vmatpush1.bf16.msra.mxu0 0
  %390 = vmatprep.subr.bf16.mxu0 0
  %391 = vmatpush1.bf16.msra.mxu0 0
  %392 = vmatprep.subr.bf16.mxu0 0
  %393 = vmatpush1.bf16.msra.mxu0 0
  %394 = vmatprep.subr.bf16.mxu0 0
  %395 = vmatpush1.bf16.msra.mxu0 0
  %396 = vmatprep.subr.bf16.mxu0 0
  %397 = vmatpush1.bf16.msra.mxu0 0
  %398 = vmatprep.subr.bf16.mxu0 0
  %399 = vmatpush1.bf16.msra.mxu0 0
  %400 = vmatprep.subr.bf16.mxu0 0
  %401 = vmatpush1.bf16.msra.mxu0 0
  %402 = vmatprep.subr.bf16.mxu0 0
  %403 = vmatpush1.bf16.msra.mxu0 %v384
  %404 = vmatprep.subr.bf16.mxu0 0
  %405 = vmatpush2.bf16.msra.mxu0 0
  %406 = vmatprep.subr.bf16.mxu0 0
  %407 = vmatpush2.bf16.msra.mxu0 0
  %408 = vmatprep.subr.bf16.mxu0 0
  %409 = vmatpush2.bf16.msra.mxu0 0
  %410 = vmatprep.subr.bf16.mxu0 0
  %411 = vmatpush2.bf16.msra.mxu0 0
  %412 = vmatprep.subr.bf16.mxu0 0
  %413 = vmatpush2.bf16.msra.mxu0 0
  %414 = vmatprep.subr.bf16.mxu0 0
  %415 = vmatpush2.bf16.msra.mxu0 0
  %416 = vmatprep.subr.bf16.mxu0 0
  %417 = vmatpush2.bf16.msra.mxu0 0
  %418 = vmatprep.subr.bf16.mxu0 0
  %419 = vmatpush2.bf16.msra.mxu0 0
  %420 = vmatprep.mubr.bf16.mxu0 0
  %421 = vmatmul.mubr.bf16.gmra.mxu0 %v386
  %v422 = vpop.f32.mrf.mxu0
  %v423 = vadd.f32 0.0, %v422
  %v424 = vpop.f32.mrf.mxu0
  %v425 = vpop.f32.mrf.mxu0
  %v426 = vadd.f32 0.0, %v425
  %v427 = vpop.f32.mrf.mxu0
  %428 = vdwg.mxu0
  %429 = vset.pattern.permute.xlu0 40
  %430 = vperm.xlu0 %429, %v89
  %v431 = vpop.permute.xlu0 %430
  %433 = vset.pattern.permute.xlu0 40
  %434 = vperm.xlu0 %433, %v92
  %v435 = vpop.permute.xlu0 %434
  %v437 = vlaneseq
  %v438 = vshrl.u32 %v437, 7
  %v439 = vsub.s32 0, %v438
  %v440 = vrot.slane %v112, %v439
  %v441 = vadd.f32 %v431, %v440
  %v442 = vadd.f32 %v435, %v440
  %vm443 = vcmp.ge.f32.partialorder %v441, 0.0
  %vm444 = vcmp.ge.f32.partialorder %v442, 0.0
  %v445 = vmul.f32 %v441, 0.2
  %v446 = vmul.f32 %v442, 0.2
  %v447 = vsel %vm443, %v441, %v445
  %v448 = vsel %vm444, %v442, %v446
  %v449 = vrot.slane %v37, 1
  %s450 = vtos %v449
  %v451 = vstv %s450
  %v453 = vmul.f32 %v451, %v447
  %v454 = vmul.f32 %v451, %v448
  %455 = vset.pattern.permute.xlu0 41
  %456 = vperm.xlu0 %455, %v89
  %v457 = vpop.permute.xlu0 %456
  %459 = vset.pattern.permute.xlu0 41
  %460 = vperm.xlu0 %459, %v92
  %v461 = vpop.permute.xlu0 %460
  %v463 = vlaneseq
  %v464 = vshrl.u32 %v463, 7
  %v465 = vsub.s32 1, %v464
  %v466 = vrot.slane %v112, %v465
  %v467 = vadd.f32 %v457, %v466
  %v468 = vadd.f32 %v461, %v466
  %vm469 = vcmp.ge.f32.partialorder %v467, 0.0
  %vm470 = vcmp.ge.f32.partialorder %v468, 0.0
  %v471 = vmul.f32 %v467, 0.2
  %v472 = vmul.f32 %v468, 0.2
  %v473 = vsel %vm469, %v467, %v471
  %v474 = vsel %vm470, %v468, %v472
  %475 = vrot.lane.b32.xlu0 %v449, 127
  %v476 = vpop.permute.xlu0 %475
  %s477 = vtos %v476
  %v478 = vstv %s477
  %v480 = vmul.f32 %v478, %v473
  %v481 = vmul.f32 %v478, %v474
  %v482 = vadd.f32 %v453, %v480
  %v483 = vadd.f32 %v454, %v481
  %484 = vset.pattern.permute.xlu0 42
  %485 = vperm.xlu0 %484, %v89
  %v486 = vpop.permute.xlu0 %485
  %488 = vset.pattern.permute.xlu0 42
  %489 = vperm.xlu0 %488, %v92
  %v490 = vpop.permute.xlu0 %489
  %v492 = vlaneseq
  %v493 = vshrl.u32 %v492, 7
  %v494 = vsub.s32 2, %v493
  %v495 = vrot.slane %v112, %v494
  %v496 = vadd.f32 %v486, %v495
  %v497 = vadd.f32 %v490, %v495
  %vm498 = vcmp.ge.f32.partialorder %v496, 0.0
  %vm499 = vcmp.ge.f32.partialorder %v497, 0.0
  %v500 = vmul.f32 %v496, 0.2
  %v501 = vmul.f32 %v497, 0.2
  %v502 = vsel %vm498, %v496, %v500
  %v503 = vsel %vm499, %v497, %v501
  %504 = vrot.lane.b32.xlu0 %v449, 126
  %v505 = vpop.permute.xlu0 %504
  %s506 = vtos %v505
  %v507 = vstv %s506
  %v509 = vmul.f32 %v507, %v502
  %v510 = vmul.f32 %v507, %v503
  %v511 = vadd.f32 %v482, %v509
  %v512 = vadd.f32 %v483, %v510
  %513 = vset.pattern.permute.xlu0 43
  %514 = vperm.xlu0 %513, %v89
  %v515 = vpop.permute.xlu0 %514
  %517 = vset.pattern.permute.xlu0 43
  %518 = vperm.xlu0 %517, %v92
  %v519 = vpop.permute.xlu0 %518
  %v521 = vlaneseq
  %v522 = vshrl.u32 %v521, 7
  %v523 = vsub.s32 3, %v522
  %v524 = vrot.slane %v112, %v523
  %v525 = vadd.f32 %v515, %v524
  %v526 = vadd.f32 %v519, %v524
  %vm527 = vcmp.ge.f32.partialorder %v525, 0.0
  %vm528 = vcmp.ge.f32.partialorder %v526, 0.0
  %v529 = vmul.f32 %v525, 0.2
  %v530 = vmul.f32 %v526, 0.2
  %v531 = vsel %vm527, %v525, %v529
  %v532 = vsel %vm528, %v526, %v530
  %533 = vrot.lane.b32.xlu0 %v449, 125
  %v534 = vpop.permute.xlu0 %533
  %s535 = vtos %v534
  %v536 = vstv %s535
  %v538 = vmul.f32 %v536, %v531
  %v539 = vmul.f32 %v536, %v532
  %v540 = vadd.f32 %v511, %v538
  %v541 = vadd.f32 %v512, %v539
  %542 = vset.pattern.permute.xlu0 44
  %543 = vperm.xlu0 %542, %v89
  %v544 = vpop.permute.xlu0 %543
  %546 = vset.pattern.permute.xlu0 44
  %547 = vperm.xlu0 %546, %v92
  %v548 = vpop.permute.xlu0 %547
  %v550 = vlaneseq
  %v551 = vshrl.u32 %v550, 7
  %v552 = vsub.s32 4, %v551
  %v553 = vrot.slane %v112, %v552
  %v554 = vadd.f32 %v544, %v553
  %v555 = vadd.f32 %v548, %v553
  %vm556 = vcmp.ge.f32.partialorder %v554, 0.0
  %vm557 = vcmp.ge.f32.partialorder %v555, 0.0
  %v558 = vmul.f32 %v554, 0.2
  %v559 = vmul.f32 %v555, 0.2
  %v560 = vsel %vm556, %v554, %v558
  %v561 = vsel %vm557, %v555, %v559
  %562 = vrot.lane.b32.xlu0 %v449, 124
  %v563 = vpop.permute.xlu0 %562
  %s564 = vtos %v563
  %v565 = vstv %s564
  %v567 = vmul.f32 %v565, %v560
  %v568 = vmul.f32 %v565, %v561
  %v569 = vadd.f32 %v540, %v567
  %v570 = vadd.f32 %v541, %v568
  %571 = vset.pattern.permute.xlu0 45
  %572 = vperm.xlu0 %571, %v89
  %v573 = vpop.permute.xlu0 %572
  %575 = vset.pattern.permute.xlu0 45
  %576 = vperm.xlu0 %575, %v92
  %v577 = vpop.permute.xlu0 %576
  %v579 = vlaneseq
  %v580 = vshrl.u32 %v579, 7
  %v581 = vsub.s32 5, %v580
  %v582 = vrot.slane %v112, %v581
  %v583 = vadd.f32 %v573, %v582
  %v584 = vadd.f32 %v577, %v582
  %vm585 = vcmp.ge.f32.partialorder %v583, 0.0
  %vm586 = vcmp.ge.f32.partialorder %v584, 0.0
  %v587 = vmul.f32 %v583, 0.2
  %v588 = vmul.f32 %v584, 0.2
  %v589 = vsel %vm585, %v583, %v587
  %v590 = vsel %vm586, %v584, %v588
  %591 = vrot.lane.b32.xlu0 %v449, 123
  %v592 = vpop.permute.xlu0 %591
  %s593 = vtos %v592
  %v594 = vstv %s593
  %v596 = vmul.f32 %v594, %v589
  %v597 = vmul.f32 %v594, %v590
  %v598 = vadd.f32 %v569, %v596
  %v599 = vadd.f32 %v570, %v597
  %600 = vset.pattern.permute.xlu0 46
  %601 = vperm.xlu0 %600, %v89
  %v602 = vpop.permute.xlu0 %601
  %604 = vset.pattern.permute.xlu0 46
  %605 = vperm.xlu0 %604, %v92
  %v606 = vpop.permute.xlu0 %605
  %v608 = vlaneseq
  %v609 = vshrl.u32 %v608, 7
  %v610 = vsub.s32 6, %v609
  %v611 = vrot.slane %v112, %v610
  %v612 = vadd.f32 %v602, %v611
  %v613 = vadd.f32 %v606, %v611
  %vm614 = vcmp.ge.f32.partialorder %v612, 0.0
  %vm615 = vcmp.ge.f32.partialorder %v613, 0.0
  %v616 = vmul.f32 %v612, 0.2
  %v617 = vmul.f32 %v613, 0.2
  %v618 = vsel %vm614, %v612, %v616
  %v619 = vsel %vm615, %v613, %v617
  %620 = vrot.lane.b32.xlu0 %v449, 122
  %v621 = vpop.permute.xlu0 %620
  %s622 = vtos %v621
  %v623 = vstv %s622
  %v625 = vmul.f32 %v623, %v618
  %v626 = vmul.f32 %v623, %v619
  %v627 = vadd.f32 %v598, %v625
  %v628 = vadd.f32 %v599, %v626
  %629 = vset.pattern.permute.xlu0 47
  %630 = vperm.xlu0 %629, %v89
  %v631 = vpop.permute.xlu0 %630
  %633 = vset.pattern.permute.xlu0 47
  %634 = vperm.xlu0 %633, %v92
  %v635 = vpop.permute.xlu0 %634
  %v637 = vlaneseq
  %v638 = vshrl.u32 %v637, 7
  %v639 = vsub.s32 7, %v638
  %v640 = vrot.slane %v112, %v639
  %v641 = vadd.f32 %v631, %v640
  %v642 = vadd.f32 %v635, %v640
  %vm643 = vcmp.ge.f32.partialorder %v641, 0.0
  %vm644 = vcmp.ge.f32.partialorder %v642, 0.0
  %v645 = vmul.f32 %v641, 0.2
  %v646 = vmul.f32 %v642, 0.2
  %v647 = vsel %vm643, %v641, %v645
  %v648 = vsel %vm644, %v642, %v646
  %649 = vrot.lane.b32.xlu0 %v449, 121
  %v650 = vpop.permute.xlu0 %649
  %s651 = vtos %v650
  %v652 = vstv %s651
  %v654 = vmul.f32 %v652, %v647
  %v655 = vmul.f32 %v652, %v648
  %v656 = vadd.f32 %v627, %v654
  %v657 = vadd.f32 %v628, %v655
  %v658 = vadd.f32 %v656, %v32
  %v659 = vadd.f32 %v657, %v33
  %v660 = vsel %vm360, %v658, -inf
  %661 = vmax.xlane.f32.xlu0 %v660
  %v662 = vpop.xlane.xlu0 %661
  %v663 = vsel %vm360, %v659, -inf
  %664 = vmax.xlane.f32.xlu0 %v663
  %v665 = vpop.xlane.xlu0 %664
  %v666 = vsub.f32 %v658, %v662
  %v667 = vsub.f32 %v659, %v665
  %v668 = vmul.f32 %v666, 1.442695
  %v669 = vpow.pop %v668
  %v670 = vmul.f32 %v667, 1.442695
  %v671 = vpow.pop %v670
  %v672 = vsel %vm360, %v669, 0.0
  %673 = vadd.xlane.f32.xlu0 %v672
  %v674 = vpop.xlane.xlu0 %673
  %v675 = vsel %vm360, %v671, 0.0
  %676 = vadd.xlane.f32.xlu0 %v675
  %v677 = vpop.xlane.xlu0 %676
  %v678 = vrcp.pop %v674
  %v679 = vrcp.pop %v677
  %v680 = vmul.f32 %v669, %v678
  %v681 = vmul.f32 %v671, %v679
  %v682 = vpack.c.bf16 %v681, %v680
  %684 = vrot.lane.b32.xlu0 %v384, 120
  %v685 = vpop.permute.xlu0 %684
  %v688 = vsel %vm360, %v682, 0
  %690 = vmatprep.subr.bf16.mxu0 0
  %691 = vmatpush1.bf16.msra.mxu0 0
  %692 = vmatprep.subr.bf16.mxu0 0
  %693 = vmatpush1.bf16.msra.mxu0 0
  %694 = vmatprep.subr.bf16.mxu0 0
  %695 = vmatpush1.bf16.msra.mxu0 0
  %696 = vmatprep.subr.bf16.mxu0 0
  %697 = vmatpush1.bf16.msra.mxu0 0
  %698 = vmatprep.subr.bf16.mxu0 0
  %699 = vmatpush1.bf16.msra.mxu0 0
  %700 = vmatprep.subr.bf16.mxu0 0
  %701 = vmatpush1.bf16.msra.mxu0 0
  %702 = vmatprep.subr.bf16.mxu0 0
  %703 = vmatpush1.bf16.msra.mxu0 0
  %704 = vmatprep.subr.bf16.mxu0 0
  %705 = vmatpush1.bf16.msra.mxu0 %v685
  %706 = vmatprep.subr.bf16.mxu0 0
  %707 = vmatpush2.bf16.msra.mxu0 0
  %708 = vmatprep.subr.bf16.mxu0 0
  %709 = vmatpush2.bf16.msra.mxu0 0
  %710 = vmatprep.subr.bf16.mxu0 0
  %711 = vmatpush2.bf16.msra.mxu0 0
  %712 = vmatprep.subr.bf16.mxu0 0
  %713 = vmatpush2.bf16.msra.mxu0 0
  %714 = vmatprep.subr.bf16.mxu0 0
  %715 = vmatpush2.bf16.msra.mxu0 0
  %716 = vmatprep.subr.bf16.mxu0 0
  %717 = vmatpush2.bf16.msra.mxu0 0
  %718 = vmatprep.subr.bf16.mxu0 0
  %719 = vmatpush2.bf16.msra.mxu0 0
  %720 = vmatprep.subr.bf16.mxu0 0
  %721 = vmatpush2.bf16.msra.mxu0 0
  %722 = vmatprep.mubr.bf16.mxu0 0
  %723 = vmatmul.mubr.bf16.gmra.mxu0 %v688
  %v724 = vpop.f32.mrf.mxu0
  %v725 = vadd.f32 0.0, %v724
  %v726 = vpop.f32.mrf.mxu0
  %v727 = vpop.f32.mrf.mxu0
  %v728 = vadd.f32 0.0, %v727
  %v729 = vpop.f32.mrf.mxu0
  %730 = vdwg.mxu0
  %731 = vset.pattern.permute.xlu0 48
  %732 = vperm.xlu0 %731, %v89
  %v733 = vpop.permute.xlu0 %732
  %735 = vset.pattern.permute.xlu0 48
  %736 = vperm.xlu0 %735, %v92
  %v737 = vpop.permute.xlu0 %736
  %v739 = vlaneseq
  %v740 = vshrl.u32 %v739, 7
  %v741 = vsub.s32 0, %v740
  %v742 = vrot.slane %v113, %v741
  %v743 = vadd.f32 %v733, %v742
  %v744 = vadd.f32 %v737, %v742
  %vm745 = vcmp.ge.f32.partialorder %v743, 0.0
  %vm746 = vcmp.ge.f32.partialorder %v744, 0.0
  %v747 = vmul.f32 %v743, 0.2
  %v748 = vmul.f32 %v744, 0.2
  %v749 = vsel %vm745, %v743, %v747
  %v750 = vsel %vm746, %v744, %v748
  %v751 = vrot.slane %v37, 2
  %s752 = vtos %v751
  %v753 = vstv %s752
  %v755 = vmul.f32 %v753, %v749
  %v756 = vmul.f32 %v753, %v750
  %757 = vset.pattern.permute.xlu0 49
  %758 = vperm.xlu0 %757, %v89
  %v759 = vpop.permute.xlu0 %758
  %761 = vset.pattern.permute.xlu0 49
  %762 = vperm.xlu0 %761, %v92
  %v763 = vpop.permute.xlu0 %762
  %v765 = vlaneseq
  %v766 = vshrl.u32 %v765, 7
  %v767 = vsub.s32 1, %v766
  %v768 = vrot.slane %v113, %v767
  %v769 = vadd.f32 %v759, %v768
  %v770 = vadd.f32 %v763, %v768
  %vm771 = vcmp.ge.f32.partialorder %v769, 0.0
  %vm772 = vcmp.ge.f32.partialorder %v770, 0.0
  %v773 = vmul.f32 %v769, 0.2
  %v774 = vmul.f32 %v770, 0.2
  %v775 = vsel %vm771, %v769, %v773
  %v776 = vsel %vm772, %v770, %v774
  %777 = vrot.lane.b32.xlu0 %v751, 127
  %v778 = vpop.permute.xlu0 %777
  %s779 = vtos %v778
  %v780 = vstv %s779
  %v782 = vmul.f32 %v780, %v775
  %v783 = vmul.f32 %v780, %v776
  %v784 = vadd.f32 %v755, %v782
  %v785 = vadd.f32 %v756, %v783
  %786 = vset.pattern.permute.xlu0 50
  %787 = vperm.xlu0 %786, %v89
  %v788 = vpop.permute.xlu0 %787
  %790 = vset.pattern.permute.xlu0 50
  %791 = vperm.xlu0 %790, %v92
  %v792 = vpop.permute.xlu0 %791
  %v794 = vlaneseq
  %v795 = vshrl.u32 %v794, 7
  %v796 = vsub.s32 2, %v795
  %v797 = vrot.slane %v113, %v796
  %v798 = vadd.f32 %v788, %v797
  %v799 = vadd.f32 %v792, %v797
  %vm800 = vcmp.ge.f32.partialorder %v798, 0.0
  %vm801 = vcmp.ge.f32.partialorder %v799, 0.0
  %v802 = vmul.f32 %v798, 0.2
  %v803 = vmul.f32 %v799, 0.2
  %v804 = vsel %vm800, %v798, %v802
  %v805 = vsel %vm801, %v799, %v803
  %806 = vrot.lane.b32.xlu0 %v751, 126
  %v807 = vpop.permute.xlu0 %806
  %s808 = vtos %v807
  %v809 = vstv %s808
  %v811 = vmul.f32 %v809, %v804
  %v812 = vmul.f32 %v809, %v805
  %v813 = vadd.f32 %v784, %v811
  %v814 = vadd.f32 %v785, %v812
  %815 = vset.pattern.permute.xlu0 51
  %816 = vperm.xlu0 %815, %v89
  %v817 = vpop.permute.xlu0 %816
  %819 = vset.pattern.permute.xlu0 51
  %820 = vperm.xlu0 %819, %v92
  %v821 = vpop.permute.xlu0 %820
  %v823 = vlaneseq
  %v824 = vshrl.u32 %v823, 7
  %v825 = vsub.s32 3, %v824
  %v826 = vrot.slane %v113, %v825
  %v827 = vadd.f32 %v817, %v826
  %v828 = vadd.f32 %v821, %v826
  %vm829 = vcmp.ge.f32.partialorder %v827, 0.0
  %vm830 = vcmp.ge.f32.partialorder %v828, 0.0
  %v831 = vmul.f32 %v827, 0.2
  %v832 = vmul.f32 %v828, 0.2
  %v833 = vsel %vm829, %v827, %v831
  %v834 = vsel %vm830, %v828, %v832
  %835 = vrot.lane.b32.xlu0 %v751, 125
  %v836 = vpop.permute.xlu0 %835
  %s837 = vtos %v836
  %v838 = vstv %s837
  %v840 = vmul.f32 %v838, %v833
  %v841 = vmul.f32 %v838, %v834
  %v842 = vadd.f32 %v813, %v840
  %v843 = vadd.f32 %v814, %v841
  %844 = vset.pattern.permute.xlu0 52
  %845 = vperm.xlu0 %844, %v89
  %v846 = vpop.permute.xlu0 %845
  %848 = vset.pattern.permute.xlu0 52
  %849 = vperm.xlu0 %848, %v92
  %v850 = vpop.permute.xlu0 %849
  %v852 = vlaneseq
  %v853 = vshrl.u32 %v852, 7
  %v854 = vsub.s32 4, %v853
  %v855 = vrot.slane %v113, %v854
  %v856 = vadd.f32 %v846, %v855
  %v857 = vadd.f32 %v850, %v855
  %vm858 = vcmp.ge.f32.partialorder %v856, 0.0
  %vm859 = vcmp.ge.f32.partialorder %v857, 0.0
  %v860 = vmul.f32 %v856, 0.2
  %v861 = vmul.f32 %v857, 0.2
  %v862 = vsel %vm858, %v856, %v860
  %v863 = vsel %vm859, %v857, %v861
  %864 = vrot.lane.b32.xlu0 %v751, 124
  %v865 = vpop.permute.xlu0 %864
  %s866 = vtos %v865
  %v867 = vstv %s866
  %v869 = vmul.f32 %v867, %v862
  %v870 = vmul.f32 %v867, %v863
  %v871 = vadd.f32 %v842, %v869
  %v872 = vadd.f32 %v843, %v870
  %873 = vset.pattern.permute.xlu0 53
  %874 = vperm.xlu0 %873, %v89
  %v875 = vpop.permute.xlu0 %874
  %877 = vset.pattern.permute.xlu0 53
  %878 = vperm.xlu0 %877, %v92
  %v879 = vpop.permute.xlu0 %878
  %v881 = vlaneseq
  %v882 = vshrl.u32 %v881, 7
  %v883 = vsub.s32 5, %v882
  %v884 = vrot.slane %v113, %v883
  %v885 = vadd.f32 %v875, %v884
  %v886 = vadd.f32 %v879, %v884
  %vm887 = vcmp.ge.f32.partialorder %v885, 0.0
  %vm888 = vcmp.ge.f32.partialorder %v886, 0.0
  %v889 = vmul.f32 %v885, 0.2
  %v890 = vmul.f32 %v886, 0.2
  %v891 = vsel %vm887, %v885, %v889
  %v892 = vsel %vm888, %v886, %v890
  %893 = vrot.lane.b32.xlu0 %v751, 123
  %v894 = vpop.permute.xlu0 %893
  %s895 = vtos %v894
  %v896 = vstv %s895
  %v898 = vmul.f32 %v896, %v891
  %v899 = vmul.f32 %v896, %v892
  %v900 = vadd.f32 %v871, %v898
  %v901 = vadd.f32 %v872, %v899
  %902 = vset.pattern.permute.xlu0 54
  %903 = vperm.xlu0 %902, %v89
  %v904 = vpop.permute.xlu0 %903
  %906 = vset.pattern.permute.xlu0 54
  %907 = vperm.xlu0 %906, %v92
  %v908 = vpop.permute.xlu0 %907
  %v910 = vlaneseq
  %v911 = vshrl.u32 %v910, 7
  %v912 = vsub.s32 6, %v911
  %v913 = vrot.slane %v113, %v912
  %v914 = vadd.f32 %v904, %v913
  %v915 = vadd.f32 %v908, %v913
  %vm916 = vcmp.ge.f32.partialorder %v914, 0.0
  %vm917 = vcmp.ge.f32.partialorder %v915, 0.0
  %v918 = vmul.f32 %v914, 0.2
  %v919 = vmul.f32 %v915, 0.2
  %v920 = vsel %vm916, %v914, %v918
  %v921 = vsel %vm917, %v915, %v919
  %922 = vrot.lane.b32.xlu0 %v751, 122
  %v923 = vpop.permute.xlu0 %922
  %s924 = vtos %v923
  %v925 = vstv %s924
  %v927 = vmul.f32 %v925, %v920
  %v928 = vmul.f32 %v925, %v921
  %v929 = vadd.f32 %v900, %v927
  %v930 = vadd.f32 %v901, %v928
  %931 = vset.pattern.permute.xlu0 55
  %932 = vperm.xlu0 %931, %v89
  %v933 = vpop.permute.xlu0 %932
  %935 = vset.pattern.permute.xlu0 55
  %936 = vperm.xlu0 %935, %v92
  %v937 = vpop.permute.xlu0 %936
  %v939 = vlaneseq
  %v940 = vshrl.u32 %v939, 7
  %v941 = vsub.s32 7, %v940
  %v942 = vrot.slane %v113, %v941
  %v943 = vadd.f32 %v933, %v942
  %v944 = vadd.f32 %v937, %v942
  %vm945 = vcmp.ge.f32.partialorder %v943, 0.0
  %vm946 = vcmp.ge.f32.partialorder %v944, 0.0
  %v947 = vmul.f32 %v943, 0.2
  %v948 = vmul.f32 %v944, 0.2
  %v949 = vsel %vm945, %v943, %v947
  %v950 = vsel %vm946, %v944, %v948
  %951 = vrot.lane.b32.xlu0 %v751, 121
  %v952 = vpop.permute.xlu0 %951
  %s953 = vtos %v952
  %v954 = vstv %s953
  %v956 = vmul.f32 %v954, %v949
  %v957 = vmul.f32 %v954, %v950
  %v958 = vadd.f32 %v929, %v956
  %v959 = vadd.f32 %v930, %v957
  %v960 = vadd.f32 %v958, %v32
  %v961 = vadd.f32 %v959, %v33
  %v962 = vsel %vm360, %v960, -inf
  %963 = vmax.xlane.f32.xlu0 %v962
  %v964 = vpop.xlane.xlu0 %963
  %v965 = vsel %vm360, %v961, -inf
  %966 = vmax.xlane.f32.xlu0 %v965
  %v967 = vpop.xlane.xlu0 %966
  %v968 = vsub.f32 %v960, %v964
  %v969 = vsub.f32 %v961, %v967
  %v970 = vmul.f32 %v968, 1.442695
  %v971 = vpow.pop %v970
  %v972 = vmul.f32 %v969, 1.442695
  %v973 = vpow.pop %v972
  %v974 = vsel %vm360, %v971, 0.0
  %975 = vadd.xlane.f32.xlu0 %v974
  %v976 = vpop.xlane.xlu0 %975
  %v977 = vsel %vm360, %v973, 0.0
  %978 = vadd.xlane.f32.xlu0 %v977
  %v979 = vpop.xlane.xlu0 %978
  %v980 = vrcp.pop %v976
  %v981 = vrcp.pop %v979
  %v982 = vmul.f32 %v971, %v980
  %v983 = vmul.f32 %v973, %v981
  %v984 = vpack.c.bf16 %v983, %v982
  %985 = vrot.lane.b32.xlu0 %v384, 112
  %v986 = vpop.permute.xlu0 %985
  %v989 = vsel %vm360, %v984, 0
  %991 = vmatprep.subr.bf16.mxu0 0
  %992 = vmatpush1.bf16.msra.mxu0 0
  %993 = vmatprep.subr.bf16.mxu0 0
  %994 = vmatpush1.bf16.msra.mxu0 0
  %995 = vmatprep.subr.bf16.mxu0 0
  %996 = vmatpush1.bf16.msra.mxu0 0
  %997 = vmatprep.subr.bf16.mxu0 0
  %998 = vmatpush1.bf16.msra.mxu0 0
  %999 = vmatprep.subr.bf16.mxu0 0
  %1000 = vmatpush1.bf16.msra.mxu0 0
  %1001 = vmatprep.subr.bf16.mxu0 0
  %1002 = vmatpush1.bf16.msra.mxu0 0
  %1003 = vmatprep.subr.bf16.mxu0 0
  %1004 = vmatpush1.bf16.msra.mxu0 0
  %1005 = vmatprep.subr.bf16.mxu0 0
  %1006 = vmatpush1.bf16.msra.mxu0 %v986
  %1007 = vmatprep.subr.bf16.mxu0 0
  %1008 = vmatpush2.bf16.msra.mxu0 0
  %1009 = vmatprep.subr.bf16.mxu0 0
  %1010 = vmatpush2.bf16.msra.mxu0 0
  %1011 = vmatprep.subr.bf16.mxu0 0
  %1012 = vmatpush2.bf16.msra.mxu0 0
  %1013 = vmatprep.subr.bf16.mxu0 0
  %1014 = vmatpush2.bf16.msra.mxu0 0
  %1015 = vmatprep.subr.bf16.mxu0 0
  %1016 = vmatpush2.bf16.msra.mxu0 0
  %1017 = vmatprep.subr.bf16.mxu0 0
  %1018 = vmatpush2.bf16.msra.mxu0 0
  %1019 = vmatprep.subr.bf16.mxu0 0
  %1020 = vmatpush2.bf16.msra.mxu0 0
  %1021 = vmatprep.subr.bf16.mxu0 0
  %1022 = vmatpush2.bf16.msra.mxu0 0
  %1023 = vmatprep.mubr.bf16.mxu0 0
  %1024 = vmatmul.mubr.bf16.gmra.mxu0 %v989
  %v1025 = vpop.f32.mrf.mxu0
  %v1026 = vadd.f32 0.0, %v1025
  %v1027 = vpop.f32.mrf.mxu0
  %v1028 = vpop.f32.mrf.mxu0
  %v1029 = vadd.f32 0.0, %v1028
  %v1030 = vpop.f32.mrf.mxu0
  %1031 = vdwg.mxu0
  %1032 = vset.pattern.permute.xlu0 56
  %1033 = vperm.xlu0 %1032, %v89
  %v1034 = vpop.permute.xlu0 %1033
  %1036 = vset.pattern.permute.xlu0 56
  %1037 = vperm.xlu0 %1036, %v92
  %v1038 = vpop.permute.xlu0 %1037
  %v1040 = vlaneseq
  %v1041 = vshrl.u32 %v1040, 7
  %v1042 = vsub.s32 0, %v1041
  %v1043 = vrot.slane %v114, %v1042
  %v1044 = vadd.f32 %v1034, %v1043
  %v1045 = vadd.f32 %v1038, %v1043
  %vm1046 = vcmp.ge.f32.partialorder %v1044, 0.0
  %vm1047 = vcmp.ge.f32.partialorder %v1045, 0.0
  %v1048 = vmul.f32 %v1044, 0.2
  %v1049 = vmul.f32 %v1045, 0.2
  %v1050 = vsel %vm1046, %v1044, %v1048
  %v1051 = vsel %vm1047, %v1045, %v1049
  %v1052 = vrot.slane %v37, 3
  %s1053 = vtos %v1052
  %v1054 = vstv %s1053
  %v1056 = vmul.f32 %v1054, %v1050
  %v1057 = vmul.f32 %v1054, %v1051
  %1058 = vset.pattern.permute.xlu0 57
  %1059 = vperm.xlu0 %1058, %v89
  %v1060 = vpop.permute.xlu0 %1059
  %1062 = vset.pattern.permute.xlu0 57
  %1063 = vperm.xlu0 %1062, %v92
  %v1064 = vpop.permute.xlu0 %1063
  %v1066 = vlaneseq
  %v1067 = vshrl.u32 %v1066, 7
  %v1068 = vsub.s32 1, %v1067
  %v1069 = vrot.slane %v114, %v1068
  %v1070 = vadd.f32 %v1060, %v1069
  %v1071 = vadd.f32 %v1064, %v1069
  %vm1072 = vcmp.ge.f32.partialorder %v1070, 0.0
  %vm1073 = vcmp.ge.f32.partialorder %v1071, 0.0
  %v1074 = vmul.f32 %v1070, 0.2
  %v1075 = vmul.f32 %v1071, 0.2
  %v1076 = vsel %vm1072, %v1070, %v1074
  %v1077 = vsel %vm1073, %v1071, %v1075
  %1078 = vrot.lane.b32.xlu0 %v1052, 127
  %v1079 = vpop.permute.xlu0 %1078
  %s1080 = vtos %v1079
  %v1081 = vstv %s1080
  %v1083 = vmul.f32 %v1081, %v1076
  %v1084 = vmul.f32 %v1081, %v1077
  %v1085 = vadd.f32 %v1056, %v1083
  %v1086 = vadd.f32 %v1057, %v1084
  %1087 = vset.pattern.permute.xlu0 58
  %1088 = vperm.xlu0 %1087, %v89
  %v1089 = vpop.permute.xlu0 %1088
  %1091 = vset.pattern.permute.xlu0 58
  %1092 = vperm.xlu0 %1091, %v92
  %v1093 = vpop.permute.xlu0 %1092
  %v1095 = vlaneseq
  %v1096 = vshrl.u32 %v1095, 7
  %v1097 = vsub.s32 2, %v1096
  %v1098 = vrot.slane %v114, %v1097
  %v1099 = vadd.f32 %v1089, %v1098
  %v1100 = vadd.f32 %v1093, %v1098
  %vm1101 = vcmp.ge.f32.partialorder %v1099, 0.0
  %vm1102 = vcmp.ge.f32.partialorder %v1100, 0.0
  %v1103 = vmul.f32 %v1099, 0.2
  %v1104 = vmul.f32 %v1100, 0.2
  %v1105 = vsel %vm1101, %v1099, %v1103
  %v1106 = vsel %vm1102, %v1100, %v1104
  %1107 = vrot.lane.b32.xlu0 %v1052, 126
  %v1108 = vpop.permute.xlu0 %1107
  %s1109 = vtos %v1108
  %v1110 = vstv %s1109
  %v1112 = vmul.f32 %v1110, %v1105
  %v1113 = vmul.f32 %v1110, %v1106
  %v1114 = vadd.f32 %v1085, %v1112
  %v1115 = vadd.f32 %v1086, %v1113
  %1116 = vset.pattern.permute.xlu0 59
  %1117 = vperm.xlu0 %1116, %v89
  %v1118 = vpop.permute.xlu0 %1117
  %1120 = vset.pattern.permute.xlu0 59
  %1121 = vperm.xlu0 %1120, %v92
  %v1122 = vpop.permute.xlu0 %1121
  %v1124 = vlaneseq
  %v1125 = vshrl.u32 %v1124, 7
  %v1126 = vsub.s32 3, %v1125
  %v1127 = vrot.slane %v114, %v1126
  %v1128 = vadd.f32 %v1118, %v1127
  %v1129 = vadd.f32 %v1122, %v1127
  %vm1130 = vcmp.ge.f32.partialorder %v1128, 0.0
  %vm1131 = vcmp.ge.f32.partialorder %v1129, 0.0
  %v1132 = vmul.f32 %v1128, 0.2
  %v1133 = vmul.f32 %v1129, 0.2
  %v1134 = vsel %vm1130, %v1128, %v1132
  %v1135 = vsel %vm1131, %v1129, %v1133
  %1136 = vrot.lane.b32.xlu0 %v1052, 125
  %v1137 = vpop.permute.xlu0 %1136
  %s1138 = vtos %v1137
  %v1139 = vstv %s1138
  %v1141 = vmul.f32 %v1139, %v1134
  %v1142 = vmul.f32 %v1139, %v1135
  %v1143 = vadd.f32 %v1114, %v1141
  %v1144 = vadd.f32 %v1115, %v1142
  %1145 = vset.pattern.permute.xlu0 60
  %1146 = vperm.xlu0 %1145, %v89
  %v1147 = vpop.permute.xlu0 %1146
  %1149 = vset.pattern.permute.xlu0 60
  %1150 = vperm.xlu0 %1149, %v92
  %v1151 = vpop.permute.xlu0 %1150
  %v1153 = vlaneseq
  %v1154 = vshrl.u32 %v1153, 7
  %v1155 = vsub.s32 4, %v1154
  %v1156 = vrot.slane %v114, %v1155
  %v1157 = vadd.f32 %v1147, %v1156
  %v1158 = vadd.f32 %v1151, %v1156
  %vm1159 = vcmp.ge.f32.partialorder %v1157, 0.0
  %vm1160 = vcmp.ge.f32.partialorder %v1158, 0.0
  %v1161 = vmul.f32 %v1157, 0.2
  %v1162 = vmul.f32 %v1158, 0.2
  %v1163 = vsel %vm1159, %v1157, %v1161
  %v1164 = vsel %vm1160, %v1158, %v1162
  %1165 = vrot.lane.b32.xlu0 %v1052, 124
  %v1166 = vpop.permute.xlu0 %1165
  %s1167 = vtos %v1166
  %v1168 = vstv %s1167
  %v1170 = vmul.f32 %v1168, %v1163
  %v1171 = vmul.f32 %v1168, %v1164
  %v1172 = vadd.f32 %v1143, %v1170
  %v1173 = vadd.f32 %v1144, %v1171
  %1174 = vset.pattern.permute.xlu0 61
  %1175 = vperm.xlu0 %1174, %v89
  %v1176 = vpop.permute.xlu0 %1175
  %1178 = vset.pattern.permute.xlu0 61
  %1179 = vperm.xlu0 %1178, %v92
  %v1180 = vpop.permute.xlu0 %1179
  %v1182 = vlaneseq
  %v1183 = vshrl.u32 %v1182, 7
  %v1184 = vsub.s32 5, %v1183
  %v1185 = vrot.slane %v114, %v1184
  %v1186 = vadd.f32 %v1176, %v1185
  %v1187 = vadd.f32 %v1180, %v1185
  %vm1188 = vcmp.ge.f32.partialorder %v1186, 0.0
  %vm1189 = vcmp.ge.f32.partialorder %v1187, 0.0
  %v1190 = vmul.f32 %v1186, 0.2
  %v1191 = vmul.f32 %v1187, 0.2
  %v1192 = vsel %vm1188, %v1186, %v1190
  %v1193 = vsel %vm1189, %v1187, %v1191
  %1194 = vrot.lane.b32.xlu0 %v1052, 123
  %v1195 = vpop.permute.xlu0 %1194
  %s1196 = vtos %v1195
  %v1197 = vstv %s1196
  %v1199 = vmul.f32 %v1197, %v1192
  %v1200 = vmul.f32 %v1197, %v1193
  %v1201 = vadd.f32 %v1172, %v1199
  %v1202 = vadd.f32 %v1173, %v1200
  %1203 = vset.pattern.permute.xlu0 62
  %1204 = vperm.xlu0 %1203, %v89
  %v1205 = vpop.permute.xlu0 %1204
  %1207 = vset.pattern.permute.xlu0 62
  %1208 = vperm.xlu0 %1207, %v92
  %v1209 = vpop.permute.xlu0 %1208
  %v1211 = vlaneseq
  %v1212 = vshrl.u32 %v1211, 7
  %v1213 = vsub.s32 6, %v1212
  %v1214 = vrot.slane %v114, %v1213
  %v1215 = vadd.f32 %v1205, %v1214
  %v1216 = vadd.f32 %v1209, %v1214
  %vm1217 = vcmp.ge.f32.partialorder %v1215, 0.0
  %vm1218 = vcmp.ge.f32.partialorder %v1216, 0.0
  %v1219 = vmul.f32 %v1215, 0.2
  %v1220 = vmul.f32 %v1216, 0.2
  %v1221 = vsel %vm1217, %v1215, %v1219
  %v1222 = vsel %vm1218, %v1216, %v1220
  %1223 = vrot.lane.b32.xlu0 %v1052, 122
  %v1224 = vpop.permute.xlu0 %1223
  %s1225 = vtos %v1224
  %v1226 = vstv %s1225
  %v1228 = vmul.f32 %v1226, %v1221
  %v1229 = vmul.f32 %v1226, %v1222
  %v1230 = vadd.f32 %v1201, %v1228
  %v1231 = vadd.f32 %v1202, %v1229
  %1232 = vset.pattern.permute.xlu0 63
  %1233 = vperm.xlu0 %1232, %v89
  %v1234 = vpop.permute.xlu0 %1233
  %1236 = vset.pattern.permute.xlu0 63
  %1237 = vperm.xlu0 %1236, %v92
  %v1238 = vpop.permute.xlu0 %1237
  %v1240 = vlaneseq
  %v1241 = vshrl.u32 %v1240, 7
  %v1242 = vsub.s32 7, %v1241
  %v1243 = vrot.slane %v114, %v1242
  %v1244 = vadd.f32 %v1234, %v1243
  %v1245 = vadd.f32 %v1238, %v1243
  %vm1246 = vcmp.ge.f32.partialorder %v1244, 0.0
  %vm1247 = vcmp.ge.f32.partialorder %v1245, 0.0
  %v1248 = vmul.f32 %v1244, 0.2
  %v1249 = vmul.f32 %v1245, 0.2
  %v1250 = vsel %vm1246, %v1244, %v1248
  %v1251 = vsel %vm1247, %v1245, %v1249
  %1252 = vrot.lane.b32.xlu0 %v1052, 121
  %v1253 = vpop.permute.xlu0 %1252
  %s1254 = vtos %v1253
  %v1255 = vstv %s1254
  %v1257 = vmul.f32 %v1255, %v1250
  %v1258 = vmul.f32 %v1255, %v1251
  %v1259 = vadd.f32 %v1230, %v1257
  %v1260 = vadd.f32 %v1231, %v1258
  %v1261 = vadd.f32 %v1259, %v32
  %v1262 = vadd.f32 %v1260, %v33
  %v1263 = vsel %vm360, %v1261, -inf
  %1264 = vmax.xlane.f32.xlu0 %v1263
  %v1265 = vpop.xlane.xlu0 %1264
  %v1266 = vsel %vm360, %v1262, -inf
  %1267 = vmax.xlane.f32.xlu0 %v1266
  %v1268 = vpop.xlane.xlu0 %1267
  %v1269 = vsub.f32 %v1261, %v1265
  %v1270 = vsub.f32 %v1262, %v1268
  %v1271 = vmul.f32 %v1269, 1.442695
  %v1272 = vpow.pop %v1271
  %v1273 = vmul.f32 %v1270, 1.442695
  %v1274 = vpow.pop %v1273
  %v1275 = vsel %vm360, %v1272, 0.0
  %1276 = vadd.xlane.f32.xlu0 %v1275
  %v1277 = vpop.xlane.xlu0 %1276
  %v1278 = vsel %vm360, %v1274, 0.0
  %1279 = vadd.xlane.f32.xlu0 %v1278
  %v1280 = vpop.xlane.xlu0 %1279
  %v1281 = vrcp.pop %v1277
  %v1282 = vrcp.pop %v1280
  %v1283 = vmul.f32 %v1272, %v1281
  %v1284 = vmul.f32 %v1274, %v1282
  %v1285 = vpack.c.bf16 %v1284, %v1283
  %1286 = vrot.lane.b32.xlu0 %v384, 104
  %v1287 = vpop.permute.xlu0 %1286
  %v1290 = vsel %vm360, %v1285, 0
  %1292 = vmatprep.subr.bf16.mxu0 0
  %1293 = vmatpush1.bf16.msra.mxu0 0
  %1294 = vmatprep.subr.bf16.mxu0 0
  %1295 = vmatpush1.bf16.msra.mxu0 0
  %1296 = vmatprep.subr.bf16.mxu0 0
  %1297 = vmatpush1.bf16.msra.mxu0 0
  %1298 = vmatprep.subr.bf16.mxu0 0
  %1299 = vmatpush1.bf16.msra.mxu0 0
  %1300 = vmatprep.subr.bf16.mxu0 0
  %1301 = vmatpush1.bf16.msra.mxu0 0
  %1302 = vmatprep.subr.bf16.mxu0 0
  %1303 = vmatpush1.bf16.msra.mxu0 0
  %1304 = vmatprep.subr.bf16.mxu0 0
  %1305 = vmatpush1.bf16.msra.mxu0 0
  %1306 = vmatprep.subr.bf16.mxu0 0
  %1307 = vmatpush1.bf16.msra.mxu0 %v1287
  %1308 = vmatprep.subr.bf16.mxu0 0
  %1309 = vmatpush2.bf16.msra.mxu0 0
  %1310 = vmatprep.subr.bf16.mxu0 0
  %1311 = vmatpush2.bf16.msra.mxu0 0
  %1312 = vmatprep.subr.bf16.mxu0 0
  %1313 = vmatpush2.bf16.msra.mxu0 0
  %1314 = vmatprep.subr.bf16.mxu0 0
  %1315 = vmatpush2.bf16.msra.mxu0 0
  %1316 = vmatprep.subr.bf16.mxu0 0
  %1317 = vmatpush2.bf16.msra.mxu0 0
  %1318 = vmatprep.subr.bf16.mxu0 0
  %1319 = vmatpush2.bf16.msra.mxu0 0
  %1320 = vmatprep.subr.bf16.mxu0 0
  %1321 = vmatpush2.bf16.msra.mxu0 0
  %1322 = vmatprep.subr.bf16.mxu0 0
  %1323 = vmatpush2.bf16.msra.mxu0 0
  %1324 = vmatprep.mubr.bf16.mxu0 0
  %1325 = vmatmul.mubr.bf16.gmra.mxu0 %v1290
  %v1326 = vpop.f32.mrf.mxu0
  %v1327 = vadd.f32 0.0, %v1326
  %v1328 = vpop.f32.mrf.mxu0
  %v1329 = vpop.f32.mrf.mxu0
  %v1330 = vadd.f32 0.0, %v1329
  %v1331 = vpop.f32.mrf.mxu0
  %1332 = vdwg.mxu0
  %1335 = vrot.lane.b32.xlu0 %v725, 8
  %v1336 = vpop.permute.xlu0 %1335
  %1337 = vrot.lane.b32.xlu0 %v728, 8
  %v1338 = vpop.permute.xlu0 %1337
  %1343 = vrot.lane.b32.xlu0 %v1026, 16
  %v1344 = vpop.permute.xlu0 %1343
  %1345 = vrot.lane.b32.xlu0 %v1029, 16
  %v1346 = vpop.permute.xlu0 %1345
  %1351 = vrot.lane.b32.xlu0 %v1327, 24
  %v1352 = vpop.permute.xlu0 %1351
  %1353 = vrot.lane.b32.xlu0 %v1330, 24
  %v1354 = vpop.permute.xlu0 %1353
  %v1357 = vsel %vm46, %v423, %v1336
  %v1358 = vsel %vm46, %v426, %v1338
  %v1359 = vsel %vm360, %v1357, %v1344
  %v1360 = vsel %vm360, %v1358, %v1346
  %vm1361 = vcmask 195584
  %v1362 = vsel %vm1361, %v1359, %v1352
  %v1363 = vsel %vm1361, %v1360, %v1354
  %v1364 = vlaneseq
  %v1365 = vshrl.u32 %v1364, 7
  %v1366 = vsub.s32 0, %v1365
  %v1367 = vrot.slane %v38, %v1366
  %v1368 = vadd.f32 %v1362, %v1367
  %v1369 = vadd.f32 %v1363, %v1367
  %v1370 = vmax.f32 %v1368, 0.0
  %v1371 = vmax.f32 %v1369, 0.0
  %v1372 = vld [vmem:[%s5 + $0x18] sm:$0x1]
  %v1373 = vld [vmem:[%s5 + $0x20] sm:$0xf]
  %v1374 = vld [vmem:[%s5 + $0x28] sm:$0x1]
  %v1375 = vld [vmem:[%s3] sm:$0xff]
  %v1376 = vld [vmem:[%s3 + $0x8] sm:$0xff]
  %v1377 = vld [vmem:[%s3 + $0x10] sm:$0xff]
  %v1378 = vld [vmem:[%s3 + $0x18] sm:$0xff]
  %v1379 = vpack.c.bf16 %v1371, %v1370
  %v1380 = vpack.c.bf16 %v1376, %v1375
  %v1381 = vpack.c.bf16 %v1378, %v1377
  %v1382 = vlaneseq
  %v1383 = vshrl.u32 %v1382, 7
  %v1384 = vsub.s32 0, %v1383
  %v1385 = vrot.slane %v1372, %v1384
  %vm1386 = vcmask 261120
  %v1388 = vsel %vm1386, %v1379, 0
  %1390 = vmatprep.subr.bf16.mxu0 0
  %1391 = vmatpush1.bf16.msra.mxu0 0
  %1392 = vmatprep.subr.bf16.mxu0 0
  %1393 = vmatpush1.bf16.msra.mxu0 0
  %1394 = vmatprep.subr.bf16.mxu0 0
  %1395 = vmatpush1.bf16.msra.mxu0 0
  %1396 = vmatprep.subr.bf16.mxu0 0
  %1397 = vmatpush1.bf16.msra.mxu0 0
  %1398 = vmatprep.subr.bf16.mxu0 0
  %1399 = vmatpush1.bf16.msra.mxu0 0
  %1400 = vmatprep.subr.bf16.mxu0 0
  %1401 = vmatpush1.bf16.msra.mxu0 0
  %1402 = vmatprep.subr.bf16.mxu0 0
  %1403 = vmatpush1.bf16.msra.mxu0 %v1381
  %1404 = vmatprep.subr.bf16.mxu0 0
  %1405 = vmatpush1.bf16.msra.mxu0 %v1380
  %1406 = vmatprep.subr.bf16.mxu0 0
  %1407 = vmatpush2.bf16.msra.mxu0 0
  %1408 = vmatprep.subr.bf16.mxu0 0
  %1409 = vmatpush2.bf16.msra.mxu0 0
  %1410 = vmatprep.subr.bf16.mxu0 0
  %1411 = vmatpush2.bf16.msra.mxu0 0
  %1412 = vmatprep.subr.bf16.mxu0 0
  %1413 = vmatpush2.bf16.msra.mxu0 0
  %1414 = vmatprep.subr.bf16.mxu0 0
  %1415 = vmatpush2.bf16.msra.mxu0 0
  %1416 = vmatprep.subr.bf16.mxu0 0
  %1417 = vmatpush2.bf16.msra.mxu0 0
  %1418 = vmatprep.subr.bf16.mxu0 0
  %1419 = vmatpush2.bf16.msra.mxu0 0
  %1420 = vmatprep.subr.bf16.mxu0 0
  %1421 = vmatpush2.bf16.msra.mxu0 0
  %1422 = vmatprep.mubr.bf16.mxu0 0
  %1423 = vmatmul.mubr.bf16.gmra.mxu0 %v1388
  %v1424 = vpop.f32.mrf.mxu0
  %v1425 = vadd.f32 %v1385, %v1424
  %v1426 = vpop.f32.mrf.mxu0
  %v1427 = vpop.f32.mrf.mxu0
  %v1428 = vadd.f32 %v1385, %v1427
  %v1429 = vpop.f32.mrf.mxu0
  %1430 = vdwg.mxu0
  %1431 = vxpose.xlu0.b32.start [1/16] %v1425, 128
  %1432 = vxpose.xlu0.b32.cont [2/16] %v1428, 128
  %1433 = vxpose.xlu0.b32.cont [3/16] 0.0, 128
  %1434 = vxpose.xlu0.b32.cont [4/16] 0.0, 128
  %1435 = vxpose.xlu0.b32.cont [5/16] 0.0, 128
  %1436 = vxpose.xlu0.b32.cont [6/16] 0.0, 128
  %1437 = vxpose.xlu0.b32.cont [7/16] 0.0, 128
  %1438 = vxpose.xlu0.b32.cont [8/16] 0.0, 128
  %1439 = vxpose.xlu0.b32.cont [9/16] 0.0, 128
  %1440 = vxpose.xlu0.b32.cont [10/16] 0.0, 128
  %1441 = vxpose.xlu0.b32.cont [11/16] 0.0, 128
  %1442 = vxpose.xlu0.b32.cont [12/16] 0.0, 128
  %1443 = vxpose.xlu0.b32.cont [13/16] 0.0, 128
  %1444 = vxpose.xlu0.b32.cont [14/16] 0.0, 128
  %1445 = vxpose.xlu0.b32.cont [15/16] 0.0, 128
  %1446 = vxpose.xlu0.b32.end [16/16] 0.0, 128
  %v1447 = vpop.trf.xlu0
  %v1448 = vpop.trf.xlu0
  %v1449 = vpop.trf.xlu0
  %v1450 = vpop.trf.xlu0
  %v1451 = vpop.trf.xlu0
  %v1452 = vpop.trf.xlu0
  %v1453 = vpop.trf.xlu0
  %v1454 = vpop.trf.xlu0
  %v1455 = vpop.trf.xlu0
  %v1456 = vpop.trf.xlu0
  %v1457 = vpop.trf.xlu0
  %v1458 = vpop.trf.xlu0
  %v1459 = vpop.trf.xlu0
  %v1460 = vpop.trf.xlu0
  %v1461 = vpop.trf.xlu0
  %v1462 = vpop.trf.xlu0
  %1464 = vset.pattern.permute.xlu0 8
  %1465 = vperm.xlu0 %1464, %v1425
  %v1466 = vpop.permute.xlu0 %1465
  %1469 = vset.pattern.permute.xlu0 8
  %1470 = vperm.xlu0 %1469, %v1428
  %v1471 = vpop.permute.xlu0 %1470
  %v1473 = vlaneseq
  %v1474 = vshrl.u32 %v1473, 7
  %v1475 = vsub.s32 0, %v1474
  %v1476 = vrot.slane %v1447, %v1475
  %v1477 = vadd.f32 %v1466, %v1476
  %v1478 = vadd.f32 %v1471, %v1476
  %vm1479 = vcmp.ge.f32.partialorder %v1477, 0.0
  %vm1480 = vcmp.ge.f32.partialorder %v1478, 0.0
  %v1481 = vmul.f32 %v1477, 0.2
  %v1482 = vmul.f32 %v1478, 0.2
  %v1483 = vsel %vm1479, %v1477, %v1481
  %v1484 = vsel %vm1480, %v1478, %v1482
  %s1486 = vtos %v1373
  %v1487 = vstv %s1486
  %v1489 = vmul.f32 %v1487, %v1483
  %v1490 = vmul.f32 %v1487, %v1484
  %1491 = vset.pattern.permute.xlu0 9
  %1492 = vperm.xlu0 %1491, %v1425
  %v1493 = vpop.permute.xlu0 %1492
  %1495 = vset.pattern.permute.xlu0 9
  %1496 = vperm.xlu0 %1495, %v1428
  %v1497 = vpop.permute.xlu0 %1496
  %v1499 = vlaneseq
  %v1500 = vshrl.u32 %v1499, 7
  %v1501 = vsub.s32 1, %v1500
  %v1502 = vrot.slane %v1447, %v1501
  %v1503 = vadd.f32 %v1493, %v1502
  %v1504 = vadd.f32 %v1497, %v1502
  %vm1505 = vcmp.ge.f32.partialorder %v1503, 0.0
  %vm1506 = vcmp.ge.f32.partialorder %v1504, 0.0
  %v1507 = vmul.f32 %v1503, 0.2
  %v1508 = vmul.f32 %v1504, 0.2
  %v1509 = vsel %vm1505, %v1503, %v1507
  %v1510 = vsel %vm1506, %v1504, %v1508
  %1511 = vrot.lane.b32.xlu0 %v1373, 127
  %v1512 = vpop.permute.xlu0 %1511
  %s1513 = vtos %v1512
  %v1514 = vstv %s1513
  %v1516 = vmul.f32 %v1514, %v1509
  %v1517 = vmul.f32 %v1514, %v1510
  %v1518 = vadd.f32 %v1489, %v1516
  %v1519 = vadd.f32 %v1490, %v1517
  %v1520 = vadd.f32 %v1518, %v32
  %v1521 = vadd.f32 %v1519, %v33
  %v1522 = vsel %vm360, %v1520, -inf
  %1523 = vmax.xlane.f32.xlu0 %v1522
  %v1524 = vpop.xlane.xlu0 %1523
  %v1525 = vsel %vm360, %v1521, -inf
  %1526 = vmax.xlane.f32.xlu0 %v1525
  %v1527 = vpop.xlane.xlu0 %1526
  %v1528 = vsub.f32 %v1520, %v1524
  %v1529 = vsub.f32 %v1521, %v1527
  %v1530 = vmul.f32 %v1528, 1.442695
  %v1531 = vpow.pop %v1530
  %v1532 = vmul.f32 %v1529, 1.442695
  %v1533 = vpow.pop %v1532
  %v1534 = vsel %vm360, %v1531, 0.0
  %1535 = vadd.xlane.f32.xlu0 %v1534
  %v1536 = vpop.xlane.xlu0 %1535
  %v1537 = vsel %vm360, %v1533, 0.0
  %1538 = vadd.xlane.f32.xlu0 %v1537
  %v1539 = vpop.xlane.xlu0 %1538
  %v1540 = vrcp.pop %v1536
  %v1541 = vrcp.pop %v1539
  %v1542 = vmul.f32 %v1531, %v1540
  %v1543 = vmul.f32 %v1533, %v1541
  %v1544 = vpack.c.bf16 %v1543, %v1542
  %v1545 = vpack.c.bf16 %v1428, %v1425
  %v1547 = vsel %vm360, %v1544, 0
  %1549 = vmatprep.subr.bf16.mxu0 0
  %1550 = vmatpush1.bf16.msra.mxu0 0
  %1551 = vmatprep.subr.bf16.mxu0 0
  %1552 = vmatpush1.bf16.msra.mxu0 0
  %1553 = vmatprep.subr.bf16.mxu0 0
  %1554 = vmatpush1.bf16.msra.mxu0 0
  %1555 = vmatprep.subr.bf16.mxu0 0
  %1556 = vmatpush1.bf16.msra.mxu0 0
  %1557 = vmatprep.subr.bf16.mxu0 0
  %1558 = vmatpush1.bf16.msra.mxu0 0
  %1559 = vmatprep.subr.bf16.mxu0 0
  %1560 = vmatpush1.bf16.msra.mxu0 0
  %1561 = vmatprep.subr.bf16.mxu0 0
  %1562 = vmatpush1.bf16.msra.mxu0 0
  %1563 = vmatprep.subr.bf16.mxu0 0
  %1564 = vmatpush1.bf16.msra.mxu0 %v1545
  %1565 = vmatprep.subr.bf16.mxu0 0
  %1566 = vmatpush2.bf16.msra.mxu0 0
  %1567 = vmatprep.subr.bf16.mxu0 0
  %1568 = vmatpush2.bf16.msra.mxu0 0
  %1569 = vmatprep.subr.bf16.mxu0 0
  %1570 = vmatpush2.bf16.msra.mxu0 0
  %1571 = vmatprep.subr.bf16.mxu0 0
  %1572 = vmatpush2.bf16.msra.mxu0 0
  %1573 = vmatprep.subr.bf16.mxu0 0
  %1574 = vmatpush2.bf16.msra.mxu0 0
  %1575 = vmatprep.subr.bf16.mxu0 0
  %1576 = vmatpush2.bf16.msra.mxu0 0
  %1577 = vmatprep.subr.bf16.mxu0 0
  %1578 = vmatpush2.bf16.msra.mxu0 0
  %1579 = vmatprep.subr.bf16.mxu0 0
  %1580 = vmatpush2.bf16.msra.mxu0 0
  %1581 = vmatprep.mubr.bf16.mxu0 0
  %1582 = vmatmul.mubr.bf16.gmra.mxu0 %v1547
  %v1583 = vpop.f32.mrf.mxu0
  %v1584 = vadd.f32 0.0, %v1583
  %v1585 = vpop.f32.mrf.mxu0
  %v1586 = vpop.f32.mrf.mxu0
  %v1587 = vadd.f32 0.0, %v1586
  %v1588 = vpop.f32.mrf.mxu0
  %1589 = vdwg.mxu0
  %1590 = vset.pattern.permute.xlu0 10
  %1591 = vperm.xlu0 %1590, %v1425
  %v1592 = vpop.permute.xlu0 %1591
  %1594 = vset.pattern.permute.xlu0 10
  %1595 = vperm.xlu0 %1594, %v1428
  %v1596 = vpop.permute.xlu0 %1595
  %v1598 = vlaneseq
  %v1599 = vshrl.u32 %v1598, 7
  %v1600 = vsub.s32 2, %v1599
  %v1601 = vrot.slane %v1447, %v1600
  %v1602 = vadd.f32 %v1592, %v1601
  %v1603 = vadd.f32 %v1596, %v1601
  %vm1604 = vcmp.ge.f32.partialorder %v1602, 0.0
  %vm1605 = vcmp.ge.f32.partialorder %v1603, 0.0
  %v1606 = vmul.f32 %v1602, 0.2
  %v1607 = vmul.f32 %v1603, 0.2
  %v1608 = vsel %vm1604, %v1602, %v1606
  %v1609 = vsel %vm1605, %v1603, %v1607
  %v1610 = vrot.slane %v1373, 1
  %s1611 = vtos %v1610
  %v1612 = vstv %s1611
  %v1614 = vmul.f32 %v1612, %v1608
  %v1615 = vmul.f32 %v1612, %v1609
  %1616 = vset.pattern.permute.xlu0 11
  %1617 = vperm.xlu0 %1616, %v1425
  %v1618 = vpop.permute.xlu0 %1617
  %1620 = vset.pattern.permute.xlu0 11
  %1621 = vperm.xlu0 %1620, %v1428
  %v1622 = vpop.permute.xlu0 %1621
  %v1624 = vlaneseq
  %v1625 = vshrl.u32 %v1624, 7
  %v1626 = vsub.s32 3, %v1625
  %v1627 = vrot.slane %v1447, %v1626
  %v1628 = vadd.f32 %v1618, %v1627
  %v1629 = vadd.f32 %v1622, %v1627
  %vm1630 = vcmp.ge.f32.partialorder %v1628, 0.0
  %vm1631 = vcmp.ge.f32.partialorder %v1629, 0.0
  %v1632 = vmul.f32 %v1628, 0.2
  %v1633 = vmul.f32 %v1629, 0.2
  %v1634 = vsel %vm1630, %v1628, %v1632
  %v1635 = vsel %vm1631, %v1629, %v1633
  %1636 = vrot.lane.b32.xlu0 %v1610, 127
  %v1637 = vpop.permute.xlu0 %1636
  %s1638 = vtos %v1637
  %v1639 = vstv %s1638
  %v1641 = vmul.f32 %v1639, %v1634
  %v1642 = vmul.f32 %v1639, %v1635
  %v1643 = vadd.f32 %v1614, %v1641
  %v1644 = vadd.f32 %v1615, %v1642
  %v1645 = vadd.f32 %v1643, %v32
  %v1646 = vadd.f32 %v1644, %v33
  %v1647 = vsel %vm360, %v1645, -inf
  %1648 = vmax.xlane.f32.xlu0 %v1647
  %v1649 = vpop.xlane.xlu0 %1648
  %v1650 = vsel %vm360, %v1646, -inf
  %1651 = vmax.xlane.f32.xlu0 %v1650
  %v1652 = vpop.xlane.xlu0 %1651
  %v1653 = vsub.f32 %v1645, %v1649
  %v1654 = vsub.f32 %v1646, %v1652
  %v1655 = vmul.f32 %v1653, 1.442695
  %v1656 = vpow.pop %v1655
  %v1657 = vmul.f32 %v1654, 1.442695
  %v1658 = vpow.pop %v1657
  %v1659 = vsel %vm360, %v1656, 0.0
  %1660 = vadd.xlane.f32.xlu0 %v1659
  %v1661 = vpop.xlane.xlu0 %1660
  %v1662 = vsel %vm360, %v1658, 0.0
  %1663 = vadd.xlane.f32.xlu0 %v1662
  %v1664 = vpop.xlane.xlu0 %1663
  %v1665 = vrcp.pop %v1661
  %v1666 = vrcp.pop %v1664
  %v1667 = vmul.f32 %v1656, %v1665
  %v1668 = vmul.f32 %v1658, %v1666
  %v1669 = vpack.c.bf16 %v1668, %v1667
  %1671 = vrot.lane.b32.xlu0 %v1545, 126
  %v1672 = vpop.permute.xlu0 %1671
  %v1675 = vsel %vm360, %v1669, 0
  %1677 = vmatprep.subr.bf16.mxu0 0
  %1678 = vmatpush1.bf16.msra.mxu0 0
  %1679 = vmatprep.subr.bf16.mxu0 0
  %1680 = vmatpush1.bf16.msra.mxu0 0
  %1681 = vmatprep.subr.bf16.mxu0 0
  %1682 = vmatpush1.bf16.msra.mxu0 0
  %1683 = vmatprep.subr.bf16.mxu0 0
  %1684 = vmatpush1.bf16.msra.mxu0 0
  %1685 = vmatprep.subr.bf16.mxu0 0
  %1686 = vmatpush1.bf16.msra.mxu0 0
  %1687 = vmatprep.subr.bf16.mxu0 0
  %1688 = vmatpush1.bf16.msra.mxu0 0
  %1689 = vmatprep.subr.bf16.mxu0 0
  %1690 = vmatpush1.bf16.msra.mxu0 0
  %1691 = vmatprep.subr.bf16.mxu0 0
  %1692 = vmatpush1.bf16.msra.mxu0 %v1672
  %1693 = vmatprep.subr.bf16.mxu0 0
  %1694 = vmatpush2.bf16.msra.mxu0 0
  %1695 = vmatprep.subr.bf16.mxu0 0
  %1696 = vmatpush2.bf16.msra.mxu0 0
  %1697 = vmatprep.subr.bf16.mxu0 0
  %1698 = vmatpush2.bf16.msra.mxu0 0
  %1699 = vmatprep.subr.bf16.mxu0 0
  %1700 = vmatpush2.bf16.msra.mxu0 0
  %1701 = vmatprep.subr.bf16.mxu0 0
  %1702 = vmatpush2.bf16.msra.mxu0 0
  %1703 = vmatprep.subr.bf16.mxu0 0
  %1704 = vmatpush2.bf16.msra.mxu0 0
  %1705 = vmatprep.subr.bf16.mxu0 0
  %1706 = vmatpush2.bf16.msra.mxu0 0
  %1707 = vmatprep.subr.bf16.mxu0 0
  %1708 = vmatpush2.bf16.msra.mxu0 0
  %1709 = vmatprep.mubr.bf16.mxu0 0
  %1710 = vmatmul.mubr.bf16.gmra.mxu0 %v1675
  %v1711 = vpop.f32.mrf.mxu0
  %v1712 = vadd.f32 0.0, %v1711
  %v1713 = vpop.f32.mrf.mxu0
  %v1714 = vpop.f32.mrf.mxu0
  %v1715 = vadd.f32 0.0, %v1714
  %v1716 = vpop.f32.mrf.mxu0
  %1717 = vdwg.mxu0
  %1718 = vset.pattern.permute.xlu0 12
  %1719 = vperm.xlu0 %1718, %v1425
  %v1720 = vpop.permute.xlu0 %1719
  %1722 = vset.pattern.permute.xlu0 12
  %1723 = vperm.xlu0 %1722, %v1428
  %v1724 = vpop.permute.xlu0 %1723
  %v1726 = vlaneseq
  %v1727 = vshrl.u32 %v1726, 7
  %v1728 = vsub.s32 4, %v1727
  %v1729 = vrot.slane %v1447, %v1728
  %v1730 = vadd.f32 %v1720, %v1729
  %v1731 = vadd.f32 %v1724, %v1729
  %vm1732 = vcmp.ge.f32.partialorder %v1730, 0.0
  %vm1733 = vcmp.ge.f32.partialorder %v1731, 0.0
  %v1734 = vmul.f32 %v1730, 0.2
  %v1735 = vmul.f32 %v1731, 0.2
  %v1736 = vsel %vm1732, %v1730, %v1734
  %v1737 = vsel %vm1733, %v1731, %v1735
  %v1738 = vrot.slane %v1373, 2
  %s1739 = vtos %v1738
  %v1740 = vstv %s1739
  %v1742 = vmul.f32 %v1740, %v1736
  %v1743 = vmul.f32 %v1740, %v1737
  %1744 = vset.pattern.permute.xlu0 13
  %1745 = vperm.xlu0 %1744, %v1425
  %v1746 = vpop.permute.xlu0 %1745
  %1748 = vset.pattern.permute.xlu0 13
  %1749 = vperm.xlu0 %1748, %v1428
  %v1750 = vpop.permute.xlu0 %1749
  %v1752 = vlaneseq
  %v1753 = vshrl.u32 %v1752, 7
  %v1754 = vsub.s32 5, %v1753
  %v1755 = vrot.slane %v1447, %v1754
  %v1756 = vadd.f32 %v1746, %v1755
  %v1757 = vadd.f32 %v1750, %v1755
  %vm1758 = vcmp.ge.f32.partialorder %v1756, 0.0
  %vm1759 = vcmp.ge.f32.partialorder %v1757, 0.0
  %v1760 = vmul.f32 %v1756, 0.2
  %v1761 = vmul.f32 %v1757, 0.2
  %v1762 = vsel %vm1758, %v1756, %v1760
  %v1763 = vsel %vm1759, %v1757, %v1761
  %1764 = vrot.lane.b32.xlu0 %v1738, 127
  %v1765 = vpop.permute.xlu0 %1764
  %s1766 = vtos %v1765
  %v1767 = vstv %s1766
  %v1769 = vmul.f32 %v1767, %v1762
  %v1770 = vmul.f32 %v1767, %v1763
  %v1771 = vadd.f32 %v1742, %v1769
  %v1772 = vadd.f32 %v1743, %v1770
  %v1773 = vadd.f32 %v1771, %v32
  %v1774 = vadd.f32 %v1772, %v33
  %v1775 = vsel %vm360, %v1773, -inf
  %1776 = vmax.xlane.f32.xlu0 %v1775
  %v1777 = vpop.xlane.xlu0 %1776
  %v1778 = vsel %vm360, %v1774, -inf
  %1779 = vmax.xlane.f32.xlu0 %v1778
  %v1780 = vpop.xlane.xlu0 %1779
  %v1781 = vsub.f32 %v1773, %v1777
  %v1782 = vsub.f32 %v1774, %v1780
  %v1783 = vmul.f32 %v1781, 1.442695
  %v1784 = vpow.pop %v1783
  %v1785 = vmul.f32 %v1782, 1.442695
  %v1786 = vpow.pop %v1785
  %v1787 = vsel %vm360, %v1784, 0.0
  %1788 = vadd.xlane.f32.xlu0 %v1787
  %v1789 = vpop.xlane.xlu0 %1788
  %v1790 = vsel %vm360, %v1786, 0.0
  %1791 = vadd.xlane.f32.xlu0 %v1790
  %v1792 = vpop.xlane.xlu0 %1791
  %v1793 = vrcp.pop %v1789
  %v1794 = vrcp.pop %v1792
  %v1795 = vmul.f32 %v1784, %v1793
  %v1796 = vmul.f32 %v1786, %v1794
  %v1797 = vpack.c.bf16 %v1796, %v1795
  %1798 = vrot.lane.b32.xlu0 %v1545, 124
  %v1799 = vpop.permute.xlu0 %1798
  %v1802 = vsel %vm360, %v1797, 0
  %1804 = vmatprep.subr.bf16.mxu0 0
  %1805 = vmatpush1.bf16.msra.mxu0 0
  %1806 = vmatprep.subr.bf16.mxu0 0
  %1807 = vmatpush1.bf16.msra.mxu0 0
  %1808 = vmatprep.subr.bf16.mxu0 0
  %1809 = vmatpush1.bf16.msra.mxu0 0
  %1810 = vmatprep.subr.bf16.mxu0 0
  %1811 = vmatpush1.bf16.msra.mxu0 0
  %1812 = vmatprep.subr.bf16.mxu0 0
  %1813 = vmatpush1.bf16.msra.mxu0 0
  %1814 = vmatprep.subr.bf16.mxu0 0
  %1815 = vmatpush1.bf16.msra.mxu0 0
  %1816 = vmatprep.subr.bf16.mxu0 0
  %1817 = vmatpush1.bf16.msra.mxu0 0
  %1818 = vmatprep.subr.bf16.mxu0 0
  %1819 = vmatpush1.bf16.msra.mxu0 %v1799
  %1820 = vmatprep.subr.bf16.mxu0 0
  %1821 = vmatpush2.bf16.msra.mxu0 0
  %1822 = vmatprep.subr.bf16.mxu0 0
  %1823 = vmatpush2.bf16.msra.mxu0 0
  %1824 = vmatprep.subr.bf16.mxu0 0
  %1825 = vmatpush2.bf16.msra.mxu0 0
  %1826 = vmatprep.subr.bf16.mxu0 0
  %1827 = vmatpush2.bf16.msra.mxu0 0
  %1828 = vmatprep.subr.bf16.mxu0 0
  %1829 = vmatpush2.bf16.msra.mxu0 0
  %1830 = vmatprep.subr.bf16.mxu0 0
  %1831 = vmatpush2.bf16.msra.mxu0 0
  %1832 = vmatprep.subr.bf16.mxu0 0
  %1833 = vmatpush2.bf16.msra.mxu0 0
  %1834 = vmatprep.subr.bf16.mxu0 0
  %1835 = vmatpush2.bf16.msra.mxu0 0
  %1836 = vmatprep.mubr.bf16.mxu0 0
  %1837 = vmatmul.mubr.bf16.gmra.mxu0 %v1802
  %v1838 = vpop.f32.mrf.mxu0
  %v1839 = vadd.f32 0.0, %v1838
  %v1840 = vpop.f32.mrf.mxu0
  %v1841 = vpop.f32.mrf.mxu0
  %v1842 = vadd.f32 0.0, %v1841
  %v1843 = vpop.f32.mrf.mxu0
  %1844 = vdwg.mxu0
  %1845 = vset.pattern.permute.xlu0 14
  %1846 = vperm.xlu0 %1845, %v1425
  %v1847 = vpop.permute.xlu0 %1846
  %1849 = vset.pattern.permute.xlu0 14
  %1850 = vperm.xlu0 %1849, %v1428
  %v1851 = vpop.permute.xlu0 %1850
  %v1853 = vlaneseq
  %v1854 = vshrl.u32 %v1853, 7
  %v1855 = vsub.s32 6, %v1854
  %v1856 = vrot.slane %v1447, %v1855
  %v1857 = vadd.f32 %v1847, %v1856
  %v1858 = vadd.f32 %v1851, %v1856
  %vm1859 = vcmp.ge.f32.partialorder %v1857, 0.0
  %vm1860 = vcmp.ge.f32.partialorder %v1858, 0.0
  %v1861 = vmul.f32 %v1857, 0.2
  %v1862 = vmul.f32 %v1858, 0.2
  %v1863 = vsel %vm1859, %v1857, %v1861
  %v1864 = vsel %vm1860, %v1858, %v1862
  %v1865 = vrot.slane %v1373, 3
  %s1866 = vtos %v1865
  %v1867 = vstv %s1866
  %v1869 = vmul.f32 %v1867, %v1863
  %v1870 = vmul.f32 %v1867, %v1864
  %1871 = vset.pattern.permute.xlu0 15
  %1872 = vperm.xlu0 %1871, %v1425
  %v1873 = vpop.permute.xlu0 %1872
  %1875 = vset.pattern.permute.xlu0 15
  %1876 = vperm.xlu0 %1875, %v1428
  %v1877 = vpop.permute.xlu0 %1876
  %v1879 = vlaneseq
  %v1880 = vshrl.u32 %v1879, 7
  %v1881 = vsub.s32 7, %v1880
  %v1882 = vrot.slane %v1447, %v1881
  %v1883 = vadd.f32 %v1873, %v1882
  %v1884 = vadd.f32 %v1877, %v1882
  %vm1885 = vcmp.ge.f32.partialorder %v1883, 0.0
  %vm1886 = vcmp.ge.f32.partialorder %v1884, 0.0
  %v1887 = vmul.f32 %v1883, 0.2
  %v1888 = vmul.f32 %v1884, 0.2
  %v1889 = vsel %vm1885, %v1883, %v1887
  %v1890 = vsel %vm1886, %v1884, %v1888
  %1891 = vrot.lane.b32.xlu0 %v1865, 127
  %v1892 = vpop.permute.xlu0 %1891
  %s1893 = vtos %v1892
  %v1894 = vstv %s1893
  %v1896 = vmul.f32 %v1894, %v1889
  %v1897 = vmul.f32 %v1894, %v1890
  %v1898 = vadd.f32 %v1869, %v1896
  %v1899 = vadd.f32 %v1870, %v1897
  %v1900 = vadd.f32 %v1898, %v32
  %v1901 = vadd.f32 %v1899, %v33
  %v1902 = vsel %vm360, %v1900, -inf
  %1903 = vmax.xlane.f32.xlu0 %v1902
  %v1904 = vpop.xlane.xlu0 %1903
  %v1905 = vsel %vm360, %v1901, -inf
  %1906 = vmax.xlane.f32.xlu0 %v1905
  %v1907 = vpop.xlane.xlu0 %1906
  %v1908 = vsub.f32 %v1900, %v1904
  %v1909 = vsub.f32 %v1901, %v1907
  %v1910 = vmul.f32 %v1908, 1.442695
  %v1911 = vpow.pop %v1910
  %v1912 = vmul.f32 %v1909, 1.442695
  %v1913 = vpow.pop %v1912
  %v1914 = vsel %vm360, %v1911, 0.0
  %1915 = vadd.xlane.f32.xlu0 %v1914
  %v1916 = vpop.xlane.xlu0 %1915
  %v1917 = vsel %vm360, %v1913, 0.0
  %1918 = vadd.xlane.f32.xlu0 %v1917
  %v1919 = vpop.xlane.xlu0 %1918
  %v1920 = vrcp.pop %v1916
  %v1921 = vrcp.pop %v1919
  %v1922 = vmul.f32 %v1911, %v1920
  %v1923 = vmul.f32 %v1913, %v1921
  %v1924 = vpack.c.bf16 %v1923, %v1922
  %1925 = vrot.lane.b32.xlu0 %v1545, 122
  %v1926 = vpop.permute.xlu0 %1925
  %v1929 = vsel %vm360, %v1924, 0
  %1931 = vmatprep.subr.bf16.mxu0 0
  %1932 = vmatpush1.bf16.msra.mxu0 0
  %1933 = vmatprep.subr.bf16.mxu0 0
  %1934 = vmatpush1.bf16.msra.mxu0 0
  %1935 = vmatprep.subr.bf16.mxu0 0
  %1936 = vmatpush1.bf16.msra.mxu0 0
  %1937 = vmatprep.subr.bf16.mxu0 0
  %1938 = vmatpush1.bf16.msra.mxu0 0
  %1939 = vmatprep.subr.bf16.mxu0 0
  %1940 = vmatpush1.bf16.msra.mxu0 0
  %1941 = vmatprep.subr.bf16.mxu0 0
  %1942 = vmatpush1.bf16.msra.mxu0 0
  %1943 = vmatprep.subr.bf16.mxu0 0
  %1944 = vmatpush1.bf16.msra.mxu0 0
  %1945 = vmatprep.subr.bf16.mxu0 0
  %1946 = vmatpush1.bf16.msra.mxu0 %v1926
  %1947 = vmatprep.subr.bf16.mxu0 0
  %1948 = vmatpush2.bf16.msra.mxu0 0
  %1949 = vmatprep.subr.bf16.mxu0 0
  %1950 = vmatpush2.bf16.msra.mxu0 0
  %1951 = vmatprep.subr.bf16.mxu0 0
  %1952 = vmatpush2.bf16.msra.mxu0 0
  %1953 = vmatprep.subr.bf16.mxu0 0
  %1954 = vmatpush2.bf16.msra.mxu0 0
  %1955 = vmatprep.subr.bf16.mxu0 0
  %1956 = vmatpush2.bf16.msra.mxu0 0
  %1957 = vmatprep.subr.bf16.mxu0 0
  %1958 = vmatpush2.bf16.msra.mxu0 0
  %1959 = vmatprep.subr.bf16.mxu0 0
  %1960 = vmatpush2.bf16.msra.mxu0 0
  %1961 = vmatprep.subr.bf16.mxu0 0
  %1962 = vmatpush2.bf16.msra.mxu0 0
  %1963 = vmatprep.mubr.bf16.mxu0 0
  %1964 = vmatmul.mubr.bf16.gmra.mxu0 %v1929
  %v1965 = vpop.f32.mrf.mxu0
  %v1966 = vadd.f32 0.0, %v1965
  %v1967 = vpop.f32.mrf.mxu0
  %v1968 = vpop.f32.mrf.mxu0
  %v1969 = vadd.f32 0.0, %v1968
  %v1970 = vpop.f32.mrf.mxu0
  %1971 = vdwg.mxu0
  %1974 = vrot.lane.b32.xlu0 %v1712, 2
  %v1975 = vpop.permute.xlu0 %1974
  %1976 = vrot.lane.b32.xlu0 %v1715, 2
  %v1977 = vpop.permute.xlu0 %1976
  %1982 = vrot.lane.b32.xlu0 %v1839, 4
  %v1983 = vpop.permute.xlu0 %1982
  %1984 = vrot.lane.b32.xlu0 %v1842, 4
  %v1985 = vpop.permute.xlu0 %1984
  %1990 = vrot.lane.b32.xlu0 %v1966, 6
  %v1991 = vpop.permute.xlu0 %1990
  %1992 = vrot.lane.b32.xlu0 %v1969, 6
  %v1993 = vpop.permute.xlu0 %1992
  %vm1996 = vcmask 15360
  %v1997 = vsel %vm1996, %v1584, %v1975
  %v1998 = vsel %vm1996, %v1587, %v1977
  %vm1999 = vcmask 31744
  %v2000 = vsel %vm1999, %v1997, %v1983
  %v2001 = vsel %vm1999, %v1998, %v1985
  %vm2002 = vcmask 48128
  %v2003 = vsel %vm2002, %v2000, %v1991
  %v2004 = vsel %vm2002, %v2001, %v1993
  %v2005 = vlaneseq
  %v2006 = vshrl.u32 %v2005, 7
  %v2007 = vsub.s32 0, %v2006
  %v2008 = vrot.slane %v1374, %v2007
  %v2009 = vadd.f32 %v2003, %v2008
  %v2010 = vadd.f32 %v2004, %v2008
  %v2011 = vmax.f32 %v2009, 0.0
  %v2012 = vmax.f32 %v2010, 0.0
  %v2013 = vld [vmem:[%s5 + $0x30] sm:$0x1]
  %v2014 = vld [vmem:[%s5 + $0x38] sm:$0x1]
  %v2015 = vld [vmem:[%s5 + $0x40] sm:$0x1]
  %v2016 = vld [vmem:[%s4] sm:$0xff]
  %v2017 = vpack.c.bf16 %v2012, %v2011
  %v2018 = vpack.c.bf16 %v2016, %v2016
  %v2019 = vlaneseq
  %v2020 = vshrl.u32 %v2019, 7
  %v2021 = vsub.s32 0, %v2020
  %v2022 = vrot.slane %v2013, %v2021
  %v2024 = vsel %vm46, %v2017, 0
  %v2027 = vsel %vm50, %v2018, 0
  %2029 = vmatprep.subr.bf16.mxu0 0
  %2030 = vmatpush1.bf16.msra.mxu0 0
  %2031 = vmatprep.subr.bf16.mxu0 0
  %2032 = vmatpush1.bf16.msra.mxu0 0
  %2033 = vmatprep.subr.bf16.mxu0 0
  %2034 = vmatpush1.bf16.msra.mxu0 0
  %2035 = vmatprep.subr.bf16.mxu0 0
  %2036 = vmatpush1.bf16.msra.mxu0 0
  %2037 = vmatprep.subr.bf16.mxu0 0
  %2038 = vmatpush1.bf16.msra.mxu0 0
  %2039 = vmatprep.subr.bf16.mxu0 0
  %2040 = vmatpush1.bf16.msra.mxu0 0
  %2041 = vmatprep.subr.bf16.mxu0 0
  %2042 = vmatpush1.bf16.msra.mxu0 0
  %2043 = vmatprep.subr.bf16.mxu0 0
  %2044 = vmatpush1.bf16.msra.mxu0 %v2027
  %2045 = vmatprep.subr.bf16.mxu0 0
  %2046 = vmatpush2.bf16.msra.mxu0 0
  %2047 = vmatprep.subr.bf16.mxu0 0
  %2048 = vmatpush2.bf16.msra.mxu0 0
  %2049 = vmatprep.subr.bf16.mxu0 0
  %2050 = vmatpush2.bf16.msra.mxu0 0
  %2051 = vmatprep.subr.bf16.mxu0 0
  %2052 = vmatpush2.bf16.msra.mxu0 0
  %2053 = vmatprep.subr.bf16.mxu0 0
  %2054 = vmatpush2.bf16.msra.mxu0 0
  %2055 = vmatprep.subr.bf16.mxu0 0
  %2056 = vmatpush2.bf16.msra.mxu0 0
  %2057 = vmatprep.subr.bf16.mxu0 0
  %2058 = vmatpush2.bf16.msra.mxu0 0
  %2059 = vmatprep.subr.bf16.mxu0 0
  %2060 = vmatpush2.bf16.msra.mxu0 0
  %2061 = vmatprep.mubr.bf16.mxu0 0
  %2062 = vmatmul.mubr.bf16.gmra.mxu0 %v2024
  %v2063 = vpop.f32.mrf.mxu0
  %v2064 = vadd.f32 %v2022, %v2063
  %v2065 = vpop.f32.mrf.mxu0
  %v2066 = vpop.f32.mrf.mxu0
  %v2067 = vadd.f32 %v2022, %v2066
  %v2068 = vpop.f32.mrf.mxu0
  %2069 = vdwg.mxu0
  %2070 = vxpose.xlu0.b32.start [1/16] %v2064, 128
  %2071 = vxpose.xlu0.b32.cont [2/16] %v2067, 128
  %2072 = vxpose.xlu0.b32.cont [3/16] 0.0, 128
  %2073 = vxpose.xlu0.b32.cont [4/16] 0.0, 128
  %2074 = vxpose.xlu0.b32.cont [5/16] 0.0, 128
  %2075 = vxpose.xlu0.b32.cont [6/16] 0.0, 128
  %2076 = vxpose.xlu0.b32.cont [7/16] 0.0, 128
  %2077 = vxpose.xlu0.b32.cont [8/16] 0.0, 128
  %2078 = vxpose.xlu0.b32.cont [9/16] 0.0, 128
  %2079 = vxpose.xlu0.b32.cont [10/16] 0.0, 128
  %2080 = vxpose.xlu0.b32.cont [11/16] 0.0, 128
  %2081 = vxpose.xlu0.b32.cont [12/16] 0.0, 128
  %2082 = vxpose.xlu0.b32.cont [13/16] 0.0, 128
  %2083 = vxpose.xlu0.b32.cont [14/16] 0.0, 128
  %2084 = vxpose.xlu0.b32.cont [15/16] 0.0, 128
  %2085 = vxpose.xlu0.b32.end [16/16] 0.0, 128
  %v2086 = vpop.trf.xlu0
  %v2087 = vpop.trf.xlu0
  %v2088 = vpop.trf.xlu0
  %v2089 = vpop.trf.xlu0
  %v2090 = vpop.trf.xlu0
  %v2091 = vpop.trf.xlu0
  %v2092 = vpop.trf.xlu0
  %v2093 = vpop.trf.xlu0
  %v2094 = vpop.trf.xlu0
  %v2095 = vpop.trf.xlu0
  %v2096 = vpop.trf.xlu0
  %v2097 = vpop.trf.xlu0
  %v2098 = vpop.trf.xlu0
  %v2099 = vpop.trf.xlu0
  %v2100 = vpop.trf.xlu0
  %v2101 = vpop.trf.xlu0
  %2103 = vset.pattern.permute.xlu0 1
  %2104 = vperm.xlu0 %2103, %v2064
  %v2105 = vpop.permute.xlu0 %2104
  %2108 = vset.pattern.permute.xlu0 1
  %2109 = vperm.xlu0 %2108, %v2067
  %v2110 = vpop.permute.xlu0 %2109
  %v2112 = vlaneseq
  %v2113 = vshrl.u32 %v2112, 7
  %v2114 = vsub.s32 0, %v2113
  %v2115 = vrot.slane %v2086, %v2114
  %v2116 = vadd.f32 %v2105, %v2115
  %v2117 = vadd.f32 %v2110, %v2115
  %vm2118 = vcmp.ge.f32.partialorder %v2116, 0.0
  %vm2119 = vcmp.ge.f32.partialorder %v2117, 0.0
  %v2120 = vmul.f32 %v2116, 0.2
  %v2121 = vmul.f32 %v2117, 0.2
  %v2122 = vsel %vm2118, %v2116, %v2120
  %v2123 = vsel %vm2119, %v2117, %v2121
  %s2125 = vtos %v2014
  %v2126 = vstv %s2125
  %v2128 = vmul.f32 %v2126, %v2122
  %v2129 = vmul.f32 %v2126, %v2123
  %v2130 = vadd.f32 %v2128, %v32
  %v2131 = vadd.f32 %v2129, %v33
  %v2132 = vsel %vm360, %v2130, -inf
  %2133 = vmax.xlane.f32.xlu0 %v2132
  %v2134 = vpop.xlane.xlu0 %2133
  %v2135 = vsel %vm360, %v2131, -inf
  %2136 = vmax.xlane.f32.xlu0 %v2135
  %v2137 = vpop.xlane.xlu0 %2136
  %v2138 = vsub.f32 %v2130, %v2134
  %v2139 = vsub.f32 %v2131, %v2137
  %v2140 = vmul.f32 %v2138, 1.442695
  %v2141 = vpow.pop %v2140
  %v2142 = vmul.f32 %v2139, 1.442695
  %v2143 = vpow.pop %v2142
  %v2144 = vsel %vm360, %v2141, 0.0
  %2145 = vadd.xlane.f32.xlu0 %v2144
  %v2146 = vpop.xlane.xlu0 %2145
  %v2147 = vsel %vm360, %v2143, 0.0
  %2148 = vadd.xlane.f32.xlu0 %v2147
  %v2149 = vpop.xlane.xlu0 %2148
  %v2150 = vrcp.pop %v2146
  %v2151 = vrcp.pop %v2149
  %v2152 = vmul.f32 %v2141, %v2150
  %v2153 = vmul.f32 %v2143, %v2151
  %v2154 = vpack.c.bf16 %v2153, %v2152
  %v2155 = vpack.c.bf16 %v2067, %v2064
  %v2156 = vlaneseq
  %v2157 = vshrl.u32 %v2156, 7
  %v2158 = vsub.s32 0, %v2157
  %v2159 = vrot.slane %v2015, %v2158
  %v2161 = vsel %vm360, %v2154, 0
  %2163 = vmatprep.subr.bf16.mxu0 0
  %2164 = vmatpush1.bf16.msra.mxu0 0
  %2165 = vmatprep.subr.bf16.mxu0 0
  %2166 = vmatpush1.bf16.msra.mxu0 0
  %2167 = vmatprep.subr.bf16.mxu0 0
  %2168 = vmatpush1.bf16.msra.mxu0 0
  %2169 = vmatprep.subr.bf16.mxu0 0
  %2170 = vmatpush1.bf16.msra.mxu0 0
  %2171 = vmatprep.subr.bf16.mxu0 0
  %2172 = vmatpush1.bf16.msra.mxu0 0
  %2173 = vmatprep.subr.bf16.mxu0 0
  %2174 = vmatpush1.bf16.msra.mxu0 0
  %2175 = vmatprep.subr.bf16.mxu0 0
  %2176 = vmatpush1.bf16.msra.mxu0 0
  %2177 = vmatprep.subr.bf16.mxu0 0
  %2178 = vmatpush1.bf16.msra.mxu0 %v2155
  %2179 = vmatprep.subr.bf16.mxu0 0
  %2180 = vmatpush2.bf16.msra.mxu0 0
  %2181 = vmatprep.subr.bf16.mxu0 0
  %2182 = vmatpush2.bf16.msra.mxu0 0
  %2183 = vmatprep.subr.bf16.mxu0 0
  %2184 = vmatpush2.bf16.msra.mxu0 0
  %2185 = vmatprep.subr.bf16.mxu0 0
  %2186 = vmatpush2.bf16.msra.mxu0 0
  %2187 = vmatprep.subr.bf16.mxu0 0
  %2188 = vmatpush2.bf16.msra.mxu0 0
  %2189 = vmatprep.subr.bf16.mxu0 0
  %2190 = vmatpush2.bf16.msra.mxu0 0
  %2191 = vmatprep.subr.bf16.mxu0 0
  %2192 = vmatpush2.bf16.msra.mxu0 0
  %2193 = vmatprep.subr.bf16.mxu0 0
  %2194 = vmatpush2.bf16.msra.mxu0 0
  %2195 = vmatprep.mubr.bf16.mxu0 0
  %2196 = vmatmul.mubr.bf16.gmra.mxu0 %v2161
  %v2197 = vpop.f32.mrf.mxu0
  %v2198 = vadd.f32 %v2159, %v2197
  %v2199 = vpop.f32.mrf.mxu0
  %v2200 = vpop.f32.mrf.mxu0
  %v2201 = vadd.f32 %v2159, %v2200
  %v2202 = vpop.f32.mrf.mxu0
  %2203 = vdwg.mxu0
  %v2204 = vmax.f32 %v2198, 0.0
  %v2205 = vmax.f32 %v2201, 0.0
  %v2206 = vsub.f32 %v2204, %v2204
  %v2207 = vsub.f32 %v2205, %v2205
  %v2208 = vmul.f32 %v2206, 1.442695
  %v2209 = vpow.pop %v2208
  %v2210 = vmul.f32 %v2207, 1.442695
  %v2211 = vpow.pop %v2210
  %v2212 = vadd.f32 %v2209, 0.0
  %v2213 = vadd.f32 %v2211, 0.0
  %v2214 = vrcp.pop %v2212
  %v2215 = vmul.f32 %v2209, %v2214
  %v2216 = vrcp.pop %v2213
  %v2217 = vmul.f32 %v2211, %v2216
  %vm2218 = vcmask 7168
  %2219 = vst.msk [vmem:[%s6] sm:$0xff] %vm2218, %v2215
  %2220 = vst.msk [vmem:[%s6 + $0x8] sm:$0xff] %vm2218, %v2217
  // Predicated region
  $region26: #{tpu_custom_call.1} parent=0 // pred_check
    _
  $region27: #{tpu_custom_call.1} parent=0 // pred_check_branch
    %2222 = sbr.rel (0) target = $region29
  $region28: #{tpu_custom_call.1} parent=0 // pred_region
    _
  $region29: #{tpu_custom_call.1} parent=0 // pred_fallthru
    _
  // Predicated region
  $region30: #{tpu_custom_call.1} parent=0 // pred_check
    _
  $region31: #{tpu_custom_call.1} parent=0 // pred_check_branch
    %2224 = sbr.rel (0) target = $region33
  $region32: #{tpu_custom_call.1} parent=0 // pred_region
    _
  $region33: #{tpu_custom_call.1} parent=0 // pred_fallthru
    _

</llo_original>
